<compile_context>
chip_gen: v6e
topology: v6e:2x2x1
jax: 0.10.0
libtpu: 0.0.40
codegen_flags: <defaults>
</compile_context>

<pallas_src>
import jax
import jax.numpy as jnp
import numpy as np
from jax import lax
from jax.experimental import pallas as pl
from jax.experimental.pallas import tpu as pltpu


# --------------------------- conv3x3 + bias + ReLU ---------------------------

def _conv3x3_bias_relu_kernel(xp_ref, wb_ref, bias_ref, o_ref):
    """xp_ref:   (1, H+2, (W+2)*Cin)  padded input, channels-last, rows flattened
       wb_ref:   (3, (W+2)*Cin, W*Cout)  banded weight, one slice per kernel row
       bias_ref: (1, W*Cout)             bias tiled per output pixel
       o_ref:    (1, H, W*Cout)
    """
    H = o_ref.shape[1]
    xp = xp_ref[0, :, :]                                        # (H+2, (W+2)*Cin)
    acc = jnp.dot(xp[0:H, :], wb_ref[0, :, :],
                  preferred_element_type=jnp.float32)
    for ky in (1, 2):                                           # unrolled vertical taps
        acc = acc + jnp.dot(xp[ky:ky + H, :], wb_ref[ky, :, :],
                            preferred_element_type=jnp.float32)
    acc = acc + bias_ref[:, :]
    o_ref[0, :, :] = jnp.maximum(acc, 0.0).astype(o_ref.dtype)


def _banded_conv_weight(wt_oihw, W):
    """Build 3 banded matrices B_ky with
       B_ky[wp*Cin + ci, w*Cout + co] = wt[co, ci, ky, wp - w]  (0 <= wp-w < 3)
    so that a padded-row matmul performs the horizontal taps + channel
    contraction of the 3x3 conv ("lazy im2col" done once on the weights)."""
    Cout, Cin, KH, KW = wt_oihw.shape
    Wp = W + KW - 1
    rel = jnp.arange(Wp)[:, None] - jnp.arange(W)[None, :]           # (Wp, W)
    wt = jnp.transpose(wt_oihw, (2, 3, 1, 0))                        # (KH, KW, Cin, Cout)
    gathered = wt[:, jnp.clip(rel, 0, KW - 1)]                       # (KH, Wp, W, Cin, Cout)
    mask = ((rel >= 0) & (rel < KW))[None, :, :, None, None]
    band = jnp.where(mask, gathered, 0.0)                            # (KH, Wp, W, Cin, Cout)
    band = jnp.transpose(band, (0, 1, 3, 2, 4))                      # (KH, Wp, Cin, W, Cout)
    return band.reshape(KH, Wp * Cin, W * Cout)


def conv3x3_relu_pallas(x_nhwc, wt_oihw, bias):
    """Conv2d(Cin, Cout, 3, padding=1) + ReLU on channels-last input."""
    B, H, W, Cin = x_nhwc.shape
    Cout = wt_oihw.shape[0]
    Hp, Wp = H + 2, W + 2

    xp = jnp.pad(x_nhwc, ((0, 0), (1, 1), (1, 1), (0, 0)))
    xp2 = xp.reshape(B, Hp, Wp * Cin)
    wb = _banded_conv_weight(wt_oihw, W).astype(x_nhwc.dtype)
    bias_t = jnp.tile(bias, (W,)).reshape(1, W * Cout).astype(x_nhwc.dtype)

    flops = 2 * B * H * (Wp * Cin) * (W * Cout) * 3
    bytes_accessed = 4 * (B * Hp * Wp * Cin + 3 * Wp * Cin * W * Cout
                          + B * H * W * Cout)

    out = pl.pallas_call(
        _conv3x3_bias_relu_kernel,
        out_shape=jax.ShapeDtypeStruct((B, H, W * Cout), x_nhwc.dtype),
        grid_spec=pltpu.PrefetchScalarGridSpec(
            num_scalar_prefetch=0,
            grid=(B,),
            in_specs=[
                pl.BlockSpec((1, Hp, Wp * Cin), lambda b: (b, 0, 0)),
                pl.BlockSpec((3, Wp * Cin, W * Cout), lambda b: (0, 0, 0)),
                pl.BlockSpec((1, W * Cout), lambda b: (0, 0)),
            ],
            out_specs=pl.BlockSpec((1, H, W * Cout), lambda b: (b, 0, 0)),
        ),
        compiler_params=pltpu.CompilerParams(
            dimension_semantics=("parallel",)),
        cost_estimate=pl.CostEstimate(flops=int(flops), transcendentals=0,
                                      bytes_accessed=int(bytes_accessed)),
    )(xp2, wb, bias_t)
    return out.reshape(B, H, W, Cout)


# ------------------------------ 2x2 pooling ----------------------------------

def _make_pool2x2_kernel(mode):
    def kernel(x_ref, o_ref):
        # x_ref: (1, 2, W2, 2*C)  two input rows; horizontal pixel pairs are
        #                         packed along lanes as [pix(2w) ch | pix(2w+1) ch]
        # o_ref: (1, 1, W2, C)
        C = o_ref.shape[3]
        r0 = x_ref[0, 0, :, :]
        r1 = x_ref[0, 1, :, :]
        if mode == "max":
            v = jnp.maximum(r0, r1)
            out = jnp.maximum(v[:, 0:C], v[:, C:2 * C])
        else:  # "avg"
            v = r0 + r1
            out = (v[:, 0:C] + v[:, C:2 * C]) * 0.25
        o_ref[0, 0, :, :] = out.astype(o_ref.dtype)
    return kernel


def _pool2x2_pallas(x_nhwc, mode):
    B, H, W, C = x_nhwc.shape
    H2, W2 = H // 2, W // 2
    x_pairs = x_nhwc.reshape(B, H, W2, 2 * C)        # free reshape: pair columns on lanes
    return pl.pallas_call(
        _make_pool2x2_kernel(mode),
        out_shape=jax.ShapeDtypeStruct((B, H2, W2, C), x_nhwc.dtype),
        grid_spec=pltpu.PrefetchScalarGridSpec(
            num_scalar_prefetch=0,
            grid=(B, H2),
            in_specs=[pl.BlockSpec((1, 2, W2, 2 * C), lambda b, h: (b, h, 0, 0))],
            out_specs=pl.BlockSpec((1, 1, W2, C), lambda b, h: (b, h, 0, 0)),
        ),
        compiler_params=pltpu.CompilerParams(
            dimension_semantics=("parallel", "parallel")),
    )(x_pairs)


def maxpool2x2_pallas(x_nhwc):
    return _pool2x2_pallas(x_nhwc, "max")


def adaptive_avgpool7_pallas(x_nhwc):
    B, H, W, C = x_nhwc.shape
    if H == 7 and W == 7:
        return x_nhwc                       # AdaptiveAvgPool2d((7,7)) is identity here
    if H == 14 and W == 14:
        return _pool2x2_pallas(x_nhwc, "avg")
    # TODO(synk): general AdaptiveAvgPool2d((7,7)) for inputs not equal to 7x7/14x14.
    raise NotImplementedError("adaptive avg pool supported for 7x7 / 14x14 inputs")


# ------------------------------- classifier ----------------------------------

def _classifier_kernel(x_ref, w1_ref, b1_ref, w2_ref, b2_ref, w3_ref, b3_ref, o_ref):
    x = x_ref[:, :]
    h = jnp.dot(x, w1_ref[:, :], preferred_element_type=jnp.float32) + b1_ref[:, :]
    h = jnp.maximum(h, 0.0)
    # nn.Dropout is the identity at inference time.
    h = jnp.dot(h, w2_ref[:, :], preferred_element_type=jnp.float32) + b2_ref[:, :]
    h = jnp.maximum(h, 0.0)
    out = jnp.dot(h, w3_ref[:, :], preferred_element_type=jnp.float32) + b3_ref[:, :]
    o_ref[:, :] = out.astype(o_ref.dtype)


def classifier_pallas(x_flat, w1, b1, w2, b2, w3, b3):
    B, F = x_flat.shape
    D1, D2, NC = w1.shape[1], w2.shape[1], w3.shape[1]
    b1r, b2r, b3r = b1.reshape(1, D1), b2.reshape(1, D2), b3.reshape(1, NC)
    flops = 2 * B * (F * D1 + D1 * D2 + D2 * NC)
    bytes_accessed = 4 * (B * F + F * D1 + D1 * D2 + D2 * NC + B * NC)
    return pl.pallas_call(
        _classifier_kernel,
        out_shape=jax.ShapeDtypeStruct((B, NC), x_flat.dtype),
        grid_spec=pltpu.PrefetchScalarGridSpec(
            num_scalar_prefetch=0,
            grid=(1,),
            in_specs=[
                pl.BlockSpec((B, F), lambda i: (0, 0)),
                pl.BlockSpec((F, D1), lambda i: (0, 0)),
                pl.BlockSpec((1, D1), lambda i: (0, 0)),
                pl.BlockSpec((D1, D2), lambda i: (0, 0)),
                pl.BlockSpec((1, D2), lambda i: (0, 0)),
                pl.BlockSpec((D2, NC), lambda i: (0, 0)),
                pl.BlockSpec((1, NC), lambda i: (0, 0)),
            ],
            out_specs=pl.BlockSpec((B, NC), lambda i: (0, 0)),
        ),
        compiler_params=pltpu.CompilerParams(dimension_semantics=("arbitrary",)),
        cost_estimate=pl.CostEstimate(flops=int(flops), transcendentals=0,
                                      bytes_accessed=int(bytes_accessed)),
    )(x_flat, w1, b1r, w2, b2r, w3, b3r)


# ------------------------------ full forward ---------------------------------

def vgg_forward_pallas(x_nchw, params):
    (wc1, bc1, wc2, bc2, wl1, bl1, wl2, bl2, wl3, bl3) = params
    # Single NCHW -> channels-last transpose at the boundary; the whole pipeline
    # then stays channels-last (lane-dense) with no per-layer transposes.
    x = jnp.transpose(x_nchw, (0, 2, 3, 1))

    # features: VGG-style conv3x3+ReLU / maxpool stack
    x = conv3x3_relu_pallas(x, wc1, bc1)
    x = maxpool2x2_pallas(x)
    x = conv3x3_relu_pallas(x, wc2, bc2)
    x = maxpool2x2_pallas(x)

    # avgpool + flatten (torch.flatten(x, 1) on NCHW is channel-major)
    x = adaptive_avgpool7_pallas(x)
    B = x.shape[0]
    x = jnp.transpose(x, (0, 3, 1, 2)).reshape(B, -1)

    # classifier: Linear-ReLU-Linear-ReLU-Linear, fused in one kernel
    return classifier_pallas(x, wl1, bl1, wl2, bl2, wl3, bl3)


# ------------------------------ pure-JAX reference ---------------------------

def vgg_ref(x_nchw, params):
    (wc1, bc1, wc2, bc2, wl1, bl1, wl2, bl2, wl3, bl3) = params
    hp = lax.Precision.HIGHEST

    def conv_relu(x, w, b):
        y = lax.conv_general_dilated(
            x, w, window_strides=(1, 1), padding=((1, 1), (1, 1)),
            dimension_numbers=("NCHW", "OIHW", "NCHW"), precision=hp)
        return jnp.maximum(y + b[None, :, None, None], 0.0)

    def maxpool2(x):
        B, C, H, W = x.shape
        return x.reshape(B, C, H // 2, 2, W // 2, 2).max(axis=(3, 5))

    x = conv_relu(x_nchw, wc1, bc1)
    x = maxpool2(x)
    x = conv_relu(x, wc2, bc2)
    x = maxpool2(x)
    B, C, H, W = x.shape
    x = x.reshape(B, C, H // 2, 2, W // 2, 2).mean(axis=(3, 5))   # adaptive 14->7
    x = x.reshape(B, -1)
    x = jnp.maximum(jnp.dot(x, wl1, precision=hp) + bl1, 0.0)
    x = jnp.maximum(jnp.dot(x, wl2, precision=hp) + bl2, 0.0)
    return jnp.dot(x, wl3, precision=hp) + bl3


if __name__ == "__main__":
    key = jax.random.PRNGKey(0)
    ks = jax.random.split(key, 11)

    # Small shapes consistent with VGG: two conv blocks, avgpool to 7x7,
    # flatten, 3-layer classifier.
    B, Cin, S = 2, 3, 56
    C1, C2 = 8, 16
    D1, D2, NC = 64, 64, 10
    F = C2 * 7 * 7

    x = jax.random.normal(ks[0], (B, Cin, S, S), dtype=jnp.float32)

    # Conv weights in PyTorch OIHW layout; Linear weights stored as (in, out).
    wc1 = 0.2 * jax.random.normal(ks[1], (C1, Cin, 3, 3), jnp.float32)
    bc1 = 0.1 * jax.random.normal(ks[2], (C1,), jnp.float32)
    wc2 = 0.1 * jax.random.normal(ks[3], (C2, C1, 3, 3), jnp.float32)
    bc2 = 0.1 * jax.random.normal(ks[4], (C2,), jnp.float32)
    wl1 = 0.05 * jax.random.normal(ks[5], (F, D1), jnp.float32)
    bl1 = 0.1 * jax.random.normal(ks[6], (D1,), jnp.float32)
    wl2 = 0.1 * jax.random.normal(ks[7], (D1, D2), jnp.float32)
    bl2 = 0.1 * jax.random.normal(ks[8], (D2,), jnp.float32)
    wl3 = 0.1 * jax.random.normal(ks[9], (D2, NC), jnp.float32)
    bl3 = 0.1 * jax.random.normal(ks[10], (NC,), jnp.float32)

    params = (wc1, bc1, wc2, bc2, wl1, bl1, wl2, bl2, wl3, bl3)

    fwd = jax.jit(vgg_forward_pallas)
    out = jax.block_until_ready(fwd(x, params))

    ref = vgg_ref(x, params)
    np.testing.assert_allclose(np.asarray(out), np.asarray(ref),
                               rtol=2e-3, atol=2e-3)

    print("KERNEL_OK")
</pallas_src>

<mosaic_0001>
module attributes {stable_mosaic.version = 11 : i64} {
  func.func @_conv3x3_bias_relu_kernel(%arg0: i32, %arg1: memref<1x58x174xf32, #tpu.memory_space<vmem>>, %arg2: memref<3x174x448xf32, #tpu.memory_space<vmem>>, %arg3: memref<1x448xf32, #tpu.memory_space<vmem>>, %arg4: memref<1x56x448xf32, #tpu.memory_space<vmem>>) attributes {dimension_semantics = [#tpu.dimension_semantics<parallel>], iteration_bounds = array<i64: 2>, scalar_prefetch = 0 : i64, scratch_operands = 0 : i64, tpu.core_type = #tpu.core_type<tc>, window_params = [{transform_indices = @transform_0, window_bounds = array<i64: 1, 58, 174>}, {pipeline_mode = #tpu.pipeline_mode<synchronous>, transform_indices = @transform_1, window_bounds = array<i64: 3, 174, 448>}, {pipeline_mode = #tpu.pipeline_mode<synchronous>, transform_indices = @transform_2, window_bounds = array<i64: 1, 448>}, {transform_indices = @transform_3, window_bounds = array<i64: 1, 56, 448>}]} {
    %c0 = arith.constant 0 : index
    %c0_0 = arith.constant 0 : index
    %c0_1 = arith.constant 0 : index
    %0 = vector.load %arg1[%c0, %c0_0, %c0_1] : memref<1x58x174xf32, #tpu.memory_space<vmem>>, vector<1x58x174xf32>
    %1 = vector.shape_cast %0 : vector<1x58x174xf32> to vector<58x174xf32>
    %2 = vector.extract_strided_slice %1 {offsets = [0, 0], sizes = [56, 174], strides = [1, 1]} : vector<58x174xf32> to vector<56x174xf32>
    %c0_2 = arith.constant 0 : index
    %c0_3 = arith.constant 0 : index
    %c0_4 = arith.constant 0 : index
    %3 = vector.load %arg2[%c0_2, %c0_3, %c0_4] : memref<3x174x448xf32, #tpu.memory_space<vmem>>, vector<1x174x448xf32>
    %4 = vector.shape_cast %3 : vector<1x174x448xf32> to vector<174x448xf32>
    %cst = arith.constant dense<0.000000e+00> : vector<56x448xf32>
    %5 = tpu.matmul %2, %4, %cst {dimension_numbers = #tpu.dot_dimension_numbers<[1], [0], [0], [1], [0, 0, 1, 1], [], []>} : vector<56x174xf32>, vector<174x448xf32>, vector<56x448xf32> -> vector<56x448xf32>
    %6 = vector.extract_strided_slice %1 {offsets = [1, 0], sizes = [56, 174], strides = [1, 1]} : vector<58x174xf32> to vector<56x174xf32>
    %c1 = arith.constant 1 : index
    %c0_5 = arith.constant 0 : index
    %c0_6 = arith.constant 0 : index
    %7 = vector.load %arg2[%c1, %c0_5, %c0_6] : memref<3x174x448xf32, #tpu.memory_space<vmem>>, vector<1x174x448xf32>
    %8 = vector.shape_cast %7 : vector<1x174x448xf32> to vector<174x448xf32>
    %cst_7 = arith.constant dense<0.000000e+00> : vector<56x448xf32>
    %9 = tpu.matmul %6, %8, %cst_7 {dimension_numbers = #tpu.dot_dimension_numbers<[1], [0], [0], [1], [0, 0, 1, 1], [], []>} : vector<56x174xf32>, vector<174x448xf32>, vector<56x448xf32> -> vector<56x448xf32>
    %10 = arith.addf %5, %9 : vector<56x448xf32>
    %11 = vector.extract_strided_slice %1 {offsets = [2, 0], sizes = [56, 174], strides = [1, 1]} : vector<58x174xf32> to vector<56x174xf32>
    %c2 = arith.constant 2 : index
    %c0_8 = arith.constant 0 : index
    %c0_9 = arith.constant 0 : index
    %12 = vector.load %arg2[%c2, %c0_8, %c0_9] : memref<3x174x448xf32, #tpu.memory_space<vmem>>, vector<1x174x448xf32>
    %13 = vector.shape_cast %12 : vector<1x174x448xf32> to vector<174x448xf32>
    %cst_10 = arith.constant dense<0.000000e+00> : vector<56x448xf32>
    %14 = tpu.matmul %11, %13, %cst_10 {dimension_numbers = #tpu.dot_dimension_numbers<[1], [0], [0], [1], [0, 0, 1, 1], [], []>} : vector<56x174xf32>, vector<174x448xf32>, vector<56x448xf32> -> vector<56x448xf32>
    %15 = arith.addf %10, %14 : vector<56x448xf32>
    %c0_11 = arith.constant 0 : index
    %c0_12 = arith.constant 0 : index
    %16 = vector.load %arg3[%c0_11, %c0_12] : memref<1x448xf32, #tpu.memory_space<vmem>>, vector<1x448xf32>
    %17 = vector.broadcast %16 : vector<1x448xf32> to vector<56x448xf32>
    %18 = arith.addf %15, %17 : vector<56x448xf32>
    %cst_13 = arith.constant 0.000000e+00 : f32
    %19 = vector.broadcast %cst_13 : f32 to vector<56x448xf32>
    %20 = arith.maximumf %18, %19 : vector<56x448xf32>
    %c0_14 = arith.constant 0 : index
    %c0_15 = arith.constant 0 : index
    %c0_16 = arith.constant 0 : index
    %21 = vector.load %arg4[%c0_14, %c0_15, %c0_16] : memref<1x56x448xf32, #tpu.memory_space<vmem>>, vector<1x56x448xf32>
    %22 = vector.shape_cast %21 : vector<1x56x448xf32> to vector<56x448xf32>
    %23 = vector.shape_cast %20 : vector<56x448xf32> to vector<1x56x448xf32>
    tpu.vector_store %arg4[%c0_14, %c0_15, %c0_16], %23 {strides = array<i32>} : memref<1x56x448xf32, #tpu.memory_space<vmem>>, vector<1x56x448xf32>,
    return
  }
  func.func @transform_0(%arg0: i32) -> (i32, i32, i32) {
    %c0_i32 = arith.constant 0 : i32
    %c0_i32_0 = arith.constant 0 : i32
    %c0_i32_1 = arith.constant 0 : i32
    return %arg0, %c0_i32, %c0_i32_0 : i32, i32, i32
  }
  func.func @transform_1(%arg0: i32) -> (i32, i32, i32) {
    %c0_i32 = arith.constant 0 : i32
    %c0_i32_0 = arith.constant 0 : i32
    %c0_i32_1 = arith.constant 0 : i32
    %c0_i32_2 = arith.constant 0 : i32
    return %c0_i32, %c0_i32_0, %c0_i32_1 : i32, i32, i32
  }
  func.func @transform_2(%arg0: i32) -> (i32, i32) {
    %c0_i32 = arith.constant 0 : i32
    %c0_i32_0 = arith.constant 0 : i32
    %c0_i32_1 = arith.constant 0 : i32
    return %c0_i32, %c0_i32_0 : i32, i32
  }
  func.func @transform_3(%arg0: i32) -> (i32, i32, i32) {
    %c0_i32 = arith.constant 0 : i32
    %c0_i32_0 = arith.constant 0 : i32
    %c0_i32_1 = arith.constant 0 : i32
    return %arg0, %c0_i32, %c0_i32_0 : i32, i32, i32
  }
}

module attributes {stable_mosaic.version = 11 : i64} {
  func.func @kernel(%arg0: i32, %arg1: i32, %arg2: memref<1x2x28x16xf32, #tpu.memory_space<vmem>>, %arg3: memref<1x1x28x8xf32, #tpu.memory_space<vmem>>) attributes {dimension_semantics = [#tpu.dimension_semantics<parallel>, #tpu.dimension_semantics<parallel>], iteration_bounds = array<i64: 2, 28>, scalar_prefetch = 0 : i64, scratch_operands = 0 : i64, tpu.core_type = #tpu.core_type<tc>, window_params = [{transform_indices = @transform_0, window_bounds = array<i64: 1, 2, 28, 16>}, {transform_indices = @transform_1, window_bounds = array<i64: 1, 1, 28, 8>}]} {
    %c0 = arith.constant 0 : index
    %c0_0 = arith.constant 0 : index
    %c0_1 = arith.constant 0 : index
    %c0_2 = arith.constant 0 : index
    %0 = vector.load %arg2[%c0, %c0_0, %c0_1, %c0_2] : memref<1x2x28x16xf32, #tpu.memory_space<vmem>>, vector<1x1x28x16xf32>
    %1 = vector.shape_cast %0 : vector<1x1x28x16xf32> to vector<28x16xf32>
    %c0_3 = arith.constant 0 : index
    %c1 = arith.constant 1 : index
    %c0_4 = arith.constant 0 : index
    %c0_5 = arith.constant 0 : index
    %2 = vector.load %arg2[%c0_3, %c1, %c0_4, %c0_5] : memref<1x2x28x16xf32, #tpu.memory_space<vmem>>, vector<1x1x28x16xf32>
    %3 = vector.shape_cast %2 : vector<1x1x28x16xf32> to vector<28x16xf32>
    %4 = arith.maximumf %1, %3 : vector<28x16xf32>
    %5 = vector.extract_strided_slice %4 {offsets = [0, 0], sizes = [28, 8], strides = [1, 1]} : vector<28x16xf32> to vector<28x8xf32>
    %6 = vector.extract_strided_slice %4 {offsets = [0, 8], sizes = [28, 8], strides = [1, 1]} : vector<28x16xf32> to vector<28x8xf32>
    %7 = arith.maximumf %5, %6 : vector<28x8xf32>
    %c0_6 = arith.constant 0 : index
    %c0_7 = arith.constant 0 : index
    %c0_8 = arith.constant 0 : index
    %c0_9 = arith.constant 0 : index
    %8 = vector.load %arg3[%c0_6, %c0_7, %c0_8, %c0_9] : memref<1x1x28x8xf32, #tpu.memory_space<vmem>>, vector<1x1x28x8xf32>
    %9 = vector.shape_cast %8 : vector<1x1x28x8xf32> to vector<28x8xf32>
    %10 = vector.shape_cast %7 : vector<28x8xf32> to vector<1x1x28x8xf32>
    tpu.vector_store %arg3[%c0_6, %c0_7, %c0_8, %c0_9], %10 {strides = array<i32>} : memref<1x1x28x8xf32, #tpu.memory_space<vmem>>, vector<1x1x28x8xf32>,
    return
  }
  func.func @transform_0(%arg0: i32, %arg1: i32) -> (i32, i32, i32, i32) {
    %c0_i32 = arith.constant 0 : i32
    %c0_i32_0 = arith.constant 0 : i32
    %c0_i32_1 = arith.constant 0 : i32
    return %arg0, %arg1, %c0_i32, %c0_i32_0 : i32, i32, i32, i32
  }
  func.func @transform_1(%arg0: i32, %arg1: i32) -> (i32, i32, i32, i32) {
    %c0_i32 = arith.constant 0 : i32
    %c0_i32_0 = arith.constant 0 : i32
    %c0_i32_1 = arith.constant 0 : i32
    return %arg0, %arg1, %c0_i32, %c0_i32_0 : i32, i32, i32, i32
  }
}

module attributes {stable_mosaic.version = 11 : i64} {
  func.func @_conv3x3_bias_relu_kernel(%arg0: i32, %arg1: memref<1x30x240xf32, #tpu.memory_space<vmem>>, %arg2: memref<3x240x448xf32, #tpu.memory_space<vmem>>, %arg3: memref<1x448xf32, #tpu.memory_space<vmem>>, %arg4: memref<1x28x448xf32, #tpu.memory_space<vmem>>) attributes {dimension_semantics = [#tpu.dimension_semantics<parallel>], iteration_bounds = array<i64: 2>, scalar_prefetch = 0 : i64, scratch_operands = 0 : i64, tpu.core_type = #tpu.core_type<tc>, window_params = [{transform_indices = @transform_0, window_bounds = array<i64: 1, 30, 240>}, {pipeline_mode = #tpu.pipeline_mode<synchronous>, transform_indices = @transform_1, window_bounds = array<i64: 3, 240, 448>}, {pipeline_mode = #tpu.pipeline_mode<synchronous>, transform_indices = @transform_2, window_bounds = array<i64: 1, 448>}, {transform_indices = @transform_3, window_bounds = array<i64: 1, 28, 448>}]} {
    %c0 = arith.constant 0 : index
    %c0_0 = arith.constant 0 : index
    %c0_1 = arith.constant 0 : index
    %0 = vector.load %arg1[%c0, %c0_0, %c0_1] : memref<1x30x240xf32, #tpu.memory_space<vmem>>, vector<1x30x240xf32>
    %1 = vector.shape_cast %0 : vector<1x30x240xf32> to vector<30x240xf32>
    %2 = vector.extract_strided_slice %1 {offsets = [0, 0], sizes = [28, 240], strides = [1, 1]} : vector<30x240xf32> to vector<28x240xf32>
    %c0_2 = arith.constant 0 : index
    %c0_3 = arith.constant 0 : index
    %c0_4 = arith.constant 0 : index
    %3 = vector.load %arg2[%c0_2, %c0_3, %c0_4] : memref<3x240x448xf32, #tpu.memory_space<vmem>>, vector<1x240x448xf32>
    %4 = vector.shape_cast %3 : vector<1x240x448xf32> to vector<240x448xf32>
    %cst = arith.constant dense<0.000000e+00> : vector<28x448xf32>
    %5 = tpu.matmul %2, %4, %cst {dimension_numbers = #tpu.dot_dimension_numbers<[1], [0], [0], [1], [0, 0, 1, 1], [], []>} : vector<28x240xf32>, vector<240x448xf32>, vector<28x448xf32> -> vector<28x448xf32>
    %6 = vector.extract_strided_slice %1 {offsets = [1, 0], sizes = [28, 240], strides = [1, 1]} : vector<30x240xf32> to vector<28x240xf32>
    %c1 = arith.constant 1 : index
    %c0_5 = arith.constant 0 : index
    %c0_6 = arith.constant 0 : index
    %7 = vector.load %arg2[%c1, %c0_5, %c0_6] : memref<3x240x448xf32, #tpu.memory_space<vmem>>, vector<1x240x448xf32>
    %8 = vector.shape_cast %7 : vector<1x240x448xf32> to vector<240x448xf32>
    %cst_7 = arith.constant dense<0.000000e+00> : vector<28x448xf32>
    %9 = tpu.matmul %6, %8, %cst_7 {dimension_numbers = #tpu.dot_dimension_numbers<[1], [0], [0], [1], [0, 0, 1, 1], [], []>} : vector<28x240xf32>, vector<240x448xf32>, vector<28x448xf32> -> vector<28x448xf32>
    %10 = arith.addf %5, %9 : vector<28x448xf32>
    %11 = vector.extract_strided_slice %1 {offsets = [2, 0], sizes = [28, 240], strides = [1, 1]} : vector<30x240xf32> to vector<28x240xf32>
    %c2 = arith.constant 2 : index
    %c0_8 = arith.constant 0 : index
    %c0_9 = arith.constant 0 : index
    %12 = vector.load %arg2[%c2, %c0_8, %c0_9] : memref<3x240x448xf32, #tpu.memory_space<vmem>>, vector<1x240x448xf32>
    %13 = vector.shape_cast %12 : vector<1x240x448xf32> to vector<240x448xf32>
    %cst_10 = arith.constant dense<0.000000e+00> : vector<28x448xf32>
    %14 = tpu.matmul %11, %13, %cst_10 {dimension_numbers = #tpu.dot_dimension_numbers<[1], [0], [0], [1], [0, 0, 1, 1], [], []>} : vector<28x240xf32>, vector<240x448xf32>, vector<28x448xf32> -> vector<28x448xf32>
    %15 = arith.addf %10, %14 : vector<28x448xf32>
    %c0_11 = arith.constant 0 : index
    %c0_12 = arith.constant 0 : index
    %16 = vector.load %arg3[%c0_11, %c0_12] : memref<1x448xf32, #tpu.memory_space<vmem>>, vector<1x448xf32>
    %17 = vector.broadcast %16 : vector<1x448xf32> to vector<28x448xf32>
    %18 = arith.addf %15, %17 : vector<28x448xf32>
    %cst_13 = arith.constant 0.000000e+00 : f32
    %19 = vector.broadcast %cst_13 : f32 to vector<28x448xf32>
    %20 = arith.maximumf %18, %19 : vector<28x448xf32>
    %c0_14 = arith.constant 0 : index
    %c0_15 = arith.constant 0 : index
    %c0_16 = arith.constant 0 : index
    %21 = vector.load %arg4[%c0_14, %c0_15, %c0_16] : memref<1x28x448xf32, #tpu.memory_space<vmem>>, vector<1x28x448xf32>
    %22 = vector.shape_cast %21 : vector<1x28x448xf32> to vector<28x448xf32>
    %23 = vector.shape_cast %20 : vector<28x448xf32> to vector<1x28x448xf32>
    tpu.vector_store %arg4[%c0_14, %c0_15, %c0_16], %23 {strides = array<i32>} : memref<1x28x448xf32, #tpu.memory_space<vmem>>, vector<1x28x448xf32>,
    return
  }
  func.func @transform_0(%arg0: i32) -> (i32, i32, i32) {
    %c0_i32 = arith.constant 0 : i32
    %c0_i32_0 = arith.constant 0 : i32
    %c0_i32_1 = arith.constant 0 : i32
    return %arg0, %c0_i32, %c0_i32_0 : i32, i32, i32
  }
  func.func @transform_1(%arg0: i32) -> (i32, i32, i32) {
    %c0_i32 = arith.constant 0 : i32
    %c0_i32_0 = arith.constant 0 : i32
    %c0_i32_1 = arith.constant 0 : i32
    %c0_i32_2 = arith.constant 0 : i32
    return %c0_i32, %c0_i32_0, %c0_i32_1 : i32, i32, i32
  }
  func.func @transform_2(%arg0: i32) -> (i32, i32) {
    %c0_i32 = arith.constant 0 : i32
    %c0_i32_0 = arith.constant 0 : i32
    %c0_i32_1 = arith.constant 0 : i32
    return %c0_i32, %c0_i32_0 : i32, i32
  }
  func.func @transform_3(%arg0: i32) -> (i32, i32, i32) {
    %c0_i32 = arith.constant 0 : i32
    %c0_i32_0 = arith.constant 0 : i32
    %c0_i32_1 = arith.constant 0 : i32
    return %arg0, %c0_i32, %c0_i32_0 : i32, i32, i32
  }
}

module attributes {stable_mosaic.version = 11 : i64} {
  func.func @kernel(%arg0: i32, %arg1: i32, %arg2: memref<1x2x14x32xf32, #tpu.memory_space<vmem>>, %arg3: memref<1x1x14x16xf32, #tpu.memory_space<vmem>>) attributes {dimension_semantics = [#tpu.dimension_semantics<parallel>, #tpu.dimension_semantics<parallel>], iteration_bounds = array<i64: 2, 14>, scalar_prefetch = 0 : i64, scratch_operands = 0 : i64, tpu.core_type = #tpu.core_type<tc>, window_params = [{transform_indices = @transform_0, window_bounds = array<i64: 1, 2, 14, 32>}, {transform_indices = @transform_1, window_bounds = array<i64: 1, 1, 14, 16>}]} {
    %c0 = arith.constant 0 : index
    %c0_0 = arith.constant 0 : index
    %c0_1 = arith.constant 0 : index
    %c0_2 = arith.constant 0 : index
    %0 = vector.load %arg2[%c0, %c0_0, %c0_1, %c0_2] : memref<1x2x14x32xf32, #tpu.memory_space<vmem>>, vector<1x1x14x32xf32>
    %1 = vector.shape_cast %0 : vector<1x1x14x32xf32> to vector<14x32xf32>
    %c0_3 = arith.constant 0 : index
    %c1 = arith.constant 1 : index
    %c0_4 = arith.constant 0 : index
    %c0_5 = arith.constant 0 : index
    %2 = vector.load %arg2[%c0_3, %c1, %c0_4, %c0_5] : memref<1x2x14x32xf32, #tpu.memory_space<vmem>>, vector<1x1x14x32xf32>
    %3 = vector.shape_cast %2 : vector<1x1x14x32xf32> to vector<14x32xf32>
    %4 = arith.maximumf %1, %3 : vector<14x32xf32>
    %5 = vector.extract_strided_slice %4 {offsets = [0, 0], sizes = [14, 16], strides = [1, 1]} : vector<14x32xf32> to vector<14x16xf32>
    %6 = vector.extract_strided_slice %4 {offsets = [0, 16], sizes = [14, 16], strides = [1, 1]} : vector<14x32xf32> to vector<14x16xf32>
    %7 = arith.maximumf %5, %6 : vector<14x16xf32>
    %c0_6 = arith.constant 0 : index
    %c0_7 = arith.constant 0 : index
    %c0_8 = arith.constant 0 : index
    %c0_9 = arith.constant 0 : index
    %8 = vector.load %arg3[%c0_6, %c0_7, %c0_8, %c0_9] : memref<1x1x14x16xf32, #tpu.memory_space<vmem>>, vector<1x1x14x16xf32>
    %9 = vector.shape_cast %8 : vector<1x1x14x16xf32> to vector<14x16xf32>
    %10 = vector.shape_cast %7 : vector<14x16xf32> to vector<1x1x14x16xf32>
    tpu.vector_store %arg3[%c0_6, %c0_7, %c0_8, %c0_9], %10 {strides = array<i32>} : memref<1x1x14x16xf32, #tpu.memory_space<vmem>>, vector<1x1x14x16xf32>,
    return
  }
  func.func @transform_0(%arg0: i32, %arg1: i32) -> (i32, i32, i32, i32) {
    %c0_i32 = arith.constant 0 : i32
    %c0_i32_0 = arith.constant 0 : i32
    %c0_i32_1 = arith.constant 0 : i32
    return %arg0, %arg1, %c0_i32, %c0_i32_0 : i32, i32, i32, i32
  }
  func.func @transform_1(%arg0: i32, %arg1: i32) -> (i32, i32, i32, i32) {
    %c0_i32 = arith.constant 0 : i32
    %c0_i32_0 = arith.constant 0 : i32
    %c0_i32_1 = arith.constant 0 : i32
    return %arg0, %arg1, %c0_i32, %c0_i32_0 : i32, i32, i32, i32
  }
}

module attributes {stable_mosaic.version = 11 : i64} {
  func.func @kernel(%arg0: i32, %arg1: i32, %arg2: memref<1x2x7x32xf32, #tpu.memory_space<vmem>>, %arg3: memref<1x1x7x16xf32, #tpu.memory_space<vmem>>) attributes {dimension_semantics = [#tpu.dimension_semantics<parallel>, #tpu.dimension_semantics<parallel>], iteration_bounds = array<i64: 2, 7>, scalar_prefetch = 0 : i64, scratch_operands = 0 : i64, tpu.core_type = #tpu.core_type<tc>, window_params = [{transform_indices = @transform_0, window_bounds = array<i64: 1, 2, 7, 32>}, {transform_indices = @transform_1, window_bounds = array<i64: 1, 1, 7, 16>}]} {
    %c0 = arith.constant 0 : index
    %c0_0 = arith.constant 0 : index
    %c0_1 = arith.constant 0 : index
    %c0_2 = arith.constant 0 : index
    %0 = vector.load %arg2[%c0, %c0_0, %c0_1, %c0_2] : memref<1x2x7x32xf32, #tpu.memory_space<vmem>>, vector<1x1x7x32xf32>
    %1 = vector.shape_cast %0 : vector<1x1x7x32xf32> to vector<7x32xf32>
    %c0_3 = arith.constant 0 : index
    %c1 = arith.constant 1 : index
    %c0_4 = arith.constant 0 : index
    %c0_5 = arith.constant 0 : index
    %2 = vector.load %arg2[%c0_3, %c1, %c0_4, %c0_5] : memref<1x2x7x32xf32, #tpu.memory_space<vmem>>, vector<1x1x7x32xf32>
    %3 = vector.shape_cast %2 : vector<1x1x7x32xf32> to vector<7x32xf32>
    %4 = arith.addf %1, %3 : vector<7x32xf32>
    %5 = vector.extract_strided_slice %4 {offsets = [0, 0], sizes = [7, 16], strides = [1, 1]} : vector<7x32xf32> to vector<7x16xf32>
    %6 = vector.extract_strided_slice %4 {offsets = [0, 16], sizes = [7, 16], strides = [1, 1]} : vector<7x32xf32> to vector<7x16xf32>
    %7 = arith.addf %5, %6 : vector<7x16xf32>
    %cst = arith.constant 2.500000e-01 : f32
    %8 = vector.broadcast %cst : f32 to vector<7x16xf32>
    %9 = arith.mulf %7, %8 : vector<7x16xf32>
    %c0_6 = arith.constant 0 : index
    %c0_7 = arith.constant 0 : index
    %c0_8 = arith.constant 0 : index
    %c0_9 = arith.constant 0 : index
    %10 = vector.load %arg3[%c0_6, %c0_7, %c0_8, %c0_9] : memref<1x1x7x16xf32, #tpu.memory_space<vmem>>, vector<1x1x7x16xf32>
    %11 = vector.shape_cast %10 : vector<1x1x7x16xf32> to vector<7x16xf32>
    %12 = vector.shape_cast %9 : vector<7x16xf32> to vector<1x1x7x16xf32>
    tpu.vector_store %arg3[%c0_6, %c0_7, %c0_8, %c0_9], %12 {strides = array<i32>} : memref<1x1x7x16xf32, #tpu.memory_space<vmem>>, vector<1x1x7x16xf32>,
    return
  }
  func.func @transform_0(%arg0: i32, %arg1: i32) -> (i32, i32, i32, i32) {
    %c0_i32 = arith.constant 0 : i32
    %c0_i32_0 = arith.constant 0 : i32
    %c0_i32_1 = arith.constant 0 : i32
    return %arg0, %arg1, %c0_i32, %c0_i32_0 : i32, i32, i32, i32
  }
  func.func @transform_1(%arg0: i32, %arg1: i32) -> (i32, i32, i32, i32) {
    %c0_i32 = arith.constant 0 : i32
    %c0_i32_0 = arith.constant 0 : i32
    %c0_i32_1 = arith.constant 0 : i32
    return %arg0, %arg1, %c0_i32, %c0_i32_0 : i32, i32, i32, i32
  }
}

module attributes {stable_mosaic.version = 11 : i64} {
  func.func @_classifier_kernel(%arg0: i32, %arg1: memref<2x784xf32, #tpu.memory_space<vmem>>, %arg2: memref<784x64xf32, #tpu.memory_space<vmem>>, %arg3: memref<1x64xf32, #tpu.memory_space<vmem>>, %arg4: memref<64x64xf32, #tpu.memory_space<vmem>>, %arg5: memref<1x64xf32, #tpu.memory_space<vmem>>, %arg6: memref<64x10xf32, #tpu.memory_space<vmem>>, %arg7: memref<1x10xf32, #tpu.memory_space<vmem>>, %arg8: memref<2x10xf32, #tpu.memory_space<vmem>>) attributes {dimension_semantics = [#tpu.dimension_semantics<arbitrary>], iteration_bounds = array<i64: 1>, scalar_prefetch = 0 : i64, scratch_operands = 0 : i64, tpu.core_type = #tpu.core_type<tc>, window_params = [{pipeline_mode = #tpu.pipeline_mode<synchronous>, transform_indices = @transform_0, window_bounds = array<i64: 2, 784>}, {pipeline_mode = #tpu.pipeline_mode<synchronous>, transform_indices = @transform_1, window_bounds = array<i64: 784, 64>}, {pipeline_mode = #tpu.pipeline_mode<synchronous>, transform_indices = @transform_2, window_bounds = array<i64: 1, 64>}, {pipeline_mode = #tpu.pipeline_mode<synchronous>, transform_indices = @transform_3, window_bounds = array<i64: 64, 64>}, {pipeline_mode = #tpu.pipeline_mode<synchronous>, transform_indices = @transform_4, window_bounds = array<i64: 1, 64>}, {pipeline_mode = #tpu.pipeline_mode<synchronous>, transform_indices = @transform_5, window_bounds = array<i64: 64, 10>}, {pipeline_mode = #tpu.pipeline_mode<synchronous>, transform_indices = @transform_6, window_bounds = array<i64: 1, 10>}, {pipeline_mode = #tpu.pipeline_mode<synchronous>, transform_indices = @transform_7, window_bounds = array<i64: 2, 10>}]} {
    %c0 = arith.constant 0 : index
    %c0_0 = arith.constant 0 : index
    %0 = vector.load %arg1[%c0, %c0_0] : memref<2x784xf32, #tpu.memory_space<vmem>>, vector<2x784xf32>
    %c0_1 = arith.constant 0 : index
    %c0_2 = arith.constant 0 : index
    %1 = vector.load %arg2[%c0_1, %c0_2] : memref<784x64xf32, #tpu.memory_space<vmem>>, vector<784x64xf32>
    %cst = arith.constant dense<0.000000e+00> : vector<2x64xf32>
    %2 = tpu.matmul %0, %1, %cst {dimension_numbers = #tpu.dot_dimension_numbers<[1], [0], [0], [1], [0, 0, 1, 1], [], []>} : vector<2x784xf32>, vector<784x64xf32>, vector<2x64xf32> -> vector<2x64xf32>
    %c0_3 = arith.constant 0 : index
    %c0_4 = arith.constant 0 : index
    %3 = vector.load %arg3[%c0_3, %c0_4] : memref<1x64xf32, #tpu.memory_space<vmem>>, vector<1x64xf32>
    %4 = vector.broadcast %3 : vector<1x64xf32> to vector<2x64xf32>
    %5 = arith.addf %2, %4 : vector<2x64xf32>
    %cst_5 = arith.constant 0.000000e+00 : f32
    %6 = vector.broadcast %cst_5 : f32 to vector<2x64xf32>
    %7 = arith.maximumf %5, %6 : vector<2x64xf32>
    %c0_6 = arith.constant 0 : index
    %c0_7 = arith.constant 0 : index
    %8 = vector.load %arg4[%c0_6, %c0_7] : memref<64x64xf32, #tpu.memory_space<vmem>>, vector<64x64xf32>
    %cst_8 = arith.constant dense<0.000000e+00> : vector<2x64xf32>
    %9 = tpu.matmul %7, %8, %cst_8 {dimension_numbers = #tpu.dot_dimension_numbers<[1], [0], [0], [1], [0, 0, 1, 1], [], []>} : vector<2x64xf32>, vector<64x64xf32>, vector<2x64xf32> -> vector<2x64xf32>
    %c0_9 = arith.constant 0 : index
    %c0_10 = arith.constant 0 : index
    %10 = vector.load %arg5[%c0_9, %c0_10] : memref<1x64xf32, #tpu.memory_space<vmem>>, vector<1x64xf32>
    %11 = vector.broadcast %10 : vector<1x64xf32> to vector<2x64xf32>
    %12 = arith.addf %9, %11 : vector<2x64xf32>
    %cst_11 = arith.constant 0.000000e+00 : f32
    %13 = vector.broadcast %cst_11 : f32 to vector<2x64xf32>
    %14 = arith.maximumf %12, %13 : vector<2x64xf32>
    %c0_12 = arith.constant 0 : index
    %c0_13 = arith.constant 0 : index
    %15 = vector.load %arg6[%c0_12, %c0_13] : memref<64x10xf32, #tpu.memory_space<vmem>>, vector<64x10xf32>
    %cst_14 = arith.constant dense<0.000000e+00> : vector<2x10xf32>
    %16 = tpu.matmul %14, %15, %cst_14 {dimension_numbers = #tpu.dot_dimension_numbers<[1], [0], [0], [1], [0, 0, 1, 1], [], []>} : vector<2x64xf32>, vector<64x10xf32>, vector<2x10xf32> -> vector<2x10xf32>
    %c0_15 = arith.constant 0 : index
    %c0_16 = arith.constant 0 : index
    %17 = vector.load %arg7[%c0_15, %c0_16] : memref<1x10xf32, #tpu.memory_space<vmem>>, vector<1x10xf32>
    %18 = vector.broadcast %17 : vector<1x10xf32> to vector<2x10xf32>
    %19 = arith.addf %16, %18 : vector<2x10xf32>
    %c0_17 = arith.constant 0 : index
    %c0_18 = arith.constant 0 : index
    %20 = vector.load %arg8[%c0_17, %c0_18] : memref<2x10xf32, #tpu.memory_space<vmem>>, vector<2x10xf32>
    tpu.vector_store %arg8[%c0_17, %c0_18], %19 {strides = array<i32>} : memref<2x10xf32, #tpu.memory_space<vmem>>, vector<2x10xf32>,
    return
  }
  func.func @transform_0(%arg0: i32) -> (i32, i32) {
    %c0_i32 = arith.constant 0 : i32
    %c0_i32_0 = arith.constant 0 : i32
    %c0_i32_1 = arith.constant 0 : i32
    return %c0_i32, %c0_i32_0 : i32, i32
  }
  func.func @transform_1(%arg0: i32) -> (i32, i32) {
    %c0_i32 = arith.constant 0 : i32
    %c0_i32_0 = arith.constant 0 : i32
    %c0_i32_1 = arith.constant 0 : i32
    return %c0_i32, %c0_i32_0 : i32, i32
  }
  func.func @transform_2(%arg0: i32) -> (i32, i32) {
    %c0_i32 = arith.constant 0 : i32
    %c0_i32_0 = arith.constant 0 : i32
    %c0_i32_1 = arith.constant 0 : i32
    return %c0_i32, %c0_i32_0 : i32, i32
  }
  func.func @transform_3(%arg0: i32) -> (i32, i32) {
    %c0_i32 = arith.constant 0 : i32
    %c0_i32_0 = arith.constant 0 : i32
    %c0_i32_1 = arith.constant 0 : i32
    return %c0_i32, %c0_i32_0 : i32, i32
  }
  func.func @transform_4(%arg0: i32) -> (i32, i32) {
    %c0_i32 = arith.constant 0 : i32
    %c0_i32_0 = arith.constant 0 : i32
    %c0_i32_1 = arith.constant 0 : i32
    return %c0_i32, %c0_i32_0 : i32, i32
  }
  func.func @transform_5(%arg0: i32) -> (i32, i32) {
    %c0_i32 = arith.constant 0 : i32
    %c0_i32_0 = arith.constant 0 : i32
    %c0_i32_1 = arith.constant 0 : i32
    return %c0_i32, %c0_i32_0 : i32, i32
  }
  func.func @transform_6(%arg0: i32) -> (i32, i32) {
    %c0_i32 = arith.constant 0 : i32
    %c0_i32_0 = arith.constant 0 : i32
    %c0_i32_1 = arith.constant 0 : i32
    return %c0_i32, %c0_i32_0 : i32, i32
  }
  func.func @transform_7(%arg0: i32) -> (i32, i32) {
    %c0_i32 = arith.constant 0 : i32
    %c0_i32_0 = arith.constant 0 : i32
    %c0_i32_1 = arith.constant 0 : i32
    return %c0_i32, %c0_i32_0 : i32, i32
  }
}

</mosaic_0001>

<llo_original>
// kernel: tile.13
$region0: #{tile.13}
  #allocation0 [shape = 's32[1]{0}', space=sflag, size = 0x4, scoped, tag = 'scoped memory for tile.13']
  %s0 = inlined_call_operand.vmem [shape: f32[8], index: 0, kind: input, shape index: {}]
  %s1 = inlined_call_operand.vmem [shape: f32[56,8], index: 1, kind: output, shape index: {}]
  // Predicated region
  $region2: #{tile.13} parent=0 // pred_check
    _
  $region3: #{tile.13} parent=0 // pred_check_branch
    %3 = sbr.rel (0) target = $region5
  $region4: #{tile.13} parent=0 // pred_region
    _
  $region5: #{tile.13} parent=0 // pred_fallthru
    _
  %v4 = vld [vmem:[%s0] ss:$0 sm:$0xff]
  %5 = vst [vmem:[%s1] sm:$0xff] %v4
  %s6 = scalar_lea.vmem %s1, 8
  %7 = vst [vmem:[%s6] sm:$0xff] %v4
  %s8 = scalar_lea.vmem %s1, 16
  %9 = vst [vmem:[%s8] sm:$0xff] %v4
  %s10 = scalar_lea.vmem %s1, 24
  %11 = vst [vmem:[%s10] sm:$0xff] %v4
  %s12 = scalar_lea.vmem %s1, 32
  %13 = vst [vmem:[%s12] sm:$0xff] %v4
  %s14 = scalar_lea.vmem %s1, 40
  %15 = vst [vmem:[%s14] sm:$0xff] %v4
  %s16 = scalar_lea.vmem %s1, 48
  %17 = vst [vmem:[%s16] sm:$0xff] %v4

// kernel: tile.14
$region0: #{tile.14}
  %s0 = inlined_call_operand.vmem [shape: f32[56,8], index: 0, kind: input, shape index: {}]
  %s1 = inlined_call_operand.vmem [shape: f32[1,448], index: 1, kind: output, shape index: {}]
  $region1: #{tile.14} parent=0
    #allocation0 [shape = 'u8[16384]{0}', space=vmem, size = 0x4000, scoped, tag = 'scoped mem for output reshape']
    %s2 = smov 3
    %v3 = vld [vmem:[%s0] ss:$16 sm:%s2]
    %s4 = smov 12
    %v5 = vld [vmem:[%s0] ss:$16 sm:%s4]
    %vm6 = vcmask 1043458
    %v7 = vsel %vm6, %v5, %v3
    %vm8 = vcmask 64512
    %9 = vst.msk [vmem:[#allocation0] ss:$8 sm:$0xf] %vm8, %v7
    %s10 = scalar_lea.vmem %s0, 15
    %s11 = smov 3
    %v12 = vld [vmem:[%s10] ss:$16 sm:%s11]
    %s13 = scalar_lea.vmem %s0, 45
    %v14 = vld [vmem:[%s13] sm:$0x4]
    %vm15 = vcmask 1042434
    %v16 = vsel %vm15, %v14, %v12
    %17 = vrot.lane.b32.xlu0 %v16, 120
    %v18 = vpop.permute.xlu0 %17
    %vm19 = vcmask 1048512
    %20 = vst.msk [vmem:[#allocation0] ss:$8 sm:$0x7] %vm19, %v18
    %s21 = scalar_lea.vmem %s0, 14
    %s22 = smov 3
    %v23 = vld [vmem:[%s21] ss:$16 sm:%s22]
    %s24 = scalar_lea.vmem %s0, 44
    %v25 = vld [vmem:[%s24] sm:$0x4]
    %vm26 = vcmask 1042434
    %v27 = vsel %vm26, %v25, %v23
    %28 = vrot.lane.b32.xlu0 %v27, 112
    %v29 = vpop.permute.xlu0 %28
    %vm30 = vcmask 982912
    %31 = vst.msk [vmem:[#allocation0] ss:$8 sm:$0x7] %vm30, %v29
    %s32 = scalar_lea.vmem %s0, 13
    %s33 = smov 3
    %v34 = vld [vmem:[%s32] ss:$16 sm:%s33]
    %s35 = scalar_lea.vmem %s0, 43
    %v36 = vld [vmem:[%s35] sm:$0x4]
    %vm37 = vcmask 1042434
    %v38 = vsel %vm37, %v36, %v34
    %39 = vrot.lane.b32.xlu0 %v38, 104
    %v40 = vpop.permute.xlu0 %39
    %vm41 = vcmask 917312
    %42 = vst.msk [vmem:[#allocation0] ss:$8 sm:$0x7] %vm41, %v40
    %s43 = scalar_lea.vmem %s0, 12
    %s44 = smov 3
    %v45 = vld [vmem:[%s43] ss:$16 sm:%s44]
    %s46 = scalar_lea.vmem %s0, 42
    %v47 = vld [vmem:[%s46] sm:$0x4]
    %vm48 = vcmask 1042434
    %v49 = vsel %vm48, %v47, %v45
    %50 = vrot.lane.b32.xlu0 %v49, 96
    %v51 = vpop.permute.xlu0 %50
    %vm52 = vcmask 851712
    %53 = vst.msk [vmem:[#allocation0] ss:$8 sm:$0x7] %vm52, %v51
    %s54 = scalar_lea.vmem %s0, 11
    %s55 = smov 3
    %v56 = vld [vmem:[%s54] ss:$16 sm:%s55]
    %s57 = scalar_lea.vmem %s0, 41
    %v58 = vld [vmem:[%s57] sm:$0x4]
    %vm59 = vcmask 1042434
    %v60 = vsel %vm59, %v58, %v56
    %61 = vrot.lane.b32.xlu0 %v60, 88
    %v62 = vpop.permute.xlu0 %61
    %vm63 = vcmask 786112
    %64 = vst.msk [vmem:[#allocation0] ss:$8 sm:$0x7] %vm63, %v62
    %s65 = scalar_lea.vmem %s0, 10
    %s66 = smov 3
    %v67 = vld [vmem:[%s65] ss:$16 sm:%s66]
    %s68 = scalar_lea.vmem %s0, 40
    %v69 = vld [vmem:[%s68] sm:$0x4]
    %vm70 = vcmask 1042434
    %v71 = vsel %vm70, %v69, %v67
    %72 = vrot.lane.b32.xlu0 %v71, 80
    %v73 = vpop.permute.xlu0 %72
    %vm74 = vcmask 720512
    %75 = vst.msk [vmem:[#allocation0] ss:$8 sm:$0x7] %vm74, %v73
    %s76 = scalar_lea.vmem %s0, 9
    %s77 = smov 3
    %v78 = vld [vmem:[%s76] ss:$16 sm:%s77]
    %s79 = scalar_lea.vmem %s0, 39
    %v80 = vld [vmem:[%s79] sm:$0x4]
    %vm81 = vcmask 1042434
    %v82 = vsel %vm81, %v80, %v78
    %83 = vrot.lane.b32.xlu0 %v82, 72
    %v84 = vpop.permute.xlu0 %83
    %vm85 = vcmask 654912
    %86 = vst.msk [vmem:[#allocation0] ss:$8 sm:$0x7] %vm85, %v84
    %s87 = scalar_lea.vmem %s0, 8
    %s88 = smov 3
    %v89 = vld [vmem:[%s87] ss:$16 sm:%s88]
    %s90 = scalar_lea.vmem %s0, 38
    %v91 = vld [vmem:[%s90] sm:$0x4]
    %vm92 = vcmask 1042434
    %v93 = vsel %vm92, %v91, %v89
    %94 = vrot.lane.b32.xlu0 %v93, 64
    %v95 = vpop.permute.xlu0 %94
    %vm96 = vcmask 589312
    %97 = vst.msk [vmem:[#allocation0] ss:$8 sm:$0x7] %vm96, %v95
    %s98 = scalar_lea.vmem %s0, 7
    %s99 = smov 3
    %v100 = vld [vmem:[%s98] ss:$16 sm:%s99]
    %s101 = scalar_lea.vmem %s0, 7
    %s102 = smov 12
    %v103 = vld [vmem:[%s101] ss:$16 sm:%s102]
    %vm104 = vcmask 1043458
    %v105 = vsel %vm104, %v103, %v100
    %106 = vrot.lane.b32.xlu0 %v105, 56
    %v107 = vpop.permute.xlu0 %106
    %vm108 = vcmask 523712
    %109 = vst.msk [vmem:[#allocation0] ss:$8 sm:$0xf] %vm108, %v107
    %s110 = scalar_lea.vmem %s0, 6
    %s111 = smov 3
    %v112 = vld [vmem:[%s110] ss:$16 sm:%s111]
    %s113 = scalar_lea.vmem %s0, 6
    %s114 = smov 12
    %v115 = vld [vmem:[%s113] ss:$16 sm:%s114]
    %vm116 = vcmask 1043458
    %v117 = vsel %vm116, %v115, %v112
    %118 = vrot.lane.b32.xlu0 %v117, 48
    %v119 = vpop.permute.xlu0 %118
    %vm120 = vcmask 458112
    %121 = vst.msk [vmem:[#allocation0] ss:$8 sm:$0xf] %vm120, %v119
    %s122 = scalar_lea.vmem %s0, 5
    %s123 = smov 3
    %v124 = vld [vmem:[%s122] ss:$16 sm:%s123]
    %s125 = scalar_lea.vmem %s0, 5
    %s126 = smov 12
    %v127 = vld [vmem:[%s125] ss:$16 sm:%s126]
    %vm128 = vcmask 1043458
    %v129 = vsel %vm128, %v127, %v124
    %130 = vrot.lane.b32.xlu0 %v129, 40
    %v131 = vpop.permute.xlu0 %130
    %vm132 = vcmask 392512
    %133 = vst.msk [vmem:[#allocation0] ss:$8 sm:$0xf] %vm132, %v131
    %s134 = scalar_lea.vmem %s0, 4
    %s135 = smov 3
    %v136 = vld [vmem:[%s134] ss:$16 sm:%s135]
    %s137 = scalar_lea.vmem %s0, 4
    %s138 = smov 12
    %v139 = vld [vmem:[%s137] ss:$16 sm:%s138]
    %vm140 = vcmask 1043458
    %v141 = vsel %vm140, %v139, %v136
    %142 = vrot.lane.b32.xlu0 %v141, 32
    %v143 = vpop.permute.xlu0 %142
    %vm144 = vcmask 326912
    %145 = vst.msk [vmem:[#allocation0] ss:$8 sm:$0xf] %vm144, %v143
    %s146 = scalar_lea.vmem %s0, 3
    %s147 = smov 3
    %v148 = vld [vmem:[%s146] ss:$16 sm:%s147]
    %s149 = scalar_lea.vmem %s0, 3
    %s150 = smov 12
    %v151 = vld [vmem:[%s149] ss:$16 sm:%s150]
    %vm152 = vcmask 1043458
    %v153 = vsel %vm152, %v151, %v148
    %154 = vrot.lane.b32.xlu0 %v153, 24
    %v155 = vpop.permute.xlu0 %154
    %vm156 = vcmask 261312
    %157 = vst.msk [vmem:[#allocation0] ss:$8 sm:$0xf] %vm156, %v155
    %s158 = scalar_lea.vmem %s0, 2
    %s159 = smov 3
    %v160 = vld [vmem:[%s158] ss:$16 sm:%s159]
    %s161 = scalar_lea.vmem %s0, 2
    %s162 = smov 12
    %v163 = vld [vmem:[%s161] ss:$16 sm:%s162]
    %vm164 = vcmask 1043458
    %v165 = vsel %vm164, %v163, %v160
    %166 = vrot.lane.b32.xlu0 %v165, 16
    %v167 = vpop.permute.xlu0 %166
    %vm168 = vcmask 195712
    %169 = vst.msk [vmem:[#allocation0] ss:$8 sm:$0xf] %vm168, %v167
    %s170 = scalar_lea.vmem %s0, 1
    %s171 = smov 3
    %v172 = vld [vmem:[%s170] ss:$16 sm:%s171]
    %s173 = scalar_lea.vmem %s0, 1
    %s174 = smov 12
    %v175 = vld [vmem:[%s173] ss:$16 sm:%s174]
    %vm176 = vcmask 1043458
    %v177 = vsel %vm176, %v175, %v172
    %178 = vrot.lane.b32.xlu0 %v177, 8
    %v179 = vpop.permute.xlu0 %178
    %vm180 = vcmask 130112
    %181 = vst.msk [vmem:[#allocation0] ss:$8 sm:$0xf] %vm180, %v179
    %s183 = sshll.u32 1, 1
    %s184 = ssub.s32 %s183, 1
    %v186 = vld [vmem:[#allocation0] sm:%s184]
    %s187 = sshll.u32 1, 1
    %s188 = ssub.s32 %s187, 1
    %189 = vst [vmem:[%s1] sm:%s188] %v186
    %s190 = scalar_lea.vmem [#allocation0], 8
    %v191 = vld [vmem:[%s190] sm:%s184]
    %s192 = sshll.u32 1, 1
    %s193 = ssub.s32 %s192, 1
    %s194 = scalar_lea.vmem %s1, 1
    %195 = vst [vmem:[%s194] sm:%s193] %v191
    %s196 = scalar_lea.vmem [#allocation0], 16
    %v197 = vld [vmem:[%s196] sm:%s184]
    %s198 = sshll.u32 1, 1
    %s199 = ssub.s32 %s198, 1
    %s200 = smul.addr 1, 2
    %s201 = scalar_lea.vmem %s1, %s200
    %202 = vst [vmem:[%s201] sm:%s199] %v197
    %s203 = scalar_lea.vmem [#allocation0], 24
    %v204 = vld [vmem:[%s203] sm:%s184]
    %s205 = sshll.u32 1, 1
    %s206 = ssub.s32 %s205, 1
    %s207 = smul.addr 1, 3
    %s208 = scalar_lea.vmem %s1, %s207
    %209 = vst [vmem:[%s208] sm:%s206] %v204

// kernel: vgg_forward_pallas.6
$region0: #{vgg_forward_pallas.6}
  #allocation0 [shape = 'u32[]', space=smem, size = 0x4, offset = 0x4, fixed_abs, tag = 'smem constant byte address 0x4 - core index']
  #allocation1 [shape = 'u32[144,128]{1,0:T(1,128)}', space=vmem, size = 0x12000, scoped, tag = 'internal scratch']
  %s0 = inlined_call_operand.vmem [shape: f32[2,58,174], index: 0, kind: input, shape index: {}]
  %s1 = inlined_call_operand.vmem [shape: f32[3,174,448], index: 1, kind: input, shape index: {}]
  %s2 = inlined_call_operand.vmem [shape: f32[1,448], index: 2, kind: input, shape index: {}]
  %s3 = inlined_call_operand.vmem [shape: f32[2,56,448], index: 3, kind: output, shape index: {}]
  %s4 = sld [smem:[#allocation0]]
  $region45: #{vgg_forward_pallas.6} parent=0
    _
  %s6 = ssub.s32 1, %s4
  %s7 = scalar_select 0, %s6, %s4
  loop: start=0, step=1, limit=4
  $region2: #{vgg_forward_pallas.6} parent=0 // loop_pre_header
    _
  $region3: #{vgg_forward_pallas.6} parent=0 // loop_header
    %s9 = sphi 0, %s13
    %p10 = scmp.ge.s32.totalorder %s9, 4
    %s19 = sphi 0, %s21
    %s22 = sphi 0, %s19
    %s23 = sphi 0, %s22
    %s39 = sphi 0, %s23
    %s43 = sphi 0, %s43
    %s45 = sphi 0, %s43
    %s46 = sphi 0, %s45
    %s60 = sphi 0, %s46
    %s64 = sphi 0, %s64
    %s66 = sphi 0, %s64
    %s67 = sphi 0, %s66
    %s81 = sphi 0, %s67
    %s87 = sphi 0, %s89
    %s90 = sphi 0, %s87
    %s91 = sphi 0, %s90
    %s107 = sphi 0, %s91
  $region4: #{vgg_forward_pallas.6} parent=0 // loop_header_branch
    %12 = sbr.rel (%p10) target = $region8
  $region5: #{vgg_forward_pallas.6} parent=0 // loop_body
    %s14 = ssub.s32 %s9, 1
    %s15 = ssub.s32 %s9, 2
    %s16 = sadd.s32 %s9, 1
    %s17 = ssub.s32 %s9, %s16
    %p18 = scmp.eq.s32.totalorder %s17, 0
    %s20 = sadd.s32 %s19, 1
    %s21 = scalar_select %p18, %s19, %s20
    %p24 = pneg %p18
    %p25 = scmp.eq.s32.totalorder %s9, 1
    %p26 = por %p24, %p25
    %p27 = scmp.ne.s32.totalorder %s19, %s22
    %p28 = scmp.eq.s32.totalorder %s9, 0
    %p29 = por %p27, %p28
    %p30 = scmp.ne.s32.totalorder %s19, %s22
    %p31 = scmp.eq.s32.totalorder %s14, 1
    %p32 = por %p30, %p31
    %p33 = scmp.ne.s32.totalorder %s22, %s23
    %p34 = scmp.eq.s32.totalorder %s14, 0
    %p35 = por %p33, %p34
    %p36 = scmp.ne.s32.totalorder %s22, %s23
    %p37 = scmp.eq.s32.totalorder %s15, 1
    %p38 = por %p36, %p37
    %p40 = scmp.ne.s32.totalorder %s23, %s39
    %p41 = scmp.eq.s32.totalorder %s15, 0
    %p42 = por %p40, %p41
    %s44 = sadd.s32 %s43, 1
    %p47 = scmp.eq.s32.totalorder %s9, 1
    %p48 = scmp.ne.s32.totalorder %s43, %s45
    %p49 = scmp.eq.s32.totalorder %s9, 0
    %p50 = por %p48, %p49
    %p51 = scmp.ne.s32.totalorder %s43, %s45
    %p52 = scmp.eq.s32.totalorder %s14, 1
    %p53 = por %p51, %p52
    %p54 = scmp.ne.s32.totalorder %s45, %s46
    %p55 = scmp.eq.s32.totalorder %s14, 0
    %p56 = por %p54, %p55
    %p57 = scmp.ne.s32.totalorder %s45, %s46
    %p58 = scmp.eq.s32.totalorder %s15, 1
    %p59 = por %p57, %p58
    %p61 = scmp.ne.s32.totalorder %s46, %s60
    %p62 = scmp.eq.s32.totalorder %s15, 0
    %p63 = por %p61, %p62
    %s65 = sadd.s32 %s64, 1
    %p68 = scmp.eq.s32.totalorder %s9, 1
    %p69 = scmp.ne.s32.totalorder %s64, %s66
    %p70 = scmp.eq.s32.totalorder %s9, 0
    %p71 = por %p69, %p70
    %p72 = scmp.ne.s32.totalorder %s64, %s66
    %p73 = scmp.eq.s32.totalorder %s14, 1
    %p74 = por %p72, %p73
    %p75 = scmp.ne.s32.totalorder %s66, %s67
    %p76 = scmp.eq.s32.totalorder %s14, 0
    %p77 = por %p75, %p76
    %p78 = scmp.ne.s32.totalorder %s66, %s67
    %p79 = scmp.eq.s32.totalorder %s15, 1
    %p80 = por %p78, %p79
    %p82 = scmp.ne.s32.totalorder %s67, %s81
    %p83 = scmp.eq.s32.totalorder %s15, 0
    %p84 = por %p82, %p83
    %s85 = ssub.s32 %s9, %s16
    %p86 = scmp.eq.s32.totalorder %s85, 0
    %s88 = sadd.s32 %s87, 1
    %s89 = scalar_select %p86, %s87, %s88
    %p92 = pneg %p86
    %p93 = scmp.eq.s32.totalorder %s9, 1
    %p94 = por %p92, %p93
    %p95 = scmp.ne.s32.totalorder %s87, %s90
    %p96 = scmp.eq.s32.totalorder %s9, 0
    %p97 = por %p95, %p96
    %p98 = scmp.ne.s32.totalorder %s87, %s90
    %p99 = scmp.eq.s32.totalorder %s14, 1
    %p100 = por %p98, %p99
    %p101 = scmp.ne.s32.totalorder %s90, %s91
    %p102 = scmp.eq.s32.totalorder %s14, 0
    %p103 = por %p101, %p102
    %p104 = scmp.ne.s32.totalorder %s90, %s91
    %p105 = scmp.eq.s32.totalorder %s15, 1
    %p106 = por %p104, %p105
    %p108 = scmp.ne.s32.totalorder %s91, %s107
    %p109 = scmp.eq.s32.totalorder %s15, 0
    %p110 = por %p108, %p109
    %p111 = scmp.le.s32.totalorder 1, %s9
    %p112 = scmp.lt.s32.totalorder %s9, 3
    %p113 = pnand %p111, %p112
    %p114 = pneg %p113
    // Predicated region
    $region9: #{vgg_forward_pallas.6} parent=5 // pred_check
      _
    $region10: #{vgg_forward_pallas.6} parent=5 // pred_check_branch
      %116 = sbr.rel (%p113) target = $region12
    $region11: #{vgg_forward_pallas.6} parent=5 // pred_region
      %s117 = ssub.s32 %s9, 1
      // Predicated region
      $region13: #{vgg_forward_pallas.6} parent=11 // pred_check
        %p118 = pneg %p56
      $region14: #{vgg_forward_pallas.6} parent=11 // pred_check_branch
        %120 = sbr.rel (%p118) target = $region16
      $region15: #{vgg_forward_pallas.6} parent=11 // pred_region
        _
      $region16: #{vgg_forward_pallas.6} parent=11 // pred_fallthru
        _
      // Predicated region
      $region17: #{vgg_forward_pallas.6} parent=11 // pred_check
        %p121 = pneg %p77
      $region18: #{vgg_forward_pallas.6} parent=11 // pred_check_branch
        %123 = sbr.rel (%p121) target = $region20
      $region19: #{vgg_forward_pallas.6} parent=11 // pred_region
        _
      $region20: #{vgg_forward_pallas.6} parent=11 // pred_fallthru
        _
    $region12: #{vgg_forward_pallas.6} parent=5 // pred_fallthru
      _
    %p124 = scmp.lt.s32.totalorder %s9, 2
    // Predicated region
    $region21: #{vgg_forward_pallas.6} parent=5 // pred_check
      %p125 = pneg %p124
    $region22: #{vgg_forward_pallas.6} parent=5 // pred_check_branch
      %127 = sbr.rel (%p125) target = $region24
    $region23: #{vgg_forward_pallas.6} parent=5 // pred_region
      // Predicated region
      $region25: #{vgg_forward_pallas.6} parent=23 // pred_check
        %p128 = pneg %p29
      $region26: #{vgg_forward_pallas.6} parent=23 // pred_check_branch
        %130 = sbr.rel (%p128) target = $region28
      $region27: #{vgg_forward_pallas.6} parent=23 // pred_region
        %p131 = scmp.lt.s32.totalorder %s9, 1
        %s132 = scalar_select %p131, %s9, 1
        %s133 = smul.addr %s132, 16
        %s134 = smul.addr %s133, 8
        %s135 = scalar_lea.vmem %s0, %s134
      $region28: #{vgg_forward_pallas.6} parent=23 // pred_fallthru
        _
    $region24: #{vgg_forward_pallas.6} parent=5 // pred_fallthru
      _
    %p136 = scmp.le.s32.totalorder 1, %s9
    %p137 = scmp.lt.s32.totalorder %s9, 3
    %p138 = pnand %p136, %p137
    %p139 = pneg %p138
    // Predicated region
    $region29: #{vgg_forward_pallas.6} parent=5 // pred_check
      _
    $region30: #{vgg_forward_pallas.6} parent=5 // pred_check_branch
      %141 = sbr.rel (%p138) target = $region32
    $region31: #{vgg_forward_pallas.6} parent=5 // pred_region
      %s142 = ssub.s32 %s9, 1
      %p143 = scmp.lt.s32.totalorder %s14, 1
      %s144 = scalar_select %p143, %s14, 1
      %s145 = smul.addr %s144, 16
      %s146 = smul.addr %s145, 8
      %s147 = scalar_lea.vmem %s0, %s146
      %p148 = pneg %p35
      %p149 = pneg %p32
      %p150 = pneg %p56
      %p151 = pneg %p53
      %p152 = pneg %p77
      %p153 = pneg %p74
      %p154 = pneg %p103
      %p155 = pneg %p100
      %p156 = scmp.lt.s32.totalorder %s14, 1
      %s157 = scalar_select %p156, %s14, 1
      %s158 = smul.addr %s157, 28
      %s159 = smul.addr %s158, 8
      %s160 = scalar_lea.vmem %s3, %s159
      %p161 = scmp.lt.s32.totalorder %s14, 1
      %s162 = scalar_select %p161, %s14, 1
      %s163 = smul.addr %s162, 16
      %s164 = smul.addr %s163, 8
      %s165 = scalar_lea.vmem %s0, %s164
      %p166 = scmp.lt.s32.totalorder %s14, 1
      %s167 = scalar_select %p166, %s14, 1
      %s168 = smul.addr %s167, 28
      %s169 = smul.addr %s168, 8
      %s170 = scalar_lea.vmem %s3, %s169
      %v171 = vld [vmem:[%s165] sm:$0xff]
      %v172 = vld [vmem:[%s165 + $0x8] sm:$0xff]
      %v173 = vld [vmem:[%s165 + $0x10] sm:$0xff]
      %v174 = vld [vmem:[%s165 + $0x18] sm:$0xff]
      %v175 = vld [vmem:[%s165 + $0x20] sm:$0xff]
      %v176 = vld [vmem:[%s165 + $0x28] sm:$0xff]
      %v177 = vld [vmem:[%s165 + $0x30] sm:$0xff]
      %v178 = vld [vmem:[%s165 + $0x38] sm:$0xff]
      %v179 = vld [vmem:[%s165 + $0x40] sm:$0xff]
      %v180 = vld [vmem:[%s165 + $0x48] sm:$0xff]
      %v181 = vld [vmem:[%s165 + $0x50] sm:$0xff]
      %v182 = vld [vmem:[%s165 + $0x58] sm:$0xff]
      %v183 = vld [vmem:[%s165 + $0x60] sm:$0xff]
      %v184 = vld [vmem:[%s165 + $0x68] sm:$0xff]
      %v185 = vld [vmem:[%s165 + $0x70] sm:$0x3]
      %v186 = vld [vmem:[%s165 + $0x78] sm:$0x3]
      %v187 = vld [vmem:[%s1] sm:$0xff]
      %v188 = vld [vmem:[%s1 + $0x8] sm:$0xff]
      %v189 = vld [vmem:[%s1 + $0x10] sm:$0xff]
      %v190 = vld [vmem:[%s1 + $0x18] sm:$0xff]
      %v191 = vld [vmem:[%s1 + $0x20] sm:$0xff]
      %v192 = vld [vmem:[%s1 + $0x28] sm:$0xff]
      %v193 = vld [vmem:[%s1 + $0x30] sm:$0xff]
      %v194 = vld [vmem:[%s1 + $0x38] sm:$0xff]
      %v195 = vld [vmem:[%s1 + $0x40] sm:$0xff]
      %v196 = vld [vmem:[%s1 + $0x48] sm:$0xff]
      %v197 = vld [vmem:[%s1 + $0x50] sm:$0xff]
      %v198 = vld [vmem:[%s1 + $0x58] sm:$0xff]
      %v199 = vld [vmem:[%s1 + $0x60] sm:$0xff]
      %v200 = vld [vmem:[%s1 + $0x68] sm:$0xff]
      %v201 = vld [vmem:[%s1 + $0x70] sm:$0xff]
      %v202 = vld [vmem:[%s1 + $0x78] sm:$0xff]
      %v203 = vld [vmem:[%s1 + $0x80] sm:$0xff]
      %v204 = vld [vmem:[%s1 + $0x88] sm:$0xff]
      %v205 = vld [vmem:[%s1 + $0x90] sm:$0xff]
      %v206 = vld [vmem:[%s1 + $0x98] sm:$0xff]
      %v207 = vld [vmem:[%s1 + $0xa0] sm:$0xff]
      %v208 = vld [vmem:[%s1 + $0xa8] sm:$0xff]
      %v209 = vld [vmem:[%s1 + $0xb0] sm:$0xff]
      %v210 = vld [vmem:[%s1 + $0xb8] sm:$0xff]
      %v211 = vld [vmem:[%s1 + $0xc0] sm:$0xff]
      %v212 = vld [vmem:[%s1 + $0xc8] sm:$0xff]
      %v213 = vld [vmem:[%s1 + $0xd0] sm:$0xff]
      %v214 = vld [vmem:[%s1 + $0xd8] sm:$0xff]
      %v215 = vld [vmem:[%s1 + $0xe0] sm:$0xff]
      %v216 = vld [vmem:[%s1 + $0xe8] sm:$0xff]
      %v217 = vld [vmem:[%s1 + $0xf0] sm:$0xff]
      %v218 = vld [vmem:[%s1 + $0xf8] sm:$0xff]
      %v219 = vld [vmem:[%s1 + $0x100] sm:$0xff]
      %v220 = vld [vmem:[%s1 + $0x108] sm:$0xff]
      %v221 = vld [vmem:[%s1 + $0x110] sm:$0xff]
      %v222 = vld [vmem:[%s1 + $0x118] sm:$0xff]
      %v223 = vld [vmem:[%s1 + $0x120] sm:$0xff]
      %v224 = vld [vmem:[%s1 + $0x128] sm:$0xff]
      %v225 = vld [vmem:[%s1 + $0x130] sm:$0xff]
      %v226 = vld [vmem:[%s1 + $0x138] sm:$0xff]
      %v227 = vld [vmem:[%s1 + $0x140] sm:$0xff]
      %v228 = vld [vmem:[%s1 + $0x148] sm:$0xff]
      %v229 = vld [vmem:[%s1 + $0x150] sm:$0xff]
      %v230 = vld [vmem:[%s1 + $0x158] sm:$0xff]
      %v231 = vld [vmem:[%s1 + $0x160] sm:$0xff]
      %v232 = vld [vmem:[%s1 + $0x168] sm:$0xff]
      %v233 = vld [vmem:[%s1 + $0x170] sm:$0xff]
      %v234 = vld [vmem:[%s1 + $0x178] sm:$0xff]
      %v235 = vld [vmem:[%s1 + $0x180] sm:$0xff]
      %v236 = vld [vmem:[%s1 + $0x188] sm:$0xff]
      %v237 = vld [vmem:[%s1 + $0x190] sm:$0xff]
      %v238 = vld [vmem:[%s1 + $0x198] sm:$0xff]
      %v239 = vld [vmem:[%s1 + $0x1a0] sm:$0xff]
      %v240 = vld [vmem:[%s1 + $0x1a8] sm:$0xff]
      %v241 = vld [vmem:[%s1 + $0x1b0] sm:$0xff]
      %v242 = vld [vmem:[%s1 + $0x1b8] sm:$0xff]
      %v243 = vld [vmem:[%s1 + $0x1c0] sm:$0xff]
      %v244 = vld [vmem:[%s1 + $0x1c8] sm:$0xff]
      %v245 = vld [vmem:[%s1 + $0x1d0] sm:$0xff]
      %v246 = vld [vmem:[%s1 + $0x1d8] sm:$0xff]
      %v247 = vld [vmem:[%s1 + $0x1e0] sm:$0xff]
      %v248 = vld [vmem:[%s1 + $0x1e8] sm:$0xff]
      %v249 = vld [vmem:[%s1 + $0x1f0] sm:$0xff]
      %v250 = vld [vmem:[%s1 + $0x1f8] sm:$0xff]
      %v251 = vld [vmem:[%s1 + $0x200] sm:$0xff]
      %v252 = vld [vmem:[%s1 + $0x208] sm:$0xff]
      %v253 = vld [vmem:[%s1 + $0x210] sm:$0xff]
      %v254 = vld [vmem:[%s1 + $0x218] sm:$0xff]
      %v255 = vld [vmem:[%s1 + $0x220] sm:$0xff]
      %v256 = vld [vmem:[%s1 + $0x228] sm:$0xff]
      %v257 = vld [vmem:[%s1 + $0x230] sm:$0xff]
      %v258 = vld [vmem:[%s1 + $0x238] sm:$0xff]
      %v259 = vld [vmem:[%s1 + $0x240] sm:$0xff]
      %v260 = vld [vmem:[%s1 + $0x248] sm:$0xff]
      %v261 = vld [vmem:[%s1 + $0x250] sm:$0xff]
      %v262 = vld [vmem:[%s1 + $0x258] sm:$0xff]
      %v263 = vld [vmem:[%s1 + $0x260] sm:$0xff]
      %v264 = vld [vmem:[%s1 + $0x268] sm:$0xff]
      %v265 = vld [vmem:[%s1 + $0x270] sm:$0xff]
      %v266 = vld [vmem:[%s1 + $0x278] sm:$0xff]
      %v267 = vld [vmem:[%s1 + $0x280] sm:$0xff]
      %v268 = vld [vmem:[%s1 + $0x288] sm:$0xff]
      %v269 = vld [vmem:[%s1 + $0x290] sm:$0xff]
      %v270 = vld [vmem:[%s1 + $0x298] sm:$0xff]
      %v271 = vld [vmem:[%s1 + $0x2a0] sm:$0x3f]
      %v272 = vld [vmem:[%s1 + $0x2a8] sm:$0x3f]
      %v273 = vld [vmem:[%s1 + $0x2b0] sm:$0x3f]
      %v274 = vld [vmem:[%s1 + $0x2b8] sm:$0x3f]
      %s275 = scalar_lea.vmem %s1, 704
      %v276 = vld [vmem:[%s275] sm:$0xff]
      %v277 = vld [vmem:[%s275 + $0x8] sm:$0xff]
      %v278 = vld [vmem:[%s275 + $0x10] sm:$0xff]
      %v279 = vld [vmem:[%s275 + $0x18] sm:$0xff]
      %v280 = vld [vmem:[%s275 + $0x20] sm:$0xff]
      %v281 = vld [vmem:[%s275 + $0x28] sm:$0xff]
      %v282 = vld [vmem:[%s275 + $0x30] sm:$0xff]
      %v283 = vld [vmem:[%s275 + $0x38] sm:$0xff]
      %v284 = vld [vmem:[%s275 + $0x40] sm:$0xff]
      %v285 = vld [vmem:[%s275 + $0x48] sm:$0xff]
      %v286 = vld [vmem:[%s275 + $0x50] sm:$0xff]
      %v287 = vld [vmem:[%s275 + $0x58] sm:$0xff]
      %v288 = vld [vmem:[%s275 + $0x60] sm:$0xff]
      %v289 = vld [vmem:[%s275 + $0x68] sm:$0xff]
      %v290 = vld [vmem:[%s275 + $0x70] sm:$0xff]
      %v291 = vld [vmem:[%s275 + $0x78] sm:$0xff]
      %v292 = vld [vmem:[%s275 + $0x80] sm:$0xff]
      %v293 = vld [vmem:[%s275 + $0x88] sm:$0xff]
      %v294 = vld [vmem:[%s275 + $0x90] sm:$0xff]
      %v295 = vld [vmem:[%s275 + $0x98] sm:$0xff]
      %v296 = vld [vmem:[%s275 + $0xa0] sm:$0xff]
      %v297 = vld [vmem:[%s275 + $0xa8] sm:$0xff]
      %v298 = vld [vmem:[%s275 + $0xb0] sm:$0xff]
      %v299 = vld [vmem:[%s275 + $0xb8] sm:$0xff]
      %v300 = vld [vmem:[%s275 + $0xc0] sm:$0xff]
      %v301 = vld [vmem:[%s275 + $0xc8] sm:$0xff]
      %v302 = vld [vmem:[%s275 + $0xd0] sm:$0xff]
      %v303 = vld [vmem:[%s275 + $0xd8] sm:$0xff]
      %v304 = vld [vmem:[%s275 + $0xe0] sm:$0xff]
      %v305 = vld [vmem:[%s275 + $0xe8] sm:$0xff]
      %v306 = vld [vmem:[%s275 + $0xf0] sm:$0xff]
      %v307 = vld [vmem:[%s275 + $0xf8] sm:$0xff]
      %v308 = vld [vmem:[%s275 + $0x100] sm:$0xff]
      %v309 = vld [vmem:[%s275 + $0x108] sm:$0xff]
      %v310 = vld [vmem:[%s275 + $0x110] sm:$0xff]
      %v311 = vld [vmem:[%s275 + $0x118] sm:$0xff]
      %v312 = vld [vmem:[%s275 + $0x120] sm:$0xff]
      %v313 = vld [vmem:[%s275 + $0x128] sm:$0xff]
      %v314 = vld [vmem:[%s275 + $0x130] sm:$0xff]
      %v315 = vld [vmem:[%s275 + $0x138] sm:$0xff]
      %v316 = vld [vmem:[%s275 + $0x140] sm:$0xff]
      %v317 = vld [vmem:[%s275 + $0x148] sm:$0xff]
      %v318 = vld [vmem:[%s275 + $0x150] sm:$0xff]
      %v319 = vld [vmem:[%s275 + $0x158] sm:$0xff]
      %v320 = vld [vmem:[%s275 + $0x160] sm:$0xff]
      %v321 = vld [vmem:[%s275 + $0x168] sm:$0xff]
      %v322 = vld [vmem:[%s275 + $0x170] sm:$0xff]
      %v323 = vld [vmem:[%s275 + $0x178] sm:$0xff]
      %v324 = vld [vmem:[%s275 + $0x180] sm:$0xff]
      %v325 = vld [vmem:[%s275 + $0x188] sm:$0xff]
      %v326 = vld [vmem:[%s275 + $0x190] sm:$0xff]
      %v327 = vld [vmem:[%s275 + $0x198] sm:$0xff]
      %v328 = vld [vmem:[%s275 + $0x1a0] sm:$0xff]
      %v329 = vld [vmem:[%s275 + $0x1a8] sm:$0xff]
      %v330 = vld [vmem:[%s275 + $0x1b0] sm:$0xff]
      %v331 = vld [vmem:[%s275 + $0x1b8] sm:$0xff]
      %v332 = vld [vmem:[%s275 + $0x1c0] sm:$0xff]
      %v333 = vld [vmem:[%s275 + $0x1c8] sm:$0xff]
      %v334 = vld [vmem:[%s275 + $0x1d0] sm:$0xff]
      %v335 = vld [vmem:[%s275 + $0x1d8] sm:$0xff]
      %v336 = vld [vmem:[%s275 + $0x1e0] sm:$0xff]
      %v337 = vld [vmem:[%s275 + $0x1e8] sm:$0xff]
      %v338 = vld [vmem:[%s275 + $0x1f0] sm:$0xff]
      %v339 = vld [vmem:[%s275 + $0x1f8] sm:$0xff]
      %v340 = vld [vmem:[%s275 + $0x200] sm:$0xff]
      %v341 = vld [vmem:[%s275 + $0x208] sm:$0xff]
      %v342 = vld [vmem:[%s275 + $0x210] sm:$0xff]
      %v343 = vld [vmem:[%s275 + $0x218] sm:$0xff]
      %v344 = vld [vmem:[%s275 + $0x220] sm:$0xff]
      %v345 = vld [vmem:[%s275 + $0x228] sm:$0xff]
      %v346 = vld [vmem:[%s275 + $0x230] sm:$0xff]
      %v347 = vld [vmem:[%s275 + $0x238] sm:$0xff]
      %v348 = vld [vmem:[%s275 + $0x240] sm:$0xff]
      %v349 = vld [vmem:[%s275 + $0x248] sm:$0xff]
      %v350 = vld [vmem:[%s275 + $0x250] sm:$0xff]
      %v351 = vld [vmem:[%s275 + $0x258] sm:$0xff]
      %v352 = vld [vmem:[%s275 + $0x260] sm:$0xff]
      %v353 = vld [vmem:[%s275 + $0x268] sm:$0xff]
      %v354 = vld [vmem:[%s275 + $0x270] sm:$0xff]
      %v355 = vld [vmem:[%s275 + $0x278] sm:$0xff]
      %v356 = vld [vmem:[%s275 + $0x280] sm:$0xff]
      %v357 = vld [vmem:[%s275 + $0x288] sm:$0xff]
      %v358 = vld [vmem:[%s275 + $0x290] sm:$0xff]
      %v359 = vld [vmem:[%s275 + $0x298] sm:$0xff]
      %v360 = vld [vmem:[%s275 + $0x2a0] sm:$0x3f]
      %v361 = vld [vmem:[%s275 + $0x2a8] sm:$0x3f]
      %v362 = vld [vmem:[%s275 + $0x2b0] sm:$0x3f]
      %v363 = vld [vmem:[%s275 + $0x2b8] sm:$0x3f]
      %vm380 = vcmask 1046528
      %v381 = vrot.slane %v171, 1
      %v382 = vrot.slane %v173, 1
      %v383 = vsel %vm380, %v381, %v382
      %v384 = vrot.slane %v172, 1
      %v385 = vrot.slane %v174, 1
      %v386 = vsel %vm380, %v384, %v385
      %v387 = vrot.slane %v175, 1
      %v388 = vsel %vm380, %v382, %v387
      %v389 = vrot.slane %v176, 1
      %v390 = vsel %vm380, %v385, %v389
      %v391 = vrot.slane %v177, 1
      %v392 = vsel %vm380, %v387, %v391
      %v393 = vrot.slane %v178, 1
      %v394 = vsel %vm380, %v389, %v393
      %v395 = vrot.slane %v179, 1
      %v396 = vsel %vm380, %v391, %v395
      %v397 = vrot.slane %v180, 1
      %v398 = vsel %vm380, %v393, %v397
      %v399 = vrot.slane %v181, 1
      %v400 = vsel %vm380, %v395, %v399
      %v401 = vrot.slane %v182, 1
      %v402 = vsel %vm380, %v397, %v401
      %v403 = vrot.slane %v183, 1
      %v404 = vsel %vm380, %v399, %v403
      %v405 = vrot.slane %v184, 1
      %v406 = vsel %vm380, %v401, %v405
      %v407 = vrot.slane %v185, 1
      %v408 = vsel %vm380, %v403, %v407
      %v409 = vrot.slane %v186, 1
      %v410 = vsel %vm380, %v405, %v409
      %vm418 = vcmask 375808
      %v419 = vsel %vm418, %v386, 0
      %v421 = vsel %vm418, %v390, 0
      %v423 = vsel %vm418, %v394, 0
      %v425 = vsel %vm418, %v398, 0
      %v427 = vsel %vm418, %v402, 0
      %v429 = vsel %vm418, %v406, 0
      %v431 = vsel %vm418, %v410, 0
      %vm433 = vcmask 1045504
      %v435 = vsel %vm433, %v360, 0
      %v438 = vsel %vm433, %v361, 0
      %v441 = vsel %vm433, %v362, 0
      %v444 = vsel %vm433, %v363, 0
      %446 = vmatprep.subr.mxu0 %v337
      %447 = vmatpush1.msra.mxu0 %v336
      %448 = vmatprep.subr.mxu0 %v333
      %449 = vmatpush1.msra.mxu0 %v332
      %450 = vmatprep.subr.mxu0 %v329
      %451 = vmatpush1.msra.mxu0 %v328
      %452 = vmatprep.subr.mxu0 %v325
      %453 = vmatpush1.msra.mxu0 %v324
      %454 = vmatprep.subr.mxu0 %v321
      %455 = vmatpush1.msra.mxu0 %v320
      %456 = vmatprep.subr.mxu0 %v317
      %457 = vmatpush1.msra.mxu0 %v316
      %458 = vmatprep.subr.mxu0 %v313
      %459 = vmatpush1.msra.mxu0 %v312
      %460 = vmatprep.subr.mxu0 %v309
      %461 = vmatpush1.msra.mxu0 %v308
      %462 = vmatprep.subr.mxu0 %v305
      %463 = vmatpush1.msra.mxu0 %v304
      %464 = vmatprep.subr.mxu0 %v301
      %465 = vmatpush1.msra.mxu0 %v300
      %466 = vmatprep.subr.mxu0 %v297
      %467 = vmatpush1.msra.mxu0 %v296
      %468 = vmatprep.subr.mxu0 %v293
      %469 = vmatpush1.msra.mxu0 %v292
      %470 = vmatprep.subr.mxu0 %v289
      %471 = vmatpush1.msra.mxu0 %v288
      %472 = vmatprep.subr.mxu0 %v285
      %473 = vmatpush1.msra.mxu0 %v284
      %474 = vmatprep.subr.mxu0 %v281
      %475 = vmatpush1.msra.mxu0 %v280
      %476 = vmatprep.subr.mxu0 %v277
      %477 = vmatpush1.msra.mxu0 %v276
      %478 = vmatprep.subr.mxu0 0.0
      %479 = vmatpush2.msra.mxu0 0.0
      %480 = vmatprep.subr.mxu0 0.0
      %481 = vmatpush2.msra.mxu0 0.0
      %482 = vmatprep.subr.mxu0 0.0
      %483 = vmatpush2.msra.mxu0 0.0
      %484 = vmatprep.subr.mxu0 0.0
      %485 = vmatpush2.msra.mxu0 0.0
      %486 = vmatprep.subr.mxu0 0.0
      %487 = vmatpush2.msra.mxu0 0.0
      %488 = vmatprep.subr.mxu0 0.0
      %489 = vmatpush2.msra.mxu0 0.0
      %490 = vmatprep.subr.mxu0 0.0
      %491 = vmatpush2.msra.mxu0 0.0
      %492 = vmatprep.subr.mxu0 0.0
      %493 = vmatpush2.msra.mxu0 0.0
      %494 = vmatprep.subr.mxu0 0.0
      %495 = vmatpush2.msra.mxu0 0.0
      %496 = vmatprep.subr.mxu0 0.0
      %497 = vmatpush2.msra.mxu0 0.0
      %498 = vmatprep.subr.mxu0 %v438
      %499 = vmatpush2.msra.mxu0 %v435
      %500 = vmatprep.subr.mxu0 %v357
      %501 = vmatpush2.msra.mxu0 %v356
      %502 = vmatprep.subr.mxu0 %v353
      %503 = vmatpush2.msra.mxu0 %v352
      %504 = vmatprep.subr.mxu0 %v349
      %505 = vmatpush2.msra.mxu0 %v348
      %506 = vmatprep.subr.mxu0 %v345
      %507 = vmatpush2.msra.mxu0 %v344
      %508 = vmatprep.subr.mxu0 %v341
      %509 = vmatpush2.msra.mxu0 %v340
      %510 = vmatprep.mubr.f32.mxu0 %v419
      %511 = vmatmul.mubr.f32.gmra.mxu0 %v383
      %v512 = vpop.f32.mrf.mxu0
      %v513 = vadd.f32 0.0, %v512
      %v514 = vpop.f32.mrf.mxu0
      %v515 = vadd.f32 0.0, %v514
      %516 = vmatprep.mubr.f32.mxu0 %v421
      %517 = vmatmul.mubr.f32.gmra.mxu0 %v388
      %v518 = vpop.f32.mrf.mxu0
      %v519 = vadd.f32 0.0, %v518
      %v520 = vpop.f32.mrf.mxu0
      %v521 = vadd.f32 0.0, %v520
      %522 = vmatprep.mubr.f32.mxu0 %v423
      %523 = vmatmul.mubr.f32.gmra.mxu0 %v392
      %v524 = vpop.f32.mrf.mxu0
      %v525 = vadd.f32 0.0, %v524
      %v526 = vpop.f32.mrf.mxu0
      %v527 = vadd.f32 0.0, %v526
      %528 = vmatprep.mubr.f32.mxu0 %v425
      %529 = vmatmul.mubr.f32.gmra.mxu0 %v396
      %v530 = vpop.f32.mrf.mxu0
      %v531 = vadd.f32 0.0, %v530
      %v532 = vpop.f32.mrf.mxu0
      %v533 = vadd.f32 0.0, %v532
      %534 = vmatprep.mubr.f32.mxu0 %v427
      %535 = vmatmul.mubr.f32.gmra.mxu0 %v400
      %v536 = vpop.f32.mrf.mxu0
      %v537 = vadd.f32 0.0, %v536
      %v538 = vpop.f32.mrf.mxu0
      %v539 = vadd.f32 0.0, %v538
      %540 = vmatprep.mubr.f32.mxu0 %v429
      %541 = vmatmul.mubr.f32.gmra.mxu0 %v404
      %v542 = vpop.f32.mrf.mxu0
      %v543 = vadd.f32 0.0, %v542
      %v544 = vpop.f32.mrf.mxu0
      %v545 = vadd.f32 0.0, %v544
      %546 = vmatprep.mubr.f32.mxu0 %v431
      %547 = vmatmul.mubr.f32.gmra.mxu0 %v408
      %v548 = vpop.f32.mrf.mxu0
      %v549 = vadd.f32 0.0, %v548
      %v550 = vpop.f32.mrf.mxu0
      %v551 = vadd.f32 0.0, %v550
      %552 = vdwg.mxu0
      %553 = vmatprep.subr.mxu0 %v339
      %554 = vmatpush1.msra.mxu0 %v338
      %555 = vmatprep.subr.mxu0 %v335
      %556 = vmatpush1.msra.mxu0 %v334
      %557 = vmatprep.subr.mxu0 %v331
      %558 = vmatpush1.msra.mxu0 %v330
      %559 = vmatprep.subr.mxu0 %v327
      %560 = vmatpush1.msra.mxu0 %v326
      %561 = vmatprep.subr.mxu0 %v323
      %562 = vmatpush1.msra.mxu0 %v322
      %563 = vmatprep.subr.mxu0 %v319
      %564 = vmatpush1.msra.mxu0 %v318
      %565 = vmatprep.subr.mxu0 %v315
      %566 = vmatpush1.msra.mxu0 %v314
      %567 = vmatprep.subr.mxu0 %v311
      %568 = vmatpush1.msra.mxu0 %v310
      %569 = vmatprep.subr.mxu0 %v307
      %570 = vmatpush1.msra.mxu0 %v306
      %571 = vmatprep.subr.mxu0 %v303
      %572 = vmatpush1.msra.mxu0 %v302
      %573 = vmatprep.subr.mxu0 %v299
      %574 = vmatpush1.msra.mxu0 %v298
      %575 = vmatprep.subr.mxu0 %v295
      %576 = vmatpush1.msra.mxu0 %v294
      %577 = vmatprep.subr.mxu0 %v291
      %578 = vmatpush1.msra.mxu0 %v290
      %579 = vmatprep.subr.mxu0 %v287
      %580 = vmatpush1.msra.mxu0 %v286
      %581 = vmatprep.subr.mxu0 %v283
      %582 = vmatpush1.msra.mxu0 %v282
      %583 = vmatprep.subr.mxu0 %v279
      %584 = vmatpush1.msra.mxu0 %v278
      %585 = vmatprep.subr.mxu0 0.0
      %586 = vmatpush2.msra.mxu0 0.0
      %587 = vmatprep.subr.mxu0 0.0
      %588 = vmatpush2.msra.mxu0 0.0
      %589 = vmatprep.subr.mxu0 0.0
      %590 = vmatpush2.msra.mxu0 0.0
      %591 = vmatprep.subr.mxu0 0.0
      %592 = vmatpush2.msra.mxu0 0.0
      %593 = vmatprep.subr.mxu0 0.0
      %594 = vmatpush2.msra.mxu0 0.0
      %595 = vmatprep.subr.mxu0 0.0
      %596 = vmatpush2.msra.mxu0 0.0
      %597 = vmatprep.subr.mxu0 0.0
      %598 = vmatpush2.msra.mxu0 0.0
      %599 = vmatprep.subr.mxu0 0.0
      %600 = vmatpush2.msra.mxu0 0.0
      %601 = vmatprep.subr.mxu0 0.0
      %602 = vmatpush2.msra.mxu0 0.0
      %603 = vmatprep.subr.mxu0 0.0
      %604 = vmatpush2.msra.mxu0 0.0
      %605 = vmatprep.subr.mxu0 %v444
      %606 = vmatpush2.msra.mxu0 %v441
      %607 = vmatprep.subr.mxu0 %v359
      %608 = vmatpush2.msra.mxu0 %v358
      %609 = vmatprep.subr.mxu0 %v355
      %610 = vmatpush2.msra.mxu0 %v354
      %611 = vmatprep.subr.mxu0 %v351
      %612 = vmatpush2.msra.mxu0 %v350
      %613 = vmatprep.subr.mxu0 %v347
      %614 = vmatpush2.msra.mxu0 %v346
      %615 = vmatprep.subr.mxu0 %v343
      %616 = vmatpush2.msra.mxu0 %v342
      %617 = vmatprep.mubr.f32.mxu0 %v419
      %618 = vmatmul.mubr.f32.gmra.mxu0 %v383
      %v619 = vpop.f32.mrf.mxu0
      %v620 = vadd.f32 0.0, %v619
      %v621 = vpop.f32.mrf.mxu0
      %v622 = vadd.f32 0.0, %v621
      %623 = vmatprep.mubr.f32.mxu0 %v421
      %624 = vmatmul.mubr.f32.gmra.mxu0 %v388
      %v625 = vpop.f32.mrf.mxu0
      %v626 = vadd.f32 0.0, %v625
      %v627 = vpop.f32.mrf.mxu0
      %v628 = vadd.f32 0.0, %v627
      %629 = vmatprep.mubr.f32.mxu0 %v423
      %630 = vmatmul.mubr.f32.gmra.mxu0 %v392
      %v631 = vpop.f32.mrf.mxu0
      %v632 = vadd.f32 0.0, %v631
      %v633 = vpop.f32.mrf.mxu0
      %v634 = vadd.f32 0.0, %v633
      %635 = vmatprep.mubr.f32.mxu0 %v425
      %636 = vmatmul.mubr.f32.gmra.mxu0 %v396
      %v637 = vpop.f32.mrf.mxu0
      %v638 = vadd.f32 0.0, %v637
      %v639 = vpop.f32.mrf.mxu0
      %v640 = vadd.f32 0.0, %v639
      %641 = vmatprep.mubr.f32.mxu0 %v427
      %642 = vmatmul.mubr.f32.gmra.mxu0 %v400
      %v643 = vpop.f32.mrf.mxu0
      %v644 = vadd.f32 0.0, %v643
      %v645 = vpop.f32.mrf.mxu0
      %v646 = vadd.f32 0.0, %v645
      %647 = vmatprep.mubr.f32.mxu0 %v429
      %648 = vmatmul.mubr.f32.gmra.mxu0 %v404
      %v649 = vpop.f32.mrf.mxu0
      %v650 = vadd.f32 0.0, %v649
      %v651 = vpop.f32.mrf.mxu0
      %v652 = vadd.f32 0.0, %v651
      %653 = vmatprep.mubr.f32.mxu0 %v431
      %654 = vmatmul.mubr.f32.gmra.mxu0 %v408
      %v655 = vpop.f32.mrf.mxu0
      %v656 = vadd.f32 0.0, %v655
      %v657 = vpop.f32.mrf.mxu0
      %v658 = vadd.f32 0.0, %v657
      %659 = vdwg.mxu0
      %v660 = vsel %vm418, %v172, 0
      %v662 = vsel %vm418, %v174, 0
      %v664 = vsel %vm418, %v176, 0
      %v666 = vsel %vm418, %v178, 0
      %v668 = vsel %vm418, %v180, 0
      %v670 = vsel %vm418, %v182, 0
      %v672 = vsel %vm418, %v184, 0
      %v675 = vsel %vm433, %v271, 0
      %v678 = vsel %vm433, %v272, 0
      %v681 = vsel %vm433, %v273, 0
      %v684 = vsel %vm433, %v274, 0
      %686 = vmatprep.subr.mxu0 %v248
      %687 = vmatpush1.msra.mxu0 %v247
      %688 = vmatprep.subr.mxu0 %v244
      %689 = vmatpush1.msra.mxu0 %v243
      %690 = vmatprep.subr.mxu0 %v240
      %691 = vmatpush1.msra.mxu0 %v239
      %692 = vmatprep.subr.mxu0 %v236
      %693 = vmatpush1.msra.mxu0 %v235
      %694 = vmatprep.subr.mxu0 %v232
      %695 = vmatpush1.msra.mxu0 %v231
      %696 = vmatprep.subr.mxu0 %v228
      %697 = vmatpush1.msra.mxu0 %v227
      %698 = vmatprep.subr.mxu0 %v224
      %699 = vmatpush1.msra.mxu0 %v223
      %700 = vmatprep.subr.mxu0 %v220
      %701 = vmatpush1.msra.mxu0 %v219
      %702 = vmatprep.subr.mxu0 %v216
      %703 = vmatpush1.msra.mxu0 %v215
      %704 = vmatprep.subr.mxu0 %v212
      %705 = vmatpush1.msra.mxu0 %v211
      %706 = vmatprep.subr.mxu0 %v208
      %707 = vmatpush1.msra.mxu0 %v207
      %708 = vmatprep.subr.mxu0 %v204
      %709 = vmatpush1.msra.mxu0 %v203
      %710 = vmatprep.subr.mxu0 %v200
      %711 = vmatpush1.msra.mxu0 %v199
      %712 = vmatprep.subr.mxu0 %v196
      %713 = vmatpush1.msra.mxu0 %v195
      %714 = vmatprep.subr.mxu0 %v192
      %715 = vmatpush1.msra.mxu0 %v191
      %716 = vmatprep.subr.mxu0 %v188
      %717 = vmatpush1.msra.mxu0 %v187
      %718 = vmatprep.subr.mxu0 0.0
      %719 = vmatpush2.msra.mxu0 0.0
      %720 = vmatprep.subr.mxu0 0.0
      %721 = vmatpush2.msra.mxu0 0.0
      %722 = vmatprep.subr.mxu0 0.0
      %723 = vmatpush2.msra.mxu0 0.0
      %724 = vmatprep.subr.mxu0 0.0
      %725 = vmatpush2.msra.mxu0 0.0
      %726 = vmatprep.subr.mxu0 0.0
      %727 = vmatpush2.msra.mxu0 0.0
      %728 = vmatprep.subr.mxu0 0.0
      %729 = vmatpush2.msra.mxu0 0.0
      %730 = vmatprep.subr.mxu0 0.0
      %731 = vmatpush2.msra.mxu0 0.0
      %732 = vmatprep.subr.mxu0 0.0
      %733 = vmatpush2.msra.mxu0 0.0
      %734 = vmatprep.subr.mxu0 0.0
      %735 = vmatpush2.msra.mxu0 0.0
      %736 = vmatprep.subr.mxu0 0.0
      %737 = vmatpush2.msra.mxu0 0.0
      %738 = vmatprep.subr.mxu0 %v678
      %739 = vmatpush2.msra.mxu0 %v675
      %740 = vmatprep.subr.mxu0 %v268
      %741 = vmatpush2.msra.mxu0 %v267
      %742 = vmatprep.subr.mxu0 %v264
      %743 = vmatpush2.msra.mxu0 %v263
      %744 = vmatprep.subr.mxu0 %v260
      %745 = vmatpush2.msra.mxu0 %v259
      %746 = vmatprep.subr.mxu0 %v256
      %747 = vmatpush2.msra.mxu0 %v255
      %748 = vmatprep.subr.mxu0 %v252
      %749 = vmatpush2.msra.mxu0 %v251
      %750 = vmatprep.mubr.f32.mxu0 %v660
      %751 = vmatmul.mubr.f32.gmra.mxu0 %v171
      %v752 = vpop.f32.mrf.mxu0
      %v753 = vadd.f32 %v513, %v752
      %v754 = vpop.f32.mrf.mxu0
      %v755 = vadd.f32 %v515, %v754
      %756 = vmatprep.mubr.f32.mxu0 %v662
      %757 = vmatmul.mubr.f32.gmra.mxu0 %v173
      %v758 = vpop.f32.mrf.mxu0
      %v759 = vadd.f32 %v519, %v758
      %v760 = vpop.f32.mrf.mxu0
      %v761 = vadd.f32 %v521, %v760
      %762 = vmatprep.mubr.f32.mxu0 %v664
      %763 = vmatmul.mubr.f32.gmra.mxu0 %v175
      %v764 = vpop.f32.mrf.mxu0
      %v765 = vadd.f32 %v525, %v764
      %v766 = vpop.f32.mrf.mxu0
      %v767 = vadd.f32 %v527, %v766
      %768 = vmatprep.mubr.f32.mxu0 %v666
      %769 = vmatmul.mubr.f32.gmra.mxu0 %v177
      %v770 = vpop.f32.mrf.mxu0
      %v771 = vadd.f32 %v531, %v770
      %v772 = vpop.f32.mrf.mxu0
      %v773 = vadd.f32 %v533, %v772
      %774 = vmatprep.mubr.f32.mxu0 %v668
      %775 = vmatmul.mubr.f32.gmra.mxu0 %v179
      %v776 = vpop.f32.mrf.mxu0
      %v777 = vadd.f32 %v537, %v776
      %v778 = vpop.f32.mrf.mxu0
      %v779 = vadd.f32 %v539, %v778
      %780 = vmatprep.mubr.f32.mxu0 %v670
      %781 = vmatmul.mubr.f32.gmra.mxu0 %v181
      %v782 = vpop.f32.mrf.mxu0
      %v783 = vadd.f32 %v543, %v782
      %v784 = vpop.f32.mrf.mxu0
      %v785 = vadd.f32 %v545, %v784
      %786 = vmatprep.mubr.f32.mxu0 %v672
      %787 = vmatmul.mubr.f32.gmra.mxu0 %v183
      %v788 = vpop.f32.mrf.mxu0
      %v789 = vadd.f32 %v549, %v788
      %v790 = vpop.f32.mrf.mxu0
      %v791 = vadd.f32 %v551, %v790
      %792 = vdwg.mxu0
      %793 = vmatprep.subr.mxu0 %v250
      %794 = vmatpush1.msra.mxu0 %v249
      %795 = vmatprep.subr.mxu0 %v246
      %796 = vmatpush1.msra.mxu0 %v245
      %797 = vmatprep.subr.mxu0 %v242
      %798 = vmatpush1.msra.mxu0 %v241
      %799 = vmatprep.subr.mxu0 %v238
      %800 = vmatpush1.msra.mxu0 %v237
      %801 = vmatprep.subr.mxu0 %v234
      %802 = vmatpush1.msra.mxu0 %v233
      %803 = vmatprep.subr.mxu0 %v230
      %804 = vmatpush1.msra.mxu0 %v229
      %805 = vmatprep.subr.mxu0 %v226
      %806 = vmatpush1.msra.mxu0 %v225
      %807 = vmatprep.subr.mxu0 %v222
      %808 = vmatpush1.msra.mxu0 %v221
      %809 = vmatprep.subr.mxu0 %v218
      %810 = vmatpush1.msra.mxu0 %v217
      %811 = vmatprep.subr.mxu0 %v214
      %812 = vmatpush1.msra.mxu0 %v213
      %813 = vmatprep.subr.mxu0 %v210
      %814 = vmatpush1.msra.mxu0 %v209
      %815 = vmatprep.subr.mxu0 %v206
      %816 = vmatpush1.msra.mxu0 %v205
      %817 = vmatprep.subr.mxu0 %v202
      %818 = vmatpush1.msra.mxu0 %v201
      %819 = vmatprep.subr.mxu0 %v198
      %820 = vmatpush1.msra.mxu0 %v197
      %821 = vmatprep.subr.mxu0 %v194
      %822 = vmatpush1.msra.mxu0 %v193
      %823 = vmatprep.subr.mxu0 %v190
      %824 = vmatpush1.msra.mxu0 %v189
      %825 = vmatprep.subr.mxu0 0.0
      %826 = vmatpush2.msra.mxu0 0.0
      %827 = vmatprep.subr.mxu0 0.0
      %828 = vmatpush2.msra.mxu0 0.0
      %829 = vmatprep.subr.mxu0 0.0
      %830 = vmatpush2.msra.mxu0 0.0
      %831 = vmatprep.subr.mxu0 0.0
      %832 = vmatpush2.msra.mxu0 0.0
      %833 = vmatprep.subr.mxu0 0.0
      %834 = vmatpush2.msra.mxu0 0.0
      %835 = vmatprep.subr.mxu0 0.0
      %836 = vmatpush2.msra.mxu0 0.0
      %837 = vmatprep.subr.mxu0 0.0
      %838 = vmatpush2.msra.mxu0 0.0
      %839 = vmatprep.subr.mxu0 0.0
      %840 = vmatpush2.msra.mxu0 0.0
      %841 = vmatprep.subr.mxu0 0.0
      %842 = vmatpush2.msra.mxu0 0.0
      %843 = vmatprep.subr.mxu0 0.0
      %844 = vmatpush2.msra.mxu0 0.0
      %845 = vmatprep.subr.mxu0 %v684
      %846 = vmatpush2.msra.mxu0 %v681
      %847 = vmatprep.subr.mxu0 %v270
      %848 = vmatpush2.msra.mxu0 %v269
      %849 = vmatprep.subr.mxu0 %v266
      %850 = vmatpush2.msra.mxu0 %v265
      %851 = vmatprep.subr.mxu0 %v262
      %852 = vmatpush2.msra.mxu0 %v261
      %853 = vmatprep.subr.mxu0 %v258
      %854 = vmatpush2.msra.mxu0 %v257
      %855 = vmatprep.subr.mxu0 %v254
      %856 = vmatpush2.msra.mxu0 %v253
      %857 = vmatprep.mubr.f32.mxu0 %v660
      %858 = vmatmul.mubr.f32.gmra.mxu0 %v171
      %v859 = vpop.f32.mrf.mxu0
      %v860 = vadd.f32 %v620, %v859
      %v861 = vpop.f32.mrf.mxu0
      %v862 = vadd.f32 %v622, %v861
      %863 = vmatprep.mubr.f32.mxu0 %v662
      %864 = vmatmul.mubr.f32.gmra.mxu0 %v173
      %v865 = vpop.f32.mrf.mxu0
      %v866 = vadd.f32 %v626, %v865
      %v867 = vpop.f32.mrf.mxu0
      %v868 = vadd.f32 %v628, %v867
      %869 = vmatprep.mubr.f32.mxu0 %v664
      %870 = vmatmul.mubr.f32.gmra.mxu0 %v175
      %v871 = vpop.f32.mrf.mxu0
      %v872 = vadd.f32 %v632, %v871
      %v873 = vpop.f32.mrf.mxu0
      %v874 = vadd.f32 %v634, %v873
      %875 = vmatprep.mubr.f32.mxu0 %v666
      %876 = vmatmul.mubr.f32.gmra.mxu0 %v177
      %v877 = vpop.f32.mrf.mxu0
      %v878 = vadd.f32 %v638, %v877
      %v879 = vpop.f32.mrf.mxu0
      %v880 = vadd.f32 %v640, %v879
      %881 = vmatprep.mubr.f32.mxu0 %v668
      %882 = vmatmul.mubr.f32.gmra.mxu0 %v179
      %v883 = vpop.f32.mrf.mxu0
      %v884 = vadd.f32 %v644, %v883
      %v885 = vpop.f32.mrf.mxu0
      %v886 = vadd.f32 %v646, %v885
      %887 = vmatprep.mubr.f32.mxu0 %v670
      %888 = vmatmul.mubr.f32.gmra.mxu0 %v181
      %v889 = vpop.f32.mrf.mxu0
      %v890 = vadd.f32 %v650, %v889
      %v891 = vpop.f32.mrf.mxu0
      %v892 = vadd.f32 %v652, %v891
      %893 = vmatprep.mubr.f32.mxu0 %v672
      %894 = vmatmul.mubr.f32.gmra.mxu0 %v183
      %v895 = vpop.f32.mrf.mxu0
      %v896 = vadd.f32 %v656, %v895
      %v897 = vpop.f32.mrf.mxu0
      %v898 = vadd.f32 %v658, %v897
      %899 = vdwg.mxu0
      %s900 = scalar_lea.vmem %s1, 1408
      %v901 = vld [vmem:[%s900] sm:$0xff]
      %v902 = vld [vmem:[%s900 + $0x8] sm:$0xff]
      %v903 = vld [vmem:[%s900 + $0x10] sm:$0xff]
      %v904 = vld [vmem:[%s900 + $0x18] sm:$0xff]
      %v905 = vld [vmem:[%s900 + $0x20] sm:$0xff]
      %v906 = vld [vmem:[%s900 + $0x28] sm:$0xff]
      %v907 = vld [vmem:[%s900 + $0x30] sm:$0xff]
      %v908 = vld [vmem:[%s900 + $0x38] sm:$0xff]
      %v909 = vld [vmem:[%s900 + $0x40] sm:$0xff]
      %v910 = vld [vmem:[%s900 + $0x48] sm:$0xff]
      %v911 = vld [vmem:[%s900 + $0x50] sm:$0xff]
      %v912 = vld [vmem:[%s900 + $0x58] sm:$0xff]
      %v913 = vld [vmem:[%s900 + $0x60] sm:$0xff]
      %v914 = vld [vmem:[%s900 + $0x68] sm:$0xff]
      %v915 = vld [vmem:[%s900 + $0x70] sm:$0xff]
      %v916 = vld [vmem:[%s900 + $0x78] sm:$0xff]
      %v917 = vld [vmem:[%s900 + $0x80] sm:$0xff]
      %v918 = vld [vmem:[%s900 + $0x88] sm:$0xff]
      %v919 = vld [vmem:[%s900 + $0x90] sm:$0xff]
      %v920 = vld [vmem:[%s900 + $0x98] sm:$0xff]
      %v921 = vld [vmem:[%s900 + $0xa0] sm:$0xff]
      %v922 = vld [vmem:[%s900 + $0xa8] sm:$0xff]
      %v923 = vld [vmem:[%s900 + $0xb0] sm:$0xff]
      %v924 = vld [vmem:[%s900 + $0xb8] sm:$0xff]
      %v925 = vld [vmem:[%s900 + $0xc0] sm:$0xff]
      %v926 = vld [vmem:[%s900 + $0xc8] sm:$0xff]
      %v927 = vld [vmem:[%s900 + $0xd0] sm:$0xff]
      %v928 = vld [vmem:[%s900 + $0xd8] sm:$0xff]
      %v929 = vld [vmem:[%s900 + $0xe0] sm:$0xff]
      %v930 = vld [vmem:[%s900 + $0xe8] sm:$0xff]
      %v931 = vld [vmem:[%s900 + $0xf0] sm:$0xff]
      %v932 = vld [vmem:[%s900 + $0xf8] sm:$0xff]
      %v933 = vld [vmem:[%s900 + $0x100] sm:$0xff]
      %v934 = vld [vmem:[%s900 + $0x108] sm:$0xff]
      %v935 = vld [vmem:[%s900 + $0x110] sm:$0xff]
      %v936 = vld [vmem:[%s900 + $0x118] sm:$0xff]
      %v937 = vld [vmem:[%s900 + $0x120] sm:$0xff]
      %v938 = vld [vmem:[%s900 + $0x128] sm:$0xff]
      %v939 = vld [vmem:[%s900 + $0x130] sm:$0xff]
      %v940 = vld [vmem:[%s900 + $0x138] sm:$0xff]
      %v941 = vld [vmem:[%s900 + $0x140] sm:$0xff]
      %v942 = vld [vmem:[%s900 + $0x148] sm:$0xff]
      %v943 = vld [vmem:[%s900 + $0x150] sm:$0xff]
      %v944 = vld [vmem:[%s900 + $0x158] sm:$0xff]
      %v945 = vld [vmem:[%s900 + $0x160] sm:$0xff]
      %v946 = vld [vmem:[%s900 + $0x168] sm:$0xff]
      %v947 = vld [vmem:[%s900 + $0x170] sm:$0xff]
      %v948 = vld [vmem:[%s900 + $0x178] sm:$0xff]
      %v949 = vld [vmem:[%s900 + $0x180] sm:$0xff]
      %v950 = vld [vmem:[%s900 + $0x188] sm:$0xff]
      %v951 = vld [vmem:[%s900 + $0x190] sm:$0xff]
      %v952 = vld [vmem:[%s900 + $0x198] sm:$0xff]
      %v953 = vld [vmem:[%s900 + $0x1a0] sm:$0xff]
      %v954 = vld [vmem:[%s900 + $0x1a8] sm:$0xff]
      %v955 = vld [vmem:[%s900 + $0x1b0] sm:$0xff]
      %v956 = vld [vmem:[%s900 + $0x1b8] sm:$0xff]
      %v957 = vld [vmem:[%s900 + $0x1c0] sm:$0xff]
      %v958 = vld [vmem:[%s900 + $0x1c8] sm:$0xff]
      %v959 = vld [vmem:[%s900 + $0x1d0] sm:$0xff]
      %v960 = vld [vmem:[%s900 + $0x1d8] sm:$0xff]
      %v961 = vld [vmem:[%s900 + $0x1e0] sm:$0xff]
      %v962 = vld [vmem:[%s900 + $0x1e8] sm:$0xff]
      %v963 = vld [vmem:[%s900 + $0x1f0] sm:$0xff]
      %v964 = vld [vmem:[%s900 + $0x1f8] sm:$0xff]
      %v965 = vld [vmem:[%s900 + $0x200] sm:$0xff]
      %v966 = vld [vmem:[%s900 + $0x208] sm:$0xff]
      %v967 = vld [vmem:[%s900 + $0x210] sm:$0xff]
      %v968 = vld [vmem:[%s900 + $0x218] sm:$0xff]
      %v969 = vld [vmem:[%s900 + $0x220] sm:$0xff]
      %v970 = vld [vmem:[%s900 + $0x228] sm:$0xff]
      %v971 = vld [vmem:[%s900 + $0x230] sm:$0xff]
      %v972 = vld [vmem:[%s900 + $0x238] sm:$0xff]
      %v973 = vld [vmem:[%s900 + $0x240] sm:$0xff]
      %v974 = vld [vmem:[%s900 + $0x248] sm:$0xff]
      %v975 = vld [vmem:[%s900 + $0x250] sm:$0xff]
      %v976 = vld [vmem:[%s900 + $0x258] sm:$0xff]
      %v977 = vld [vmem:[%s900 + $0x260] sm:$0xff]
      %v978 = vld [vmem:[%s900 + $0x268] sm:$0xff]
      %v979 = vld [vmem:[%s900 + $0x270] sm:$0xff]
      %v980 = vld [vmem:[%s900 + $0x278] sm:$0xff]
      %v981 = vld [vmem:[%s900 + $0x280] sm:$0xff]
      %v982 = vld [vmem:[%s900 + $0x288] sm:$0xff]
      %v983 = vld [vmem:[%s900 + $0x290] sm:$0xff]
      %v984 = vld [vmem:[%s900 + $0x298] sm:$0xff]
      %v985 = vld [vmem:[%s900 + $0x2a0] sm:$0x3f]
      %v986 = vld [vmem:[%s900 + $0x2a8] sm:$0x3f]
      %v987 = vld [vmem:[%s900 + $0x2b0] sm:$0x3f]
      %v988 = vld [vmem:[%s900 + $0x2b8] sm:$0x3f]
      %v989 = vrot.slane %v171, 2
      %v990 = vrot.slane %v173, 2
      %v991 = vsel %vm433, %v989, %v990
      %v992 = vrot.slane %v172, 2
      %v993 = vrot.slane %v174, 2
      %v994 = vsel %vm433, %v992, %v993
      %v995 = vrot.slane %v175, 2
      %v996 = vsel %vm433, %v990, %v995
      %v997 = vrot.slane %v176, 2
      %v998 = vsel %vm433, %v993, %v997
      %v999 = vrot.slane %v177, 2
      %v1000 = vsel %vm433, %v995, %v999
      %v1001 = vrot.slane %v178, 2
      %v1002 = vsel %vm433, %v997, %v1001
      %v1003 = vrot.slane %v179, 2
      %v1004 = vsel %vm433, %v999, %v1003
      %v1005 = vrot.slane %v180, 2
      %v1006 = vsel %vm433, %v1001, %v1005
      %v1007 = vrot.slane %v181, 2
      %v1008 = vsel %vm433, %v1003, %v1007
      %v1009 = vrot.slane %v182, 2
      %v1010 = vsel %vm433, %v1005, %v1009
      %v1011 = vrot.slane %v183, 2
      %v1012 = vsel %vm433, %v1007, %v1011
      %v1013 = vrot.slane %v184, 2
      %v1014 = vsel %vm433, %v1009, %v1013
      %v1015 = vrot.slane %v185, 2
      %v1016 = vsel %vm433, %v1011, %v1015
      %v1017 = vrot.slane %v186, 2
      %v1018 = vsel %vm433, %v1013, %v1017
      %v1026 = vsel %vm418, %v994, 0
      %v1028 = vsel %vm418, %v998, 0
      %v1030 = vsel %vm418, %v1002, 0
      %v1032 = vsel %vm418, %v1006, 0
      %v1034 = vsel %vm418, %v1010, 0
      %v1036 = vsel %vm418, %v1014, 0
      %v1038 = vsel %vm418, %v1018, 0
      %v1041 = vsel %vm433, %v985, 0
      %v1044 = vsel %vm433, %v986, 0
      %v1047 = vsel %vm433, %v987, 0
      %v1050 = vsel %vm433, %v988, 0
      %1052 = vmatprep.subr.mxu0 %v962
      %1053 = vmatpush1.msra.mxu0 %v961
      %1054 = vmatprep.subr.mxu0 %v958
      %1055 = vmatpush1.msra.mxu0 %v957
      %1056 = vmatprep.subr.mxu0 %v954
      %1057 = vmatpush1.msra.mxu0 %v953
      %1058 = vmatprep.subr.mxu0 %v950
      %1059 = vmatpush1.msra.mxu0 %v949
      %1060 = vmatprep.subr.mxu0 %v946
      %1061 = vmatpush1.msra.mxu0 %v945
      %1062 = vmatprep.subr.mxu0 %v942
      %1063 = vmatpush1.msra.mxu0 %v941
      %1064 = vmatprep.subr.mxu0 %v938
      %1065 = vmatpush1.msra.mxu0 %v937
      %1066 = vmatprep.subr.mxu0 %v934
      %1067 = vmatpush1.msra.mxu0 %v933
      %1068 = vmatprep.subr.mxu0 %v930
      %1069 = vmatpush1.msra.mxu0 %v929
      %1070 = vmatprep.subr.mxu0 %v926
      %1071 = vmatpush1.msra.mxu0 %v925
      %1072 = vmatprep.subr.mxu0 %v922
      %1073 = vmatpush1.msra.mxu0 %v921
      %1074 = vmatprep.subr.mxu0 %v918
      %1075 = vmatpush1.msra.mxu0 %v917
      %1076 = vmatprep.subr.mxu0 %v914
      %1077 = vmatpush1.msra.mxu0 %v913
      %1078 = vmatprep.subr.mxu0 %v910
      %1079 = vmatpush1.msra.mxu0 %v909
      %1080 = vmatprep.subr.mxu0 %v906
      %1081 = vmatpush1.msra.mxu0 %v905
      %1082 = vmatprep.subr.mxu0 %v902
      %1083 = vmatpush1.msra.mxu0 %v901
      %1084 = vmatprep.subr.mxu0 0.0
      %1085 = vmatpush2.msra.mxu0 0.0
      %1086 = vmatprep.subr.mxu0 0.0
      %1087 = vmatpush2.msra.mxu0 0.0
      %1088 = vmatprep.subr.mxu0 0.0
      %1089 = vmatpush2.msra.mxu0 0.0
      %1090 = vmatprep.subr.mxu0 0.0
      %1091 = vmatpush2.msra.mxu0 0.0
      %1092 = vmatprep.subr.mxu0 0.0
      %1093 = vmatpush2.msra.mxu0 0.0
      %1094 = vmatprep.subr.mxu0 0.0
      %1095 = vmatpush2.msra.mxu0 0.0
      %1096 = vmatprep.subr.mxu0 0.0
      %1097 = vmatpush2.msra.mxu0 0.0
      %1098 = vmatprep.subr.mxu0 0.0
      %1099 = vmatpush2.msra.mxu0 0.0
      %1100 = vmatprep.subr.mxu0 0.0
      %1101 = vmatpush2.msra.mxu0 0.0
      %1102 = vmatprep.subr.mxu0 0.0
      %1103 = vmatpush2.msra.mxu0 0.0
      %1104 = vmatprep.subr.mxu0 %v1044
      %1105 = vmatpush2.msra.mxu0 %v1041
      %1106 = vmatprep.subr.mxu0 %v982
      %1107 = vmatpush2.msra.mxu0 %v981
      %1108 = vmatprep.subr.mxu0 %v978
      %1109 = vmatpush2.msra.mxu0 %v977
      %1110 = vmatprep.subr.mxu0 %v974
      %1111 = vmatpush2.msra.mxu0 %v973
      %1112 = vmatprep.subr.mxu0 %v970
      %1113 = vmatpush2.msra.mxu0 %v969
      %1114 = vmatprep.subr.mxu0 %v966
      %1115 = vmatpush2.msra.mxu0 %v965
      %1116 = vmatprep.mubr.f32.mxu0 %v1026
      %1117 = vmatmul.mubr.f32.gmra.mxu0 %v991
      %v1118 = vpop.f32.mrf.mxu0
      %v1119 = vadd.f32 0.0, %v1118
      %v1120 = vpop.f32.mrf.mxu0
      %v1121 = vadd.f32 0.0, %v1120
      %1122 = vmatprep.mubr.f32.mxu0 %v1028
      %1123 = vmatmul.mubr.f32.gmra.mxu0 %v996
      %v1124 = vpop.f32.mrf.mxu0
      %v1125 = vadd.f32 0.0, %v1124
      %v1126 = vpop.f32.mrf.mxu0
      %v1127 = vadd.f32 0.0, %v1126
      %1128 = vmatprep.mubr.f32.mxu0 %v1030
      %1129 = vmatmul.mubr.f32.gmra.mxu0 %v1000
      %v1130 = vpop.f32.mrf.mxu0
      %v1131 = vadd.f32 0.0, %v1130
      %v1132 = vpop.f32.mrf.mxu0
      %v1133 = vadd.f32 0.0, %v1132
      %1134 = vmatprep.mubr.f32.mxu0 %v1032
      %1135 = vmatmul.mubr.f32.gmra.mxu0 %v1004
      %v1136 = vpop.f32.mrf.mxu0
      %v1137 = vadd.f32 0.0, %v1136
      %v1138 = vpop.f32.mrf.mxu0
      %v1139 = vadd.f32 0.0, %v1138
      %1140 = vmatprep.mubr.f32.mxu0 %v1034
      %1141 = vmatmul.mubr.f32.gmra.mxu0 %v1008
      %v1142 = vpop.f32.mrf.mxu0
      %v1143 = vadd.f32 0.0, %v1142
      %v1144 = vpop.f32.mrf.mxu0
      %v1145 = vadd.f32 0.0, %v1144
      %1146 = vmatprep.mubr.f32.mxu0 %v1036
      %1147 = vmatmul.mubr.f32.gmra.mxu0 %v1012
      %v1148 = vpop.f32.mrf.mxu0
      %v1149 = vadd.f32 0.0, %v1148
      %v1150 = vpop.f32.mrf.mxu0
      %v1151 = vadd.f32 0.0, %v1150
      %1152 = vmatprep.mubr.f32.mxu0 %v1038
      %1153 = vmatmul.mubr.f32.gmra.mxu0 %v1016
      %v1154 = vpop.f32.mrf.mxu0
      %v1155 = vadd.f32 0.0, %v1154
      %v1156 = vpop.f32.mrf.mxu0
      %v1157 = vadd.f32 0.0, %v1156
      %1158 = vdwg.mxu0
      %1159 = vmatprep.subr.mxu0 %v964
      %1160 = vmatpush1.msra.mxu0 %v963
      %1161 = vmatprep.subr.mxu0 %v960
      %1162 = vmatpush1.msra.mxu0 %v959
      %1163 = vmatprep.subr.mxu0 %v956
      %1164 = vmatpush1.msra.mxu0 %v955
      %1165 = vmatprep.subr.mxu0 %v952
      %1166 = vmatpush1.msra.mxu0 %v951
      %1167 = vmatprep.subr.mxu0 %v948
      %1168 = vmatpush1.msra.mxu0 %v947
      %1169 = vmatprep.subr.mxu0 %v944
      %1170 = vmatpush1.msra.mxu0 %v943
      %1171 = vmatprep.subr.mxu0 %v940
      %1172 = vmatpush1.msra.mxu0 %v939
      %1173 = vmatprep.subr.mxu0 %v936
      %1174 = vmatpush1.msra.mxu0 %v935
      %1175 = vmatprep.subr.mxu0 %v932
      %1176 = vmatpush1.msra.mxu0 %v931
      %1177 = vmatprep.subr.mxu0 %v928
      %1178 = vmatpush1.msra.mxu0 %v927
      %1179 = vmatprep.subr.mxu0 %v924
      %1180 = vmatpush1.msra.mxu0 %v923
      %1181 = vmatprep.subr.mxu0 %v920
      %1182 = vmatpush1.msra.mxu0 %v919
      %1183 = vmatprep.subr.mxu0 %v916
      %1184 = vmatpush1.msra.mxu0 %v915
      %1185 = vmatprep.subr.mxu0 %v912
      %1186 = vmatpush1.msra.mxu0 %v911
      %1187 = vmatprep.subr.mxu0 %v908
      %1188 = vmatpush1.msra.mxu0 %v907
      %1189 = vmatprep.subr.mxu0 %v904
      %1190 = vmatpush1.msra.mxu0 %v903
      %1191 = vmatprep.subr.mxu0 0.0
      %1192 = vmatpush2.msra.mxu0 0.0
      %1193 = vmatprep.subr.mxu0 0.0
      %1194 = vmatpush2.msra.mxu0 0.0
      %1195 = vmatprep.subr.mxu0 0.0
      %1196 = vmatpush2.msra.mxu0 0.0
      %1197 = vmatprep.subr.mxu0 0.0
      %1198 = vmatpush2.msra.mxu0 0.0
      %1199 = vmatprep.subr.mxu0 0.0
      %1200 = vmatpush2.msra.mxu0 0.0
      %1201 = vmatprep.subr.mxu0 0.0
      %1202 = vmatpush2.msra.mxu0 0.0
      %1203 = vmatprep.subr.mxu0 0.0
      %1204 = vmatpush2.msra.mxu0 0.0
      %1205 = vmatprep.subr.mxu0 0.0
      %1206 = vmatpush2.msra.mxu0 0.0
      %1207 = vmatprep.subr.mxu0 0.0
      %1208 = vmatpush2.msra.mxu0 0.0
      %1209 = vmatprep.subr.mxu0 0.0
      %1210 = vmatpush2.msra.mxu0 0.0
      %1211 = vmatprep.subr.mxu0 %v1050
      %1212 = vmatpush2.msra.mxu0 %v1047
      %1213 = vmatprep.subr.mxu0 %v984
      %1214 = vmatpush2.msra.mxu0 %v983
      %1215 = vmatprep.subr.mxu0 %v980
      %1216 = vmatpush2.msra.mxu0 %v979
      %1217 = vmatprep.subr.mxu0 %v976
      %1218 = vmatpush2.msra.mxu0 %v975
      %1219 = vmatprep.subr.mxu0 %v972
      %1220 = vmatpush2.msra.mxu0 %v971
      %1221 = vmatprep.subr.mxu0 %v968
      %1222 = vmatpush2.msra.mxu0 %v967
      %1223 = vmatprep.mubr.f32.mxu0 %v1026
      %1224 = vmatmul.mubr.f32.gmra.mxu0 %v991
      %v1225 = vpop.f32.mrf.mxu0
      %v1226 = vadd.f32 0.0, %v1225
      %v1227 = vpop.f32.mrf.mxu0
      %v1228 = vadd.f32 0.0, %v1227
      %1229 = vmatprep.mubr.f32.mxu0 %v1028
      %1230 = vmatmul.mubr.f32.gmra.mxu0 %v996
      %v1231 = vpop.f32.mrf.mxu0
      %v1232 = vadd.f32 0.0, %v1231
      %v1233 = vpop.f32.mrf.mxu0
      %v1234 = vadd.f32 0.0, %v1233
      %1235 = vmatprep.mubr.f32.mxu0 %v1030
      %1236 = vmatmul.mubr.f32.gmra.mxu0 %v1000
      %v1237 = vpop.f32.mrf.mxu0
      %v1238 = vadd.f32 0.0, %v1237
      %v1239 = vpop.f32.mrf.mxu0
      %v1240 = vadd.f32 0.0, %v1239
      %1241 = vmatprep.mubr.f32.mxu0 %v1032
      %1242 = vmatmul.mubr.f32.gmra.mxu0 %v1004
      %v1243 = vpop.f32.mrf.mxu0
      %v1244 = vadd.f32 0.0, %v1243
      %v1245 = vpop.f32.mrf.mxu0
      %v1246 = vadd.f32 0.0, %v1245
      %1247 = vmatprep.mubr.f32.mxu0 %v1034
      %1248 = vmatmul.mubr.f32.gmra.mxu0 %v1008
      %v1249 = vpop.f32.mrf.mxu0
      %v1250 = vadd.f32 0.0, %v1249
      %v1251 = vpop.f32.mrf.mxu0
      %v1252 = vadd.f32 0.0, %v1251
      %1253 = vmatprep.mubr.f32.mxu0 %v1036
      %1254 = vmatmul.mubr.f32.gmra.mxu0 %v1012
      %v1255 = vpop.f32.mrf.mxu0
      %v1256 = vadd.f32 0.0, %v1255
      %v1257 = vpop.f32.mrf.mxu0
      %v1258 = vadd.f32 0.0, %v1257
      %1259 = vmatprep.mubr.f32.mxu0 %v1038
      %1260 = vmatmul.mubr.f32.gmra.mxu0 %v1016
      %v1261 = vpop.f32.mrf.mxu0
      %v1262 = vadd.f32 0.0, %v1261
      %v1263 = vpop.f32.mrf.mxu0
      %v1264 = vadd.f32 0.0, %v1263
      %1265 = vdwg.mxu0
      %v1266 = vadd.f32 %v753, %v1119
      %v1267 = vadd.f32 %v755, %v1121
      %v1268 = vadd.f32 %v860, %v1226
      %v1269 = vadd.f32 %v862, %v1228
      %v1270 = vadd.f32 %v759, %v1125
      %v1271 = vadd.f32 %v761, %v1127
      %v1272 = vadd.f32 %v866, %v1232
      %v1273 = vadd.f32 %v868, %v1234
      %v1274 = vadd.f32 %v765, %v1131
      %v1275 = vadd.f32 %v767, %v1133
      %v1276 = vadd.f32 %v872, %v1238
      %v1277 = vadd.f32 %v874, %v1240
      %v1278 = vadd.f32 %v771, %v1137
      %v1279 = vadd.f32 %v773, %v1139
      %v1280 = vadd.f32 %v878, %v1244
      %v1281 = vadd.f32 %v880, %v1246
      %v1282 = vadd.f32 %v777, %v1143
      %v1283 = vadd.f32 %v779, %v1145
      %v1284 = vadd.f32 %v884, %v1250
      %v1285 = vadd.f32 %v886, %v1252
      %v1286 = vadd.f32 %v783, %v1149
      %v1287 = vadd.f32 %v785, %v1151
      %v1288 = vadd.f32 %v890, %v1256
      %v1289 = vadd.f32 %v892, %v1258
      %v1290 = vadd.f32 %v789, %v1155
      %v1291 = vadd.f32 %v791, %v1157
      %v1292 = vadd.f32 %v896, %v1262
      %v1293 = vadd.f32 %v898, %v1264
      %v1294 = vld [vmem:[%s2] sm:$0xf]
      %v1296 = vlaneseq
      %v1297 = vshrl.u32 %v1296, 7
      %v1298 = vsub.s32 0, %v1297
      %v1299 = vrot.slane %v1294, %v1298
      %v1300 = vlaneseq
      %v1301 = vshrl.u32 %v1300, 7
      %v1302 = vsub.s32 1, %v1301
      %v1303 = vrot.slane %v1294, %v1302
      %v1304 = vlaneseq
      %v1305 = vshrl.u32 %v1304, 7
      %v1306 = vsub.s32 2, %v1305
      %v1307 = vrot.slane %v1294, %v1306
      %v1308 = vlaneseq
      %v1309 = vshrl.u32 %v1308, 7
      %v1310 = vsub.s32 3, %v1309
      %v1311 = vrot.slane %v1294, %v1310
      %v1316 = vadd.f32 %v1266, %v1299
      %v1317 = vadd.f32 %v1267, %v1303
      %v1318 = vadd.f32 %v1268, %v1307
      %v1319 = vadd.f32 %v1269, %v1311
      %v1320 = vadd.f32 %v1270, %v1299
      %v1321 = vadd.f32 %v1271, %v1303
      %v1322 = vadd.f32 %v1272, %v1307
      %v1323 = vadd.f32 %v1273, %v1311
      %v1324 = vadd.f32 %v1274, %v1299
      %v1325 = vadd.f32 %v1275, %v1303
      %v1326 = vadd.f32 %v1276, %v1307
      %v1327 = vadd.f32 %v1277, %v1311
      %v1328 = vadd.f32 %v1278, %v1299
      %v1329 = vadd.f32 %v1279, %v1303
      %v1330 = vadd.f32 %v1280, %v1307
      %v1331 = vadd.f32 %v1281, %v1311
      %v1332 = vadd.f32 %v1282, %v1299
      %v1333 = vadd.f32 %v1283, %v1303
      %v1334 = vadd.f32 %v1284, %v1307
      %v1335 = vadd.f32 %v1285, %v1311
      %v1336 = vadd.f32 %v1286, %v1299
      %v1337 = vadd.f32 %v1287, %v1303
      %v1338 = vadd.f32 %v1288, %v1307
      %v1339 = vadd.f32 %v1289, %v1311
      %v1340 = vadd.f32 %v1290, %v1299
      %v1341 = vadd.f32 %v1291, %v1303
      %v1342 = vadd.f32 %v1292, %v1307
      %v1343 = vadd.f32 %v1293, %v1311
      %v1344 = vmax.f32 %v1316, 0.0
      %v1345 = vmax.f32 %v1317, 0.0
      %v1346 = vmax.f32 %v1318, 0.0
      %v1347 = vmax.f32 %v1319, 0.0
      %v1348 = vmax.f32 %v1320, 0.0
      %v1349 = vmax.f32 %v1321, 0.0
      %v1350 = vmax.f32 %v1322, 0.0
      %v1351 = vmax.f32 %v1323, 0.0
      %v1352 = vmax.f32 %v1324, 0.0
      %v1353 = vmax.f32 %v1325, 0.0
      %v1354 = vmax.f32 %v1326, 0.0
      %v1355 = vmax.f32 %v1327, 0.0
      %v1356 = vmax.f32 %v1328, 0.0
      %v1357 = vmax.f32 %v1329, 0.0
      %v1358 = vmax.f32 %v1330, 0.0
      %v1359 = vmax.f32 %v1331, 0.0
      %v1360 = vmax.f32 %v1332, 0.0
      %v1361 = vmax.f32 %v1333, 0.0
      %v1362 = vmax.f32 %v1334, 0.0
      %v1363 = vmax.f32 %v1335, 0.0
      %v1364 = vmax.f32 %v1336, 0.0
      %v1365 = vmax.f32 %v1337, 0.0
      %v1366 = vmax.f32 %v1338, 0.0
      %v1367 = vmax.f32 %v1339, 0.0
      %v1368 = vmax.f32 %v1340, 0.0
      %v1369 = vmax.f32 %v1341, 0.0
      %v1370 = vmax.f32 %v1342, 0.0
      %v1371 = vmax.f32 %v1343, 0.0
      %1372 = vst [vmem:[%s170] sm:$0xff] %v1344
      %1373 = vst [vmem:[%s170 + $0x8] sm:$0xff] %v1345
      %1374 = vst [vmem:[%s170 + $0x10] sm:$0xff] %v1346
      %vm1375 = vcmask 523264
      %1376 = vst.msk [vmem:[%s170 + $0x18] sm:$0xff] %vm1375, %v1347
      %1377 = vst [vmem:[%s170 + $0x20] sm:$0xff] %v1348
      %1378 = vst [vmem:[%s170 + $0x28] sm:$0xff] %v1349
      %1379 = vst [vmem:[%s170 + $0x30] sm:$0xff] %v1350
      %1380 = vst.msk [vmem:[%s170 + $0x38] sm:$0xff] %vm1375, %v1351
      %1381 = vst [vmem:[%s170 + $0x40] sm:$0xff] %v1352
      %1382 = vst [vmem:[%s170 + $0x48] sm:$0xff] %v1353
      %1383 = vst [vmem:[%s170 + $0x50] sm:$0xff] %v1354
      %1384 = vst.msk [vmem:[%s170 + $0x58] sm:$0xff] %vm1375, %v1355
      %1385 = vst [vmem:[%s170 + $0x60] sm:$0xff] %v1356
      %1386 = vst [vmem:[%s170 + $0x68] sm:$0xff] %v1357
      %1387 = vst [vmem:[%s170 + $0x70] sm:$0xff] %v1358
      %1388 = vst.msk [vmem:[%s170 + $0x78] sm:$0xff] %vm1375, %v1359
      %1389 = vst [vmem:[%s170 + $0x80] sm:$0xff] %v1360
      %1390 = vst [vmem:[%s170 + $0x88] sm:$0xff] %v1361
      %1391 = vst [vmem:[%s170 + $0x90] sm:$0xff] %v1362
      %1392 = vst.msk [vmem:[%s170 + $0x98] sm:$0xff] %vm1375, %v1363
      %1393 = vst [vmem:[%s170 + $0xa0] sm:$0xff] %v1364
      %1394 = vst [vmem:[%s170 + $0xa8] sm:$0xff] %v1365
      %1395 = vst [vmem:[%s170 + $0xb0] sm:$0xff] %v1366
      %1396 = vst.msk [vmem:[%s170 + $0xb8] sm:$0xff] %vm1375, %v1367
      %1397 = vst [vmem:[%s170 + $0xc0] sm:$0xff] %v1368
      %1398 = vst [vmem:[%s170 + $0xc8] sm:$0xff] %v1369
      %1399 = vst [vmem:[%s170 + $0xd0] sm:$0xff] %v1370
      %1400 = vst.msk [vmem:[%s170 + $0xd8] sm:$0xff] %vm1375, %v1371
      %p1401 = scmp.lt.s32.totalorder %s14, 1
      %s1402 = scalar_select %p1401, %s14, 1
      %s1403 = smul.addr %s1402, 28
      %s1404 = smul.addr %s1403, 8
      %s1405 = scalar_lea.vmem %s3, %s1404
      // Predicated region
      $region33: #{vgg_forward_pallas.6} parent=31 // pred_check
        %p1406 = pneg %p100
      $region34: #{vgg_forward_pallas.6} parent=31 // pred_check_branch
        %1408 = sbr.rel (%p1406) target = $region36
      $region35: #{vgg_forward_pallas.6} parent=31 // pred_region
        _
      $region36: #{vgg_forward_pallas.6} parent=31 // pred_fallthru
        _
    $region32: #{vgg_forward_pallas.6} parent=5 // pred_fallthru
      _
    %p1409 = scmp.le.s32.totalorder 2, %s9
    // Predicated region
    $region37: #{vgg_forward_pallas.6} parent=5 // pred_check
      %p1410 = pneg %p1409
    $region38: #{vgg_forward_pallas.6} parent=5 // pred_check_branch
      %1412 = sbr.rel (%p1410) target = $region40
    $region39: #{vgg_forward_pallas.6} parent=5 // pred_region
      %s1413 = ssub.s32 %s9, 2
      // Predicated region
      $region41: #{vgg_forward_pallas.6} parent=39 // pred_check
        %p1414 = pneg %p106
      $region42: #{vgg_forward_pallas.6} parent=39 // pred_check_branch
        %1416 = sbr.rel (%p1414) target = $region44
      $region43: #{vgg_forward_pallas.6} parent=39 // pred_region
        %p1417 = scmp.lt.s32.totalorder %s15, 1
        %s1418 = scalar_select %p1417, %s15, 1
        %s1419 = smul.addr %s1418, 28
        %s1420 = smul.addr %s1419, 8
        %s1421 = scalar_lea.vmem %s3, %s1420
      $region44: #{vgg_forward_pallas.6} parent=39 // pred_fallthru
        _
    $region40: #{vgg_forward_pallas.6} parent=5 // pred_fallthru
      _
  $region6: #{vgg_forward_pallas.6} parent=0 // loop_footer
    %s13 = sadd.s32 1, %s9
  $region7: #{vgg_forward_pallas.6} parent=0 // loop_footer_branch
    %8 = sbr.rel target = $region3
  $region8: #{vgg_forward_pallas.6} parent=0 // loop_exit
    _

// kernel: vgg_forward_pallas.7
$region0: #{vgg_forward_pallas.7}
  #allocation0 [shape = 'u32[]', space=smem, size = 0x4, offset = 0x4, fixed_abs, tag = 'smem constant byte address 0x4 - core index']
  #allocation1 [shape = 'u32[144,128]{1,0:T(1,128)}', space=vmem, size = 0x12000, scoped, tag = 'internal scratch']
  %s0 = inlined_call_operand.vmem [shape: f32[2,56,28,16], index: 0, kind: input, shape index: {}]
  %s1 = inlined_call_operand.vmem [shape: f32[2,28,28,8], index: 1, kind: output, shape index: {}]
  %s2 = sld [smem:[#allocation0]]
  $region37: #{vgg_forward_pallas.7} parent=0
    _
  %s4 = ssub.s32 1, %s2
  %s5 = scalar_select 0, %s4, %s2
  loop: start=0, step=1, limit=58
  $region2: #{vgg_forward_pallas.7} parent=0 // loop_pre_header
    _
  $region3: #{vgg_forward_pallas.7} parent=0 // loop_header
    %s7 = sphi 0, %s11
    %p8 = scmp.ge.s32.totalorder %s7, 58
    %s14 = sphi 0, %s26
    %s15 = sphi 0, %s22
    %s16 = sphi 0, %s14
    %s17 = sphi 0, %s15
    %s18 = sphi 0, %s16
    %s19 = sphi 0, %s17
    %s31 = sphi 0, %s33
    %s34 = sphi 0, %s31
    %s35 = sphi 0, %s34
    %s51 = sphi 0, %s35
    %s59 = sphi 0, %s61
    %s62 = sphi 0, %s59
    %s63 = sphi 0, %s62
    %s79 = sphi 0, %s63
  $region4: #{vgg_forward_pallas.7} parent=0 // loop_header_branch
    %10 = sbr.rel (%p8) target = $region8
  $region5: #{vgg_forward_pallas.7} parent=0 // loop_body
    %s12 = ssub.s32 %s7, 1
    %s13 = ssub.s32 %s7, 2
    %s20 = sadd.s32 1, %s15
    %p21 = scmp.ge.s32.totalorder %s20, 28
    %s22 = scalar_select %p21, 0, %s20
    %s23 = sadd.s32 1, %s14
    %s24 = scalar_select %p21, %s23, %s14
    %p25 = scmp.ge.s32.totalorder %s24, 2
    %s26 = scalar_select %p25, 0, %s24
    %s27 = ssub.s32 %s14, %s26
    %s28 = ssub.s32 %s15, %s22
    %s29 = sor.u32 %s27, %s28
    %p30 = scmp.eq.s32.totalorder %s29, 0
    %s32 = sadd.s32 %s31, 1
    %s33 = scalar_select %p30, %s31, %s32
    %p36 = pneg %p30
    %p37 = scmp.eq.s32.totalorder %s7, 55
    %p38 = por %p36, %p37
    %p39 = scmp.ne.s32.totalorder %s31, %s34
    %p40 = scmp.eq.s32.totalorder %s7, 0
    %p41 = por %p39, %p40
    %p42 = scmp.ne.s32.totalorder %s31, %s34
    %p43 = scmp.eq.s32.totalorder %s12, 55
    %p44 = por %p42, %p43
    %p45 = scmp.ne.s32.totalorder %s34, %s35
    %p46 = scmp.eq.s32.totalorder %s12, 0
    %p47 = por %p45, %p46
    %p48 = scmp.ne.s32.totalorder %s34, %s35
    %p49 = scmp.eq.s32.totalorder %s13, 55
    %p50 = por %p48, %p49
    %p52 = scmp.ne.s32.totalorder %s35, %s51
    %p53 = scmp.eq.s32.totalorder %s13, 0
    %p54 = por %p52, %p53
    %s55 = ssub.s32 %s14, %s26
    %s56 = ssub.s32 %s15, %s22
    %s57 = sor.u32 %s55, %s56
    %p58 = scmp.eq.s32.totalorder %s57, 0
    %s60 = sadd.s32 %s59, 1
    %s61 = scalar_select %p58, %s59, %s60
    %p64 = pneg %p58
    %p65 = scmp.eq.s32.totalorder %s7, 55
    %p66 = por %p64, %p65
    %p67 = scmp.ne.s32.totalorder %s59, %s62
    %p68 = scmp.eq.s32.totalorder %s7, 0
    %p69 = por %p67, %p68
    %p70 = scmp.ne.s32.totalorder %s59, %s62
    %p71 = scmp.eq.s32.totalorder %s12, 55
    %p72 = por %p70, %p71
    %p73 = scmp.ne.s32.totalorder %s62, %s63
    %p74 = scmp.eq.s32.totalorder %s12, 0
    %p75 = por %p73, %p74
    %p76 = scmp.ne.s32.totalorder %s62, %s63
    %p77 = scmp.eq.s32.totalorder %s13, 55
    %p78 = por %p76, %p77
    %p80 = scmp.ne.s32.totalorder %s63, %s79
    %p81 = scmp.eq.s32.totalorder %s13, 0
    %p82 = por %p80, %p81
    %p83 = scmp.le.s32.totalorder 1, %s7
    %p84 = scmp.lt.s32.totalorder %s7, 57
    %p85 = pnand %p83, %p84
    %p86 = pneg %p85
    // Predicated region
    $region9: #{vgg_forward_pallas.7} parent=5 // pred_check
      _
    $region10: #{vgg_forward_pallas.7} parent=5 // pred_check_branch
      %88 = sbr.rel (%p85) target = $region12
    $region11: #{vgg_forward_pallas.7} parent=5 // pred_region
      %s89 = ssub.s32 %s7, 1
    $region12: #{vgg_forward_pallas.7} parent=5 // pred_fallthru
      _
    %p90 = scmp.lt.s32.totalorder %s7, 56
    // Predicated region
    $region13: #{vgg_forward_pallas.7} parent=5 // pred_check
      %p91 = pneg %p90
    $region14: #{vgg_forward_pallas.7} parent=5 // pred_check_branch
      %93 = sbr.rel (%p91) target = $region16
    $region15: #{vgg_forward_pallas.7} parent=5 // pred_region
      // Predicated region
      $region17: #{vgg_forward_pallas.7} parent=15 // pred_check
        %p94 = pneg %p41
      $region18: #{vgg_forward_pallas.7} parent=15 // pred_check_branch
        %96 = sbr.rel (%p94) target = $region20
      $region19: #{vgg_forward_pallas.7} parent=15 // pred_region
        %s97 = smul.u32 2, %s15
        %p98 = scmp.lt.s32.totalorder %s14, 1
        %s99 = scalar_select %p98, %s14, 1
        %p100 = scmp.lt.s32.totalorder %s97, 55
        %s101 = scalar_select %p100, %s97, 55
        %s102 = smul.addr %s101, 4
        %s103 = smul.addr %s99, 224
        %s104 = sadd.s32 %s102, %s103
        %s105 = smul.addr %s104, 8
        %s106 = scalar_lea.vmem %s0, %s105
        %s107 = smul.u32 2, %s15
      $region20: #{vgg_forward_pallas.7} parent=15 // pred_fallthru
        _
    $region16: #{vgg_forward_pallas.7} parent=5 // pred_fallthru
      _
    %p108 = scmp.le.s32.totalorder 1, %s7
    %p109 = scmp.lt.s32.totalorder %s7, 57
    %p110 = pnand %p108, %p109
    %p111 = pneg %p110
    // Predicated region
    $region21: #{vgg_forward_pallas.7} parent=5 // pred_check
      _
    $region22: #{vgg_forward_pallas.7} parent=5 // pred_check_branch
      %113 = sbr.rel (%p110) target = $region24
    $region23: #{vgg_forward_pallas.7} parent=5 // pred_region
      %s114 = ssub.s32 %s7, 1
      %s115 = smul.u32 2, %s17
      %p116 = scmp.lt.s32.totalorder %s16, 1
      %s117 = scalar_select %p116, %s16, 1
      %p118 = scmp.lt.s32.totalorder %s115, 55
      %s119 = scalar_select %p118, %s115, 55
      %s120 = smul.addr %s119, 4
      %s121 = smul.addr %s117, 224
      %s122 = sadd.s32 %s120, %s121
      %s123 = smul.addr %s122, 8
      %s124 = scalar_lea.vmem %s0, %s123
      %p125 = pneg %p47
      %p126 = pneg %p44
      %p127 = pneg %p75
      %p128 = pneg %p72
      %p129 = scmp.lt.s32.totalorder %s16, 1
      %s130 = scalar_select %p129, %s16, 1
      %p131 = scmp.lt.s32.totalorder %s17, 27
      %s132 = scalar_select %p131, %s17, 27
      %s133 = smul.addr %s132, 4
      %s134 = smul.addr %s130, 112
      %s135 = sadd.s32 %s133, %s134
      %s136 = smul.addr %s135, 8
      %s137 = scalar_lea.vmem %s1, %s136
      %s138 = smul.u32 2, %s17
      %p139 = scmp.lt.s32.totalorder %s16, 1
      %s140 = scalar_select %p139, %s16, 1
      %p141 = scmp.lt.s32.totalorder %s138, 55
      %s142 = scalar_select %p141, %s138, 55
      %s143 = smul.addr %s142, 4
      %s144 = smul.addr %s140, 224
      %s145 = sadd.s32 %s143, %s144
      %s146 = smul.addr %s145, 8
      %s147 = scalar_lea.vmem %s0, %s146
      %s148 = smul.u32 2, %s17
      %p149 = scmp.lt.s32.totalorder %s16, 1
      %s150 = scalar_select %p149, %s16, 1
      %p151 = scmp.lt.s32.totalorder %s17, 27
      %s152 = scalar_select %p151, %s17, 27
      %s153 = smul.addr %s152, 4
      %s154 = smul.addr %s150, 112
      %s155 = sadd.s32 %s153, %s154
      %s156 = smul.addr %s155, 8
      %s157 = scalar_lea.vmem %s1, %s156
      %v158 = vld [vmem:[%s147] sm:$0xff]
      %v159 = vld [vmem:[%s147 + $0x8] sm:$0xff]
      %v160 = vld [vmem:[%s147 + $0x10] sm:$0xff]
      %v161 = vld [vmem:[%s147 + $0x18] sm:$0xf]
      %s162 = scalar_lea.vmem %s147, 32
      %v163 = vld [vmem:[%s162] sm:$0xff]
      %v164 = vld [vmem:[%s162 + $0x8] sm:$0xff]
      %v165 = vld [vmem:[%s162 + $0x10] sm:$0xff]
      %v166 = vld [vmem:[%s162 + $0x18] sm:$0xf]
      %v167 = vmax.f32 %v158, %v163
      %v168 = vmax.f32 %v159, %v164
      %v169 = vmax.f32 %v160, %v165
      %v170 = vmax.f32 %v161, %v166
      %175 = vrot.lane.b32.xlu0 %v167, 120
      %v176 = vpop.permute.xlu0 %175
      %177 = vrot.lane.b32.xlu0 %v168, 120
      %v178 = vpop.permute.xlu0 %177
      %179 = vrot.lane.b32.xlu0 %v169, 120
      %v180 = vpop.permute.xlu0 %179
      %181 = vrot.lane.b32.xlu0 %v170, 120
      %v182 = vpop.permute.xlu0 %181
      %v187 = vmax.f32 %v167, %v176
      %v188 = vmax.f32 %v168, %v178
      %v189 = vmax.f32 %v169, %v180
      %v190 = vmax.f32 %v170, %v182
      %vm191 = vcmask 64512
      %192 = vst.msk [vmem:[%s157] sm:$0xff] %vm191, %v187
      %193 = vst.msk [vmem:[%s157 + $0x8] sm:$0xff] %vm191, %v188
      %194 = vst.msk [vmem:[%s157 + $0x10] sm:$0xff] %vm191, %v189
      %vm195 = vcmask 60416
      %196 = vst.msk [vmem:[%s157 + $0x18] sm:$0xf] %vm195, %v190
      %p197 = scmp.lt.s32.totalorder %s16, 1
      %s198 = scalar_select %p197, %s16, 1
      %p199 = scmp.lt.s32.totalorder %s17, 27
      %s200 = scalar_select %p199, %s17, 27
      %s201 = smul.addr %s200, 4
      %s202 = smul.addr %s198, 112
      %s203 = sadd.s32 %s201, %s202
      %s204 = smul.addr %s203, 8
      %s205 = scalar_lea.vmem %s1, %s204
      // Predicated region
      $region25: #{vgg_forward_pallas.7} parent=23 // pred_check
        %p206 = pneg %p72
      $region26: #{vgg_forward_pallas.7} parent=23 // pred_check_branch
        %208 = sbr.rel (%p206) target = $region28
      $region27: #{vgg_forward_pallas.7} parent=23 // pred_region
        _
      $region28: #{vgg_forward_pallas.7} parent=23 // pred_fallthru
        _
    $region24: #{vgg_forward_pallas.7} parent=5 // pred_fallthru
      _
    %p209 = scmp.le.s32.totalorder 2, %s7
    // Predicated region
    $region29: #{vgg_forward_pallas.7} parent=5 // pred_check
      %p210 = pneg %p209
    $region30: #{vgg_forward_pallas.7} parent=5 // pred_check_branch
      %212 = sbr.rel (%p210) target = $region32
    $region31: #{vgg_forward_pallas.7} parent=5 // pred_region
      %s213 = ssub.s32 %s7, 2
      // Predicated region
      $region33: #{vgg_forward_pallas.7} parent=31 // pred_check
        %p214 = pneg %p78
      $region34: #{vgg_forward_pallas.7} parent=31 // pred_check_branch
        %216 = sbr.rel (%p214) target = $region36
      $region35: #{vgg_forward_pallas.7} parent=31 // pred_region
        %p217 = scmp.lt.s32.totalorder %s18, 1
        %s218 = scalar_select %p217, %s18, 1
        %p219 = scmp.lt.s32.totalorder %s19, 27
        %s220 = scalar_select %p219, %s19, 27
        %s221 = smul.addr %s220, 4
        %s222 = smul.addr %s218, 112
        %s223 = sadd.s32 %s221, %s222
        %s224 = smul.addr %s223, 8
        %s225 = scalar_lea.vmem %s1, %s224
      $region36: #{vgg_forward_pallas.7} parent=31 // pred_fallthru
        _
    $region32: #{vgg_forward_pallas.7} parent=5 // pred_fallthru
      _
  $region6: #{vgg_forward_pallas.7} parent=0 // loop_footer
    %s11 = sadd.s32 1, %s7
  $region7: #{vgg_forward_pallas.7} parent=0 // loop_footer_branch
    %6 = sbr.rel target = $region3
  $region8: #{vgg_forward_pallas.7} parent=0 // loop_exit
    _

// kernel: tile.18
$region0: #{tile.18}
  #allocation0 [shape = 's32[1]{0}', space=sflag, size = 0x4, scoped, tag = 'scoped memory for tile.18']
  %s0 = inlined_call_operand.vmem [shape: f32[16], index: 0, kind: input, shape index: {}]
  %s1 = inlined_call_operand.vmem [shape: f32[28,16], index: 1, kind: output, shape index: {}]
  // Predicated region
  $region2: #{tile.18} parent=0 // pred_check
    _
  $region3: #{tile.18} parent=0 // pred_check_branch
    %3 = sbr.rel (0) target = $region5
  $region4: #{tile.18} parent=0 // pred_region
    _
  $region5: #{tile.18} parent=0 // pred_fallthru
    _
  %v4 = vld [vmem:[%s0] ss:$0 sm:$0xff]
  %5 = vst [vmem:[%s1] sm:$0xff] %v4
  %s6 = scalar_lea.vmem %s1, 8
  %7 = vst [vmem:[%s6] sm:$0xff] %v4
  %s8 = scalar_lea.vmem %s1, 16
  %9 = vst [vmem:[%s8] sm:$0xff] %v4
  %s10 = scalar_lea.vmem %s1, 24
  %11 = vst [vmem:[%s10] sm:$0xff] %v4

// kernel: tile.19
$region0: #{tile.19}
  %s0 = inlined_call_operand.vmem [shape: f32[28,16], index: 0, kind: input, shape index: {}]
  %s1 = inlined_call_operand.vmem [shape: f32[1,448], index: 1, kind: output, shape index: {}]
  $region1: #{tile.19} parent=0
    #allocation0 [shape = 'u8[16384]{0}', space=vmem, size = 0x4000, scoped, tag = 'scoped mem for output reshape']
    %v2 = vld [vmem:[%s0] ss:$8 sm:$0xf]
    %vm3 = vcmask 130048
    %4 = vst.msk [vmem:[#allocation0] ss:$8 sm:$0xf] %vm3, %v2
    %s5 = scalar_lea.vmem %s0, 7
    %v6 = vld [vmem:[%s5] ss:$8 sm:$0x7]
    %7 = vrot.lane.b32.xlu0 %v6, 112
    %v8 = vpop.permute.xlu0 %7
    %vm9 = vcmask 1048448
    %10 = vst.msk [vmem:[#allocation0] ss:$8 sm:$0x7] %vm9, %v8
    %s11 = scalar_lea.vmem %s0, 6
    %v12 = vld [vmem:[%s11] ss:$8 sm:$0x7]
    %13 = vrot.lane.b32.xlu0 %v12, 96
    %v14 = vpop.permute.xlu0 %13
    %vm15 = vcmask 917248
    %16 = vst.msk [vmem:[#allocation0] ss:$8 sm:$0x7] %vm15, %v14
    %s17 = scalar_lea.vmem %s0, 5
    %v18 = vld [vmem:[%s17] ss:$8 sm:$0x7]
    %19 = vrot.lane.b32.xlu0 %v18, 80
    %v20 = vpop.permute.xlu0 %19
    %vm21 = vcmask 786048
    %22 = vst.msk [vmem:[#allocation0] ss:$8 sm:$0x7] %vm21, %v20
    %s23 = scalar_lea.vmem %s0, 4
    %v24 = vld [vmem:[%s23] ss:$8 sm:$0x7]
    %25 = vrot.lane.b32.xlu0 %v24, 64
    %v26 = vpop.permute.xlu0 %25
    %vm27 = vcmask 654848
    %28 = vst.msk [vmem:[#allocation0] ss:$8 sm:$0x7] %vm27, %v26
    %s29 = scalar_lea.vmem %s0, 3
    %v30 = vld [vmem:[%s29] ss:$8 sm:$0xf]
    %31 = vrot.lane.b32.xlu0 %v30, 48
    %v32 = vpop.permute.xlu0 %31
    %vm33 = vcmask 523648
    %34 = vst.msk [vmem:[#allocation0] ss:$8 sm:$0xf] %vm33, %v32
    %s35 = scalar_lea.vmem %s0, 2
    %v36 = vld [vmem:[%s35] ss:$8 sm:$0xf]
    %37 = vrot.lane.b32.xlu0 %v36, 32
    %v38 = vpop.permute.xlu0 %37
    %vm39 = vcmask 392448
    %40 = vst.msk [vmem:[#allocation0] ss:$8 sm:$0xf] %vm39, %v38
    %s41 = scalar_lea.vmem %s0, 1
    %v42 = vld [vmem:[%s41] ss:$8 sm:$0xf]
    %43 = vrot.lane.b32.xlu0 %v42, 16
    %v44 = vpop.permute.xlu0 %43
    %vm45 = vcmask 261248
    %46 = vst.msk [vmem:[#allocation0] ss:$8 sm:$0xf] %vm45, %v44
    %s48 = sshll.u32 1, 1
    %s49 = ssub.s32 %s48, 1
    %v51 = vld [vmem:[#allocation0] sm:%s49]
    %s52 = sshll.u32 1, 1
    %s53 = ssub.s32 %s52, 1
    %54 = vst [vmem:[%s1] sm:%s53] %v51
    %s55 = scalar_lea.vmem [#allocation0], 8
    %v56 = vld [vmem:[%s55] sm:%s49]
    %s57 = sshll.u32 1, 1
    %s58 = ssub.s32 %s57, 1
    %s59 = scalar_lea.vmem %s1, 1
    %60 = vst [vmem:[%s59] sm:%s58] %v56
    %s61 = scalar_lea.vmem [#allocation0], 16
    %v62 = vld [vmem:[%s61] sm:%s49]
    %s63 = sshll.u32 1, 1
    %s64 = ssub.s32 %s63, 1
    %s65 = smul.addr 1, 2
    %s66 = scalar_lea.vmem %s1, %s65
    %67 = vst [vmem:[%s66] sm:%s64] %v62
    %s68 = scalar_lea.vmem [#allocation0], 24
    %v69 = vld [vmem:[%s68] sm:%s49]
    %s70 = sshll.u32 1, 1
    %s71 = ssub.s32 %s70, 1
    %s72 = smul.addr 1, 3
    %s73 = scalar_lea.vmem %s1, %s72
    %74 = vst [vmem:[%s73] sm:%s71] %v69

// kernel: vgg_forward_pallas.8
$region0: #{vgg_forward_pallas.8}
  #allocation0 [shape = 'u32[]', space=smem, size = 0x4, offset = 0x4, fixed_abs, tag = 'smem constant byte address 0x4 - core index']
  #allocation1 [shape = 'u32[144,128]{1,0:T(1,128)}', space=vmem, size = 0x12000, scoped, tag = 'internal scratch']
  %s0 = inlined_call_operand.vmem [shape: f32[2,30,240], index: 0, kind: input, shape index: {}]
  %s1 = inlined_call_operand.vmem [shape: f32[3,240,448], index: 1, kind: input, shape index: {}]
  %s2 = inlined_call_operand.vmem [shape: f32[1,448], index: 2, kind: input, shape index: {}]
  %s3 = inlined_call_operand.vmem [shape: f32[2,28,448], index: 3, kind: output, shape index: {}]
  %s4 = sld [smem:[#allocation0]]
  $region45: #{vgg_forward_pallas.8} parent=0
    _
  %s6 = ssub.s32 1, %s4
  %s7 = scalar_select 0, %s6, %s4
  loop: start=0, step=1, limit=4
  $region2: #{vgg_forward_pallas.8} parent=0 // loop_pre_header
    _
  $region3: #{vgg_forward_pallas.8} parent=0 // loop_header
    %s9 = sphi 0, %s13
    %p10 = scmp.ge.s32.totalorder %s9, 4
    %s19 = sphi 0, %s21
    %s22 = sphi 0, %s19
    %s23 = sphi 0, %s22
    %s39 = sphi 0, %s23
    %s43 = sphi 0, %s43
    %s45 = sphi 0, %s43
    %s46 = sphi 0, %s45
    %s60 = sphi 0, %s46
    %s64 = sphi 0, %s64
    %s66 = sphi 0, %s64
    %s67 = sphi 0, %s66
    %s81 = sphi 0, %s67
    %s87 = sphi 0, %s89
    %s90 = sphi 0, %s87
    %s91 = sphi 0, %s90
    %s107 = sphi 0, %s91
  $region4: #{vgg_forward_pallas.8} parent=0 // loop_header_branch
    %12 = sbr.rel (%p10) target = $region8
  $region5: #{vgg_forward_pallas.8} parent=0 // loop_body
    %s14 = ssub.s32 %s9, 1
    %s15 = ssub.s32 %s9, 2
    %s16 = sadd.s32 %s9, 1
    %s17 = ssub.s32 %s9, %s16
    %p18 = scmp.eq.s32.totalorder %s17, 0
    %s20 = sadd.s32 %s19, 1
    %s21 = scalar_select %p18, %s19, %s20
    %p24 = pneg %p18
    %p25 = scmp.eq.s32.totalorder %s9, 1
    %p26 = por %p24, %p25
    %p27 = scmp.ne.s32.totalorder %s19, %s22
    %p28 = scmp.eq.s32.totalorder %s9, 0
    %p29 = por %p27, %p28
    %p30 = scmp.ne.s32.totalorder %s19, %s22
    %p31 = scmp.eq.s32.totalorder %s14, 1
    %p32 = por %p30, %p31
    %p33 = scmp.ne.s32.totalorder %s22, %s23
    %p34 = scmp.eq.s32.totalorder %s14, 0
    %p35 = por %p33, %p34
    %p36 = scmp.ne.s32.totalorder %s22, %s23
    %p37 = scmp.eq.s32.totalorder %s15, 1
    %p38 = por %p36, %p37
    %p40 = scmp.ne.s32.totalorder %s23, %s39
    %p41 = scmp.eq.s32.totalorder %s15, 0
    %p42 = por %p40, %p41
    %s44 = sadd.s32 %s43, 1
    %p47 = scmp.eq.s32.totalorder %s9, 1
    %p48 = scmp.ne.s32.totalorder %s43, %s45
    %p49 = scmp.eq.s32.totalorder %s9, 0
    %p50 = por %p48, %p49
    %p51 = scmp.ne.s32.totalorder %s43, %s45
    %p52 = scmp.eq.s32.totalorder %s14, 1
    %p53 = por %p51, %p52
    %p54 = scmp.ne.s32.totalorder %s45, %s46
    %p55 = scmp.eq.s32.totalorder %s14, 0
    %p56 = por %p54, %p55
    %p57 = scmp.ne.s32.totalorder %s45, %s46
    %p58 = scmp.eq.s32.totalorder %s15, 1
    %p59 = por %p57, %p58
    %p61 = scmp.ne.s32.totalorder %s46, %s60
    %p62 = scmp.eq.s32.totalorder %s15, 0
    %p63 = por %p61, %p62
    %s65 = sadd.s32 %s64, 1
    %p68 = scmp.eq.s32.totalorder %s9, 1
    %p69 = scmp.ne.s32.totalorder %s64, %s66
    %p70 = scmp.eq.s32.totalorder %s9, 0
    %p71 = por %p69, %p70
    %p72 = scmp.ne.s32.totalorder %s64, %s66
    %p73 = scmp.eq.s32.totalorder %s14, 1
    %p74 = por %p72, %p73
    %p75 = scmp.ne.s32.totalorder %s66, %s67
    %p76 = scmp.eq.s32.totalorder %s14, 0
    %p77 = por %p75, %p76
    %p78 = scmp.ne.s32.totalorder %s66, %s67
    %p79 = scmp.eq.s32.totalorder %s15, 1
    %p80 = por %p78, %p79
    %p82 = scmp.ne.s32.totalorder %s67, %s81
    %p83 = scmp.eq.s32.totalorder %s15, 0
    %p84 = por %p82, %p83
    %s85 = ssub.s32 %s9, %s16
    %p86 = scmp.eq.s32.totalorder %s85, 0
    %s88 = sadd.s32 %s87, 1
    %s89 = scalar_select %p86, %s87, %s88
    %p92 = pneg %p86
    %p93 = scmp.eq.s32.totalorder %s9, 1
    %p94 = por %p92, %p93
    %p95 = scmp.ne.s32.totalorder %s87, %s90
    %p96 = scmp.eq.s32.totalorder %s9, 0
    %p97 = por %p95, %p96
    %p98 = scmp.ne.s32.totalorder %s87, %s90
    %p99 = scmp.eq.s32.totalorder %s14, 1
    %p100 = por %p98, %p99
    %p101 = scmp.ne.s32.totalorder %s90, %s91
    %p102 = scmp.eq.s32.totalorder %s14, 0
    %p103 = por %p101, %p102
    %p104 = scmp.ne.s32.totalorder %s90, %s91
    %p105 = scmp.eq.s32.totalorder %s15, 1
    %p106 = por %p104, %p105
    %p108 = scmp.ne.s32.totalorder %s91, %s107
    %p109 = scmp.eq.s32.totalorder %s15, 0
    %p110 = por %p108, %p109
    %p111 = scmp.le.s32.totalorder 1, %s9
    %p112 = scmp.lt.s32.totalorder %s9, 3
    %p113 = pnand %p111, %p112
    %p114 = pneg %p113
    // Predicated region
    $region9: #{vgg_forward_pallas.8} parent=5 // pred_check
      _
    $region10: #{vgg_forward_pallas.8} parent=5 // pred_check_branch
      %116 = sbr.rel (%p113) target = $region12
    $region11: #{vgg_forward_pallas.8} parent=5 // pred_region
      %s117 = ssub.s32 %s9, 1
      // Predicated region
      $region13: #{vgg_forward_pallas.8} parent=11 // pred_check
        %p118 = pneg %p56
      $region14: #{vgg_forward_pallas.8} parent=11 // pred_check_branch
        %120 = sbr.rel (%p118) target = $region16
      $region15: #{vgg_forward_pallas.8} parent=11 // pred_region
        _
      $region16: #{vgg_forward_pallas.8} parent=11 // pred_fallthru
        _
      // Predicated region
      $region17: #{vgg_forward_pallas.8} parent=11 // pred_check
        %p121 = pneg %p77
      $region18: #{vgg_forward_pallas.8} parent=11 // pred_check_branch
        %123 = sbr.rel (%p121) target = $region20
      $region19: #{vgg_forward_pallas.8} parent=11 // pred_region
        _
      $region20: #{vgg_forward_pallas.8} parent=11 // pred_fallthru
        _
    $region12: #{vgg_forward_pallas.8} parent=5 // pred_fallthru
      _
    %p124 = scmp.lt.s32.totalorder %s9, 2
    // Predicated region
    $region21: #{vgg_forward_pallas.8} parent=5 // pred_check
      %p125 = pneg %p124
    $region22: #{vgg_forward_pallas.8} parent=5 // pred_check_branch
      %127 = sbr.rel (%p125) target = $region24
    $region23: #{vgg_forward_pallas.8} parent=5 // pred_region
      // Predicated region
      $region25: #{vgg_forward_pallas.8} parent=23 // pred_check
        %p128 = pneg %p29
      $region26: #{vgg_forward_pallas.8} parent=23 // pred_check_branch
        %130 = sbr.rel (%p128) target = $region28
      $region27: #{vgg_forward_pallas.8} parent=23 // pred_region
        %p131 = scmp.lt.s32.totalorder %s9, 1
        %s132 = scalar_select %p131, %s9, 1
        %s133 = smul.addr %s132, 8
        %s134 = smul.addr %s133, 8
        %s135 = scalar_lea.vmem %s0, %s134
      $region28: #{vgg_forward_pallas.8} parent=23 // pred_fallthru
        _
    $region24: #{vgg_forward_pallas.8} parent=5 // pred_fallthru
      _
    %p136 = scmp.le.s32.totalorder 1, %s9
    %p137 = scmp.lt.s32.totalorder %s9, 3
    %p138 = pnand %p136, %p137
    %p139 = pneg %p138
    // Predicated region
    $region29: #{vgg_forward_pallas.8} parent=5 // pred_check
      _
    $region30: #{vgg_forward_pallas.8} parent=5 // pred_check_branch
      %141 = sbr.rel (%p138) target = $region32
    $region31: #{vgg_forward_pallas.8} parent=5 // pred_region
      %s142 = ssub.s32 %s9, 1
      %p143 = scmp.lt.s32.totalorder %s14, 1
      %s144 = scalar_select %p143, %s14, 1
      %s145 = smul.addr %s144, 8
      %s146 = smul.addr %s145, 8
      %s147 = scalar_lea.vmem %s0, %s146
      %p148 = pneg %p35
      %p149 = pneg %p32
      %p150 = pneg %p56
      %p151 = pneg %p53
      %p152 = pneg %p77
      %p153 = pneg %p74
      %p154 = pneg %p103
      %p155 = pneg %p100
      %p156 = scmp.lt.s32.totalorder %s14, 1
      %s157 = scalar_select %p156, %s14, 1
      %s158 = smul.addr %s157, 16
      %s159 = smul.addr %s158, 8
      %s160 = scalar_lea.vmem %s3, %s159
      %p161 = scmp.lt.s32.totalorder %s14, 1
      %s162 = scalar_select %p161, %s14, 1
      %s163 = smul.addr %s162, 8
      %s164 = smul.addr %s163, 8
      %s165 = scalar_lea.vmem %s0, %s164
      %p166 = scmp.lt.s32.totalorder %s14, 1
      %s167 = scalar_select %p166, %s14, 1
      %s168 = smul.addr %s167, 16
      %s169 = smul.addr %s168, 8
      %s170 = scalar_lea.vmem %s3, %s169
      %v171 = vld [vmem:[%s165] sm:$0xff]
      %v172 = vld [vmem:[%s165 + $0x8] sm:$0xff]
      %v173 = vld [vmem:[%s165 + $0x10] sm:$0xff]
      %v174 = vld [vmem:[%s165 + $0x18] sm:$0xff]
      %v175 = vld [vmem:[%s165 + $0x20] sm:$0xff]
      %v176 = vld [vmem:[%s165 + $0x28] sm:$0xff]
      %v177 = vld [vmem:[%s165 + $0x30] sm:$0x3f]
      %v178 = vld [vmem:[%s165 + $0x38] sm:$0x3f]
      %v179 = vld [vmem:[%s1] sm:$0xff]
      %v180 = vld [vmem:[%s1 + $0x8] sm:$0xff]
      %v181 = vld [vmem:[%s1 + $0x10] sm:$0xff]
      %v182 = vld [vmem:[%s1 + $0x18] sm:$0xff]
      %v183 = vld [vmem:[%s1 + $0x20] sm:$0xff]
      %v184 = vld [vmem:[%s1 + $0x28] sm:$0xff]
      %v185 = vld [vmem:[%s1 + $0x30] sm:$0xff]
      %v186 = vld [vmem:[%s1 + $0x38] sm:$0xff]
      %v187 = vld [vmem:[%s1 + $0x40] sm:$0xff]
      %v188 = vld [vmem:[%s1 + $0x48] sm:$0xff]
      %v189 = vld [vmem:[%s1 + $0x50] sm:$0xff]
      %v190 = vld [vmem:[%s1 + $0x58] sm:$0xff]
      %v191 = vld [vmem:[%s1 + $0x60] sm:$0xff]
      %v192 = vld [vmem:[%s1 + $0x68] sm:$0xff]
      %v193 = vld [vmem:[%s1 + $0x70] sm:$0xff]
      %v194 = vld [vmem:[%s1 + $0x78] sm:$0xff]
      %v195 = vld [vmem:[%s1 + $0x80] sm:$0xff]
      %v196 = vld [vmem:[%s1 + $0x88] sm:$0xff]
      %v197 = vld [vmem:[%s1 + $0x90] sm:$0xff]
      %v198 = vld [vmem:[%s1 + $0x98] sm:$0xff]
      %v199 = vld [vmem:[%s1 + $0xa0] sm:$0xff]
      %v200 = vld [vmem:[%s1 + $0xa8] sm:$0xff]
      %v201 = vld [vmem:[%s1 + $0xb0] sm:$0xff]
      %v202 = vld [vmem:[%s1 + $0xb8] sm:$0xff]
      %v203 = vld [vmem:[%s1 + $0xc0] sm:$0xff]
      %v204 = vld [vmem:[%s1 + $0xc8] sm:$0xff]
      %v205 = vld [vmem:[%s1 + $0xd0] sm:$0xff]
      %v206 = vld [vmem:[%s1 + $0xd8] sm:$0xff]
      %v207 = vld [vmem:[%s1 + $0xe0] sm:$0xff]
      %v208 = vld [vmem:[%s1 + $0xe8] sm:$0xff]
      %v209 = vld [vmem:[%s1 + $0xf0] sm:$0xff]
      %v210 = vld [vmem:[%s1 + $0xf8] sm:$0xff]
      %v211 = vld [vmem:[%s1 + $0x100] sm:$0xff]
      %v212 = vld [vmem:[%s1 + $0x108] sm:$0xff]
      %v213 = vld [vmem:[%s1 + $0x110] sm:$0xff]
      %v214 = vld [vmem:[%s1 + $0x118] sm:$0xff]
      %v215 = vld [vmem:[%s1 + $0x120] sm:$0xff]
      %v216 = vld [vmem:[%s1 + $0x128] sm:$0xff]
      %v217 = vld [vmem:[%s1 + $0x130] sm:$0xff]
      %v218 = vld [vmem:[%s1 + $0x138] sm:$0xff]
      %v219 = vld [vmem:[%s1 + $0x140] sm:$0xff]
      %v220 = vld [vmem:[%s1 + $0x148] sm:$0xff]
      %v221 = vld [vmem:[%s1 + $0x150] sm:$0xff]
      %v222 = vld [vmem:[%s1 + $0x158] sm:$0xff]
      %v223 = vld [vmem:[%s1 + $0x160] sm:$0xff]
      %v224 = vld [vmem:[%s1 + $0x168] sm:$0xff]
      %v225 = vld [vmem:[%s1 + $0x170] sm:$0xff]
      %v226 = vld [vmem:[%s1 + $0x178] sm:$0xff]
      %v227 = vld [vmem:[%s1 + $0x180] sm:$0xff]
      %v228 = vld [vmem:[%s1 + $0x188] sm:$0xff]
      %v229 = vld [vmem:[%s1 + $0x190] sm:$0xff]
      %v230 = vld [vmem:[%s1 + $0x198] sm:$0xff]
      %v231 = vld [vmem:[%s1 + $0x1a0] sm:$0xff]
      %v232 = vld [vmem:[%s1 + $0x1a8] sm:$0xff]
      %v233 = vld [vmem:[%s1 + $0x1b0] sm:$0xff]
      %v234 = vld [vmem:[%s1 + $0x1b8] sm:$0xff]
      %v235 = vld [vmem:[%s1 + $0x1c0] sm:$0xff]
      %v236 = vld [vmem:[%s1 + $0x1c8] sm:$0xff]
      %v237 = vld [vmem:[%s1 + $0x1d0] sm:$0xff]
      %v238 = vld [vmem:[%s1 + $0x1d8] sm:$0xff]
      %v239 = vld [vmem:[%s1 + $0x1e0] sm:$0xff]
      %v240 = vld [vmem:[%s1 + $0x1e8] sm:$0xff]
      %v241 = vld [vmem:[%s1 + $0x1f0] sm:$0xff]
      %v242 = vld [vmem:[%s1 + $0x1f8] sm:$0xff]
      %v243 = vld [vmem:[%s1 + $0x200] sm:$0xff]
      %v244 = vld [vmem:[%s1 + $0x208] sm:$0xff]
      %v245 = vld [vmem:[%s1 + $0x210] sm:$0xff]
      %v246 = vld [vmem:[%s1 + $0x218] sm:$0xff]
      %v247 = vld [vmem:[%s1 + $0x220] sm:$0xff]
      %v248 = vld [vmem:[%s1 + $0x228] sm:$0xff]
      %v249 = vld [vmem:[%s1 + $0x230] sm:$0xff]
      %v250 = vld [vmem:[%s1 + $0x238] sm:$0xff]
      %v251 = vld [vmem:[%s1 + $0x240] sm:$0xff]
      %v252 = vld [vmem:[%s1 + $0x248] sm:$0xff]
      %v253 = vld [vmem:[%s1 + $0x250] sm:$0xff]
      %v254 = vld [vmem:[%s1 + $0x258] sm:$0xff]
      %v255 = vld [vmem:[%s1 + $0x260] sm:$0xff]
      %v256 = vld [vmem:[%s1 + $0x268] sm:$0xff]
      %v257 = vld [vmem:[%s1 + $0x270] sm:$0xff]
      %v258 = vld [vmem:[%s1 + $0x278] sm:$0xff]
      %v259 = vld [vmem:[%s1 + $0x280] sm:$0xff]
      %v260 = vld [vmem:[%s1 + $0x288] sm:$0xff]
      %v261 = vld [vmem:[%s1 + $0x290] sm:$0xff]
      %v262 = vld [vmem:[%s1 + $0x298] sm:$0xff]
      %v263 = vld [vmem:[%s1 + $0x2a0] sm:$0xff]
      %v264 = vld [vmem:[%s1 + $0x2a8] sm:$0xff]
      %v265 = vld [vmem:[%s1 + $0x2b0] sm:$0xff]
      %v266 = vld [vmem:[%s1 + $0x2b8] sm:$0xff]
      %v267 = vld [vmem:[%s1 + $0x2c0] sm:$0xff]
      %v268 = vld [vmem:[%s1 + $0x2c8] sm:$0xff]
      %v269 = vld [vmem:[%s1 + $0x2d0] sm:$0xff]
      %v270 = vld [vmem:[%s1 + $0x2d8] sm:$0xff]
      %v271 = vld [vmem:[%s1 + $0x2e0] sm:$0xff]
      %v272 = vld [vmem:[%s1 + $0x2e8] sm:$0xff]
      %v273 = vld [vmem:[%s1 + $0x2f0] sm:$0xff]
      %v274 = vld [vmem:[%s1 + $0x2f8] sm:$0xff]
      %v275 = vld [vmem:[%s1 + $0x300] sm:$0xff]
      %v276 = vld [vmem:[%s1 + $0x308] sm:$0xff]
      %v277 = vld [vmem:[%s1 + $0x310] sm:$0xff]
      %v278 = vld [vmem:[%s1 + $0x318] sm:$0xff]
      %v279 = vld [vmem:[%s1 + $0x320] sm:$0xff]
      %v280 = vld [vmem:[%s1 + $0x328] sm:$0xff]
      %v281 = vld [vmem:[%s1 + $0x330] sm:$0xff]
      %v282 = vld [vmem:[%s1 + $0x338] sm:$0xff]
      %v283 = vld [vmem:[%s1 + $0x340] sm:$0xff]
      %v284 = vld [vmem:[%s1 + $0x348] sm:$0xff]
      %v285 = vld [vmem:[%s1 + $0x350] sm:$0xff]
      %v286 = vld [vmem:[%s1 + $0x358] sm:$0xff]
      %v287 = vld [vmem:[%s1 + $0x360] sm:$0xff]
      %v288 = vld [vmem:[%s1 + $0x368] sm:$0xff]
      %v289 = vld [vmem:[%s1 + $0x370] sm:$0xff]
      %v290 = vld [vmem:[%s1 + $0x378] sm:$0xff]
      %v291 = vld [vmem:[%s1 + $0x380] sm:$0xff]
      %v292 = vld [vmem:[%s1 + $0x388] sm:$0xff]
      %v293 = vld [vmem:[%s1 + $0x390] sm:$0xff]
      %v294 = vld [vmem:[%s1 + $0x398] sm:$0xff]
      %v295 = vld [vmem:[%s1 + $0x3a0] sm:$0xff]
      %v296 = vld [vmem:[%s1 + $0x3a8] sm:$0xff]
      %v297 = vld [vmem:[%s1 + $0x3b0] sm:$0xff]
      %v298 = vld [vmem:[%s1 + $0x3b8] sm:$0xff]
      %s299 = scalar_lea.vmem %s1, 960
      %v300 = vld [vmem:[%s299] sm:$0xff]
      %v301 = vld [vmem:[%s299 + $0x8] sm:$0xff]
      %v302 = vld [vmem:[%s299 + $0x10] sm:$0xff]
      %v303 = vld [vmem:[%s299 + $0x18] sm:$0xff]
      %v304 = vld [vmem:[%s299 + $0x20] sm:$0xff]
      %v305 = vld [vmem:[%s299 + $0x28] sm:$0xff]
      %v306 = vld [vmem:[%s299 + $0x30] sm:$0xff]
      %v307 = vld [vmem:[%s299 + $0x38] sm:$0xff]
      %v308 = vld [vmem:[%s299 + $0x40] sm:$0xff]
      %v309 = vld [vmem:[%s299 + $0x48] sm:$0xff]
      %v310 = vld [vmem:[%s299 + $0x50] sm:$0xff]
      %v311 = vld [vmem:[%s299 + $0x58] sm:$0xff]
      %v312 = vld [vmem:[%s299 + $0x60] sm:$0xff]
      %v313 = vld [vmem:[%s299 + $0x68] sm:$0xff]
      %v314 = vld [vmem:[%s299 + $0x70] sm:$0xff]
      %v315 = vld [vmem:[%s299 + $0x78] sm:$0xff]
      %v316 = vld [vmem:[%s299 + $0x80] sm:$0xff]
      %v317 = vld [vmem:[%s299 + $0x88] sm:$0xff]
      %v318 = vld [vmem:[%s299 + $0x90] sm:$0xff]
      %v319 = vld [vmem:[%s299 + $0x98] sm:$0xff]
      %v320 = vld [vmem:[%s299 + $0xa0] sm:$0xff]
      %v321 = vld [vmem:[%s299 + $0xa8] sm:$0xff]
      %v322 = vld [vmem:[%s299 + $0xb0] sm:$0xff]
      %v323 = vld [vmem:[%s299 + $0xb8] sm:$0xff]
      %v324 = vld [vmem:[%s299 + $0xc0] sm:$0xff]
      %v325 = vld [vmem:[%s299 + $0xc8] sm:$0xff]
      %v326 = vld [vmem:[%s299 + $0xd0] sm:$0xff]
      %v327 = vld [vmem:[%s299 + $0xd8] sm:$0xff]
      %v328 = vld [vmem:[%s299 + $0xe0] sm:$0xff]
      %v329 = vld [vmem:[%s299 + $0xe8] sm:$0xff]
      %v330 = vld [vmem:[%s299 + $0xf0] sm:$0xff]
      %v331 = vld [vmem:[%s299 + $0xf8] sm:$0xff]
      %v332 = vld [vmem:[%s299 + $0x100] sm:$0xff]
      %v333 = vld [vmem:[%s299 + $0x108] sm:$0xff]
      %v334 = vld [vmem:[%s299 + $0x110] sm:$0xff]
      %v335 = vld [vmem:[%s299 + $0x118] sm:$0xff]
      %v336 = vld [vmem:[%s299 + $0x120] sm:$0xff]
      %v337 = vld [vmem:[%s299 + $0x128] sm:$0xff]
      %v338 = vld [vmem:[%s299 + $0x130] sm:$0xff]
      %v339 = vld [vmem:[%s299 + $0x138] sm:$0xff]
      %v340 = vld [vmem:[%s299 + $0x140] sm:$0xff]
      %v341 = vld [vmem:[%s299 + $0x148] sm:$0xff]
      %v342 = vld [vmem:[%s299 + $0x150] sm:$0xff]
      %v343 = vld [vmem:[%s299 + $0x158] sm:$0xff]
      %v344 = vld [vmem:[%s299 + $0x160] sm:$0xff]
      %v345 = vld [vmem:[%s299 + $0x168] sm:$0xff]
      %v346 = vld [vmem:[%s299 + $0x170] sm:$0xff]
      %v347 = vld [vmem:[%s299 + $0x178] sm:$0xff]
      %v348 = vld [vmem:[%s299 + $0x180] sm:$0xff]
      %v349 = vld [vmem:[%s299 + $0x188] sm:$0xff]
      %v350 = vld [vmem:[%s299 + $0x190] sm:$0xff]
      %v351 = vld [vmem:[%s299 + $0x198] sm:$0xff]
      %v352 = vld [vmem:[%s299 + $0x1a0] sm:$0xff]
      %v353 = vld [vmem:[%s299 + $0x1a8] sm:$0xff]
      %v354 = vld [vmem:[%s299 + $0x1b0] sm:$0xff]
      %v355 = vld [vmem:[%s299 + $0x1b8] sm:$0xff]
      %v356 = vld [vmem:[%s299 + $0x1c0] sm:$0xff]
      %v357 = vld [vmem:[%s299 + $0x1c8] sm:$0xff]
      %v358 = vld [vmem:[%s299 + $0x1d0] sm:$0xff]
      %v359 = vld [vmem:[%s299 + $0x1d8] sm:$0xff]
      %v360 = vld [vmem:[%s299 + $0x1e0] sm:$0xff]
      %v361 = vld [vmem:[%s299 + $0x1e8] sm:$0xff]
      %v362 = vld [vmem:[%s299 + $0x1f0] sm:$0xff]
      %v363 = vld [vmem:[%s299 + $0x1f8] sm:$0xff]
      %v364 = vld [vmem:[%s299 + $0x200] sm:$0xff]
      %v365 = vld [vmem:[%s299 + $0x208] sm:$0xff]
      %v366 = vld [vmem:[%s299 + $0x210] sm:$0xff]
      %v367 = vld [vmem:[%s299 + $0x218] sm:$0xff]
      %v368 = vld [vmem:[%s299 + $0x220] sm:$0xff]
      %v369 = vld [vmem:[%s299 + $0x228] sm:$0xff]
      %v370 = vld [vmem:[%s299 + $0x230] sm:$0xff]
      %v371 = vld [vmem:[%s299 + $0x238] sm:$0xff]
      %v372 = vld [vmem:[%s299 + $0x240] sm:$0xff]
      %v373 = vld [vmem:[%s299 + $0x248] sm:$0xff]
      %v374 = vld [vmem:[%s299 + $0x250] sm:$0xff]
      %v375 = vld [vmem:[%s299 + $0x258] sm:$0xff]
      %v376 = vld [vmem:[%s299 + $0x260] sm:$0xff]
      %v377 = vld [vmem:[%s299 + $0x268] sm:$0xff]
      %v378 = vld [vmem:[%s299 + $0x270] sm:$0xff]
      %v379 = vld [vmem:[%s299 + $0x278] sm:$0xff]
      %v380 = vld [vmem:[%s299 + $0x280] sm:$0xff]
      %v381 = vld [vmem:[%s299 + $0x288] sm:$0xff]
      %v382 = vld [vmem:[%s299 + $0x290] sm:$0xff]
      %v383 = vld [vmem:[%s299 + $0x298] sm:$0xff]
      %v384 = vld [vmem:[%s299 + $0x2a0] sm:$0xff]
      %v385 = vld [vmem:[%s299 + $0x2a8] sm:$0xff]
      %v386 = vld [vmem:[%s299 + $0x2b0] sm:$0xff]
      %v387 = vld [vmem:[%s299 + $0x2b8] sm:$0xff]
      %v388 = vld [vmem:[%s299 + $0x2c0] sm:$0xff]
      %v389 = vld [vmem:[%s299 + $0x2c8] sm:$0xff]
      %v390 = vld [vmem:[%s299 + $0x2d0] sm:$0xff]
      %v391 = vld [vmem:[%s299 + $0x2d8] sm:$0xff]
      %v392 = vld [vmem:[%s299 + $0x2e0] sm:$0xff]
      %v393 = vld [vmem:[%s299 + $0x2e8] sm:$0xff]
      %v394 = vld [vmem:[%s299 + $0x2f0] sm:$0xff]
      %v395 = vld [vmem:[%s299 + $0x2f8] sm:$0xff]
      %v396 = vld [vmem:[%s299 + $0x300] sm:$0xff]
      %v397 = vld [vmem:[%s299 + $0x308] sm:$0xff]
      %v398 = vld [vmem:[%s299 + $0x310] sm:$0xff]
      %v399 = vld [vmem:[%s299 + $0x318] sm:$0xff]
      %v400 = vld [vmem:[%s299 + $0x320] sm:$0xff]
      %v401 = vld [vmem:[%s299 + $0x328] sm:$0xff]
      %v402 = vld [vmem:[%s299 + $0x330] sm:$0xff]
      %v403 = vld [vmem:[%s299 + $0x338] sm:$0xff]
      %v404 = vld [vmem:[%s299 + $0x340] sm:$0xff]
      %v405 = vld [vmem:[%s299 + $0x348] sm:$0xff]
      %v406 = vld [vmem:[%s299 + $0x350] sm:$0xff]
      %v407 = vld [vmem:[%s299 + $0x358] sm:$0xff]
      %v408 = vld [vmem:[%s299 + $0x360] sm:$0xff]
      %v409 = vld [vmem:[%s299 + $0x368] sm:$0xff]
      %v410 = vld [vmem:[%s299 + $0x370] sm:$0xff]
      %v411 = vld [vmem:[%s299 + $0x378] sm:$0xff]
      %v412 = vld [vmem:[%s299 + $0x380] sm:$0xff]
      %v413 = vld [vmem:[%s299 + $0x388] sm:$0xff]
      %v414 = vld [vmem:[%s299 + $0x390] sm:$0xff]
      %v415 = vld [vmem:[%s299 + $0x398] sm:$0xff]
      %v416 = vld [vmem:[%s299 + $0x3a0] sm:$0xff]
      %v417 = vld [vmem:[%s299 + $0x3a8] sm:$0xff]
      %v418 = vld [vmem:[%s299 + $0x3b0] sm:$0xff]
      %v419 = vld [vmem:[%s299 + $0x3b8] sm:$0xff]
      %vm428 = vcmask 1046528
      %v429 = vrot.slane %v171, 1
      %v430 = vrot.slane %v173, 1
      %v431 = vsel %vm428, %v429, %v430
      %v432 = vrot.slane %v172, 1
      %v433 = vrot.slane %v174, 1
      %v434 = vsel %vm428, %v432, %v433
      %v435 = vrot.slane %v175, 1
      %v436 = vsel %vm428, %v430, %v435
      %v437 = vrot.slane %v176, 1
      %v438 = vsel %vm428, %v433, %v437
      %v439 = vrot.slane %v177, 1
      %v440 = vsel %vm428, %v435, %v439
      %v441 = vrot.slane %v178, 1
      %v442 = vsel %vm428, %v437, %v441
      %vm447 = vcmask 916480
      %v448 = vsel %vm447, %v434, 0
      %v450 = vsel %vm447, %v438, 0
      %v452 = vsel %vm447, %v442, 0
      %v454 = vsel %vm447, %v441, 0
      %456 = vmatprep.subr.mxu0 %v361
      %457 = vmatpush1.msra.mxu0 %v360
      %458 = vmatprep.subr.mxu0 %v357
      %459 = vmatpush1.msra.mxu0 %v356
      %460 = vmatprep.subr.mxu0 %v353
      %461 = vmatpush1.msra.mxu0 %v352
      %462 = vmatprep.subr.mxu0 %v349
      %463 = vmatpush1.msra.mxu0 %v348
      %464 = vmatprep.subr.mxu0 %v345
      %465 = vmatpush1.msra.mxu0 %v344
      %466 = vmatprep.subr.mxu0 %v341
      %467 = vmatpush1.msra.mxu0 %v340
      %468 = vmatprep.subr.mxu0 %v337
      %469 = vmatpush1.msra.mxu0 %v336
      %470 = vmatprep.subr.mxu0 %v333
      %471 = vmatpush1.msra.mxu0 %v332
      %472 = vmatprep.subr.mxu0 %v329
      %473 = vmatpush1.msra.mxu0 %v328
      %474 = vmatprep.subr.mxu0 %v325
      %475 = vmatpush1.msra.mxu0 %v324
      %476 = vmatprep.subr.mxu0 %v321
      %477 = vmatpush1.msra.mxu0 %v320
      %478 = vmatprep.subr.mxu0 %v317
      %479 = vmatpush1.msra.mxu0 %v316
      %480 = vmatprep.subr.mxu0 %v313
      %481 = vmatpush1.msra.mxu0 %v312
      %482 = vmatprep.subr.mxu0 %v309
      %483 = vmatpush1.msra.mxu0 %v308
      %484 = vmatprep.subr.mxu0 %v305
      %485 = vmatpush1.msra.mxu0 %v304
      %486 = vmatprep.subr.mxu0 %v301
      %487 = vmatpush1.msra.mxu0 %v300
      %488 = vmatprep.subr.mxu0 0.0
      %489 = vmatpush2.msra.mxu0 0.0
      %490 = vmatprep.subr.mxu0 0.0
      %491 = vmatpush2.msra.mxu0 0.0
      %492 = vmatprep.subr.mxu0 %v417
      %493 = vmatpush2.msra.mxu0 %v416
      %494 = vmatprep.subr.mxu0 %v413
      %495 = vmatpush2.msra.mxu0 %v412
      %496 = vmatprep.subr.mxu0 %v409
      %497 = vmatpush2.msra.mxu0 %v408
      %498 = vmatprep.subr.mxu0 %v405
      %499 = vmatpush2.msra.mxu0 %v404
      %500 = vmatprep.subr.mxu0 %v401
      %501 = vmatpush2.msra.mxu0 %v400
      %502 = vmatprep.subr.mxu0 %v397
      %503 = vmatpush2.msra.mxu0 %v396
      %504 = vmatprep.subr.mxu0 %v393
      %505 = vmatpush2.msra.mxu0 %v392
      %506 = vmatprep.subr.mxu0 %v389
      %507 = vmatpush2.msra.mxu0 %v388
      %508 = vmatprep.subr.mxu0 %v385
      %509 = vmatpush2.msra.mxu0 %v384
      %510 = vmatprep.subr.mxu0 %v381
      %511 = vmatpush2.msra.mxu0 %v380
      %512 = vmatprep.subr.mxu0 %v377
      %513 = vmatpush2.msra.mxu0 %v376
      %514 = vmatprep.subr.mxu0 %v373
      %515 = vmatpush2.msra.mxu0 %v372
      %516 = vmatprep.subr.mxu0 %v369
      %517 = vmatpush2.msra.mxu0 %v368
      %518 = vmatprep.subr.mxu0 %v365
      %519 = vmatpush2.msra.mxu0 %v364
      %520 = vmatprep.mubr.f32.mxu0 %v448
      %521 = vmatmul.mubr.f32.gmra.mxu0 %v431
      %v522 = vpop.f32.mrf.mxu0
      %v523 = vadd.f32 0.0, %v522
      %v524 = vpop.f32.mrf.mxu0
      %v525 = vadd.f32 0.0, %v524
      %526 = vmatprep.mubr.f32.mxu0 %v450
      %527 = vmatmul.mubr.f32.gmra.mxu0 %v436
      %v528 = vpop.f32.mrf.mxu0
      %v529 = vadd.f32 0.0, %v528
      %v530 = vpop.f32.mrf.mxu0
      %v531 = vadd.f32 0.0, %v530
      %532 = vmatprep.mubr.f32.mxu0 %v452
      %533 = vmatmul.mubr.f32.gmra.mxu0 %v440
      %v534 = vpop.f32.mrf.mxu0
      %v535 = vadd.f32 0.0, %v534
      %v536 = vpop.f32.mrf.mxu0
      %v537 = vadd.f32 0.0, %v536
      %538 = vmatprep.mubr.f32.mxu0 %v454
      %539 = vmatmul.mubr.f32.gmra.mxu0 %v439
      %v540 = vpop.f32.mrf.mxu0
      %v541 = vadd.f32 0.0, %v540
      %v542 = vpop.f32.mrf.mxu0
      %v543 = vadd.f32 0.0, %v542
      %544 = vdwg.mxu0
      %545 = vmatprep.subr.mxu0 %v363
      %546 = vmatpush1.msra.mxu0 %v362
      %547 = vmatprep.subr.mxu0 %v359
      %548 = vmatpush1.msra.mxu0 %v358
      %549 = vmatprep.subr.mxu0 %v355
      %550 = vmatpush1.msra.mxu0 %v354
      %551 = vmatprep.subr.mxu0 %v351
      %552 = vmatpush1.msra.mxu0 %v350
      %553 = vmatprep.subr.mxu0 %v347
      %554 = vmatpush1.msra.mxu0 %v346
      %555 = vmatprep.subr.mxu0 %v343
      %556 = vmatpush1.msra.mxu0 %v342
      %557 = vmatprep.subr.mxu0 %v339
      %558 = vmatpush1.msra.mxu0 %v338
      %559 = vmatprep.subr.mxu0 %v335
      %560 = vmatpush1.msra.mxu0 %v334
      %561 = vmatprep.subr.mxu0 %v331
      %562 = vmatpush1.msra.mxu0 %v330
      %563 = vmatprep.subr.mxu0 %v327
      %564 = vmatpush1.msra.mxu0 %v326
      %565 = vmatprep.subr.mxu0 %v323
      %566 = vmatpush1.msra.mxu0 %v322
      %567 = vmatprep.subr.mxu0 %v319
      %568 = vmatpush1.msra.mxu0 %v318
      %569 = vmatprep.subr.mxu0 %v315
      %570 = vmatpush1.msra.mxu0 %v314
      %571 = vmatprep.subr.mxu0 %v311
      %572 = vmatpush1.msra.mxu0 %v310
      %573 = vmatprep.subr.mxu0 %v307
      %574 = vmatpush1.msra.mxu0 %v306
      %575 = vmatprep.subr.mxu0 %v303
      %576 = vmatpush1.msra.mxu0 %v302
      %577 = vmatprep.subr.mxu0 0.0
      %578 = vmatpush2.msra.mxu0 0.0
      %579 = vmatprep.subr.mxu0 0.0
      %580 = vmatpush2.msra.mxu0 0.0
      %581 = vmatprep.subr.mxu0 %v419
      %582 = vmatpush2.msra.mxu0 %v418
      %583 = vmatprep.subr.mxu0 %v415
      %584 = vmatpush2.msra.mxu0 %v414
      %585 = vmatprep.subr.mxu0 %v411
      %586 = vmatpush2.msra.mxu0 %v410
      %587 = vmatprep.subr.mxu0 %v407
      %588 = vmatpush2.msra.mxu0 %v406
      %589 = vmatprep.subr.mxu0 %v403
      %590 = vmatpush2.msra.mxu0 %v402
      %591 = vmatprep.subr.mxu0 %v399
      %592 = vmatpush2.msra.mxu0 %v398
      %593 = vmatprep.subr.mxu0 %v395
      %594 = vmatpush2.msra.mxu0 %v394
      %595 = vmatprep.subr.mxu0 %v391
      %596 = vmatpush2.msra.mxu0 %v390
      %597 = vmatprep.subr.mxu0 %v387
      %598 = vmatpush2.msra.mxu0 %v386
      %599 = vmatprep.subr.mxu0 %v383
      %600 = vmatpush2.msra.mxu0 %v382
      %601 = vmatprep.subr.mxu0 %v379
      %602 = vmatpush2.msra.mxu0 %v378
      %603 = vmatprep.subr.mxu0 %v375
      %604 = vmatpush2.msra.mxu0 %v374
      %605 = vmatprep.subr.mxu0 %v371
      %606 = vmatpush2.msra.mxu0 %v370
      %607 = vmatprep.subr.mxu0 %v367
      %608 = vmatpush2.msra.mxu0 %v366
      %609 = vmatprep.mubr.f32.mxu0 %v448
      %610 = vmatmul.mubr.f32.gmra.mxu0 %v431
      %v611 = vpop.f32.mrf.mxu0
      %v612 = vadd.f32 0.0, %v611
      %v613 = vpop.f32.mrf.mxu0
      %v614 = vadd.f32 0.0, %v613
      %615 = vmatprep.mubr.f32.mxu0 %v450
      %616 = vmatmul.mubr.f32.gmra.mxu0 %v436
      %v617 = vpop.f32.mrf.mxu0
      %v618 = vadd.f32 0.0, %v617
      %v619 = vpop.f32.mrf.mxu0
      %v620 = vadd.f32 0.0, %v619
      %621 = vmatprep.mubr.f32.mxu0 %v452
      %622 = vmatmul.mubr.f32.gmra.mxu0 %v440
      %v623 = vpop.f32.mrf.mxu0
      %v624 = vadd.f32 0.0, %v623
      %v625 = vpop.f32.mrf.mxu0
      %v626 = vadd.f32 0.0, %v625
      %627 = vmatprep.mubr.f32.mxu0 %v454
      %628 = vmatmul.mubr.f32.gmra.mxu0 %v439
      %v629 = vpop.f32.mrf.mxu0
      %v630 = vadd.f32 0.0, %v629
      %v631 = vpop.f32.mrf.mxu0
      %v632 = vadd.f32 0.0, %v631
      %633 = vdwg.mxu0
      %v634 = vsel %vm447, %v172, 0
      %v636 = vsel %vm447, %v174, 0
      %v638 = vsel %vm447, %v176, 0
      %v640 = vsel %vm447, %v178, 0
      %642 = vmatprep.subr.mxu0 %v240
      %643 = vmatpush1.msra.mxu0 %v239
      %644 = vmatprep.subr.mxu0 %v236
      %645 = vmatpush1.msra.mxu0 %v235
      %646 = vmatprep.subr.mxu0 %v232
      %647 = vmatpush1.msra.mxu0 %v231
      %648 = vmatprep.subr.mxu0 %v228
      %649 = vmatpush1.msra.mxu0 %v227
      %650 = vmatprep.subr.mxu0 %v224
      %651 = vmatpush1.msra.mxu0 %v223
      %652 = vmatprep.subr.mxu0 %v220
      %653 = vmatpush1.msra.mxu0 %v219
      %654 = vmatprep.subr.mxu0 %v216
      %655 = vmatpush1.msra.mxu0 %v215
      %656 = vmatprep.subr.mxu0 %v212
      %657 = vmatpush1.msra.mxu0 %v211
      %658 = vmatprep.subr.mxu0 %v208
      %659 = vmatpush1.msra.mxu0 %v207
      %660 = vmatprep.subr.mxu0 %v204
      %661 = vmatpush1.msra.mxu0 %v203
      %662 = vmatprep.subr.mxu0 %v200
      %663 = vmatpush1.msra.mxu0 %v199
      %664 = vmatprep.subr.mxu0 %v196
      %665 = vmatpush1.msra.mxu0 %v195
      %666 = vmatprep.subr.mxu0 %v192
      %667 = vmatpush1.msra.mxu0 %v191
      %668 = vmatprep.subr.mxu0 %v188
      %669 = vmatpush1.msra.mxu0 %v187
      %670 = vmatprep.subr.mxu0 %v184
      %671 = vmatpush1.msra.mxu0 %v183
      %672 = vmatprep.subr.mxu0 %v180
      %673 = vmatpush1.msra.mxu0 %v179
      %674 = vmatprep.subr.mxu0 0.0
      %675 = vmatpush2.msra.mxu0 0.0
      %676 = vmatprep.subr.mxu0 0.0
      %677 = vmatpush2.msra.mxu0 0.0
      %678 = vmatprep.subr.mxu0 %v296
      %679 = vmatpush2.msra.mxu0 %v295
      %680 = vmatprep.subr.mxu0 %v292
      %681 = vmatpush2.msra.mxu0 %v291
      %682 = vmatprep.subr.mxu0 %v288
      %683 = vmatpush2.msra.mxu0 %v287
      %684 = vmatprep.subr.mxu0 %v284
      %685 = vmatpush2.msra.mxu0 %v283
      %686 = vmatprep.subr.mxu0 %v280
      %687 = vmatpush2.msra.mxu0 %v279
      %688 = vmatprep.subr.mxu0 %v276
      %689 = vmatpush2.msra.mxu0 %v275
      %690 = vmatprep.subr.mxu0 %v272
      %691 = vmatpush2.msra.mxu0 %v271
      %692 = vmatprep.subr.mxu0 %v268
      %693 = vmatpush2.msra.mxu0 %v267
      %694 = vmatprep.subr.mxu0 %v264
      %695 = vmatpush2.msra.mxu0 %v263
      %696 = vmatprep.subr.mxu0 %v260
      %697 = vmatpush2.msra.mxu0 %v259
      %698 = vmatprep.subr.mxu0 %v256
      %699 = vmatpush2.msra.mxu0 %v255
      %700 = vmatprep.subr.mxu0 %v252
      %701 = vmatpush2.msra.mxu0 %v251
      %702 = vmatprep.subr.mxu0 %v248
      %703 = vmatpush2.msra.mxu0 %v247
      %704 = vmatprep.subr.mxu0 %v244
      %705 = vmatpush2.msra.mxu0 %v243
      %706 = vmatprep.mubr.f32.mxu0 %v634
      %707 = vmatmul.mubr.f32.gmra.mxu0 %v171
      %v708 = vpop.f32.mrf.mxu0
      %v709 = vadd.f32 %v523, %v708
      %v710 = vpop.f32.mrf.mxu0
      %v711 = vadd.f32 %v525, %v710
      %712 = vmatprep.mubr.f32.mxu0 %v636
      %713 = vmatmul.mubr.f32.gmra.mxu0 %v173
      %v714 = vpop.f32.mrf.mxu0
      %v715 = vadd.f32 %v529, %v714
      %v716 = vpop.f32.mrf.mxu0
      %v717 = vadd.f32 %v531, %v716
      %718 = vmatprep.mubr.f32.mxu0 %v638
      %719 = vmatmul.mubr.f32.gmra.mxu0 %v175
      %v720 = vpop.f32.mrf.mxu0
      %v721 = vadd.f32 %v535, %v720
      %v722 = vpop.f32.mrf.mxu0
      %v723 = vadd.f32 %v537, %v722
      %724 = vmatprep.mubr.f32.mxu0 %v640
      %725 = vmatmul.mubr.f32.gmra.mxu0 %v177
      %v726 = vpop.f32.mrf.mxu0
      %v727 = vadd.f32 %v541, %v726
      %v728 = vpop.f32.mrf.mxu0
      %v729 = vadd.f32 %v543, %v728
      %730 = vdwg.mxu0
      %731 = vmatprep.subr.mxu0 %v242
      %732 = vmatpush1.msra.mxu0 %v241
      %733 = vmatprep.subr.mxu0 %v238
      %734 = vmatpush1.msra.mxu0 %v237
      %735 = vmatprep.subr.mxu0 %v234
      %736 = vmatpush1.msra.mxu0 %v233
      %737 = vmatprep.subr.mxu0 %v230
      %738 = vmatpush1.msra.mxu0 %v229
      %739 = vmatprep.subr.mxu0 %v226
      %740 = vmatpush1.msra.mxu0 %v225
      %741 = vmatprep.subr.mxu0 %v222
      %742 = vmatpush1.msra.mxu0 %v221
      %743 = vmatprep.subr.mxu0 %v218
      %744 = vmatpush1.msra.mxu0 %v217
      %745 = vmatprep.subr.mxu0 %v214
      %746 = vmatpush1.msra.mxu0 %v213
      %747 = vmatprep.subr.mxu0 %v210
      %748 = vmatpush1.msra.mxu0 %v209
      %749 = vmatprep.subr.mxu0 %v206
      %750 = vmatpush1.msra.mxu0 %v205
      %751 = vmatprep.subr.mxu0 %v202
      %752 = vmatpush1.msra.mxu0 %v201
      %753 = vmatprep.subr.mxu0 %v198
      %754 = vmatpush1.msra.mxu0 %v197
      %755 = vmatprep.subr.mxu0 %v194
      %756 = vmatpush1.msra.mxu0 %v193
      %757 = vmatprep.subr.mxu0 %v190
      %758 = vmatpush1.msra.mxu0 %v189
      %759 = vmatprep.subr.mxu0 %v186
      %760 = vmatpush1.msra.mxu0 %v185
      %761 = vmatprep.subr.mxu0 %v182
      %762 = vmatpush1.msra.mxu0 %v181
      %763 = vmatprep.subr.mxu0 0.0
      %764 = vmatpush2.msra.mxu0 0.0
      %765 = vmatprep.subr.mxu0 0.0
      %766 = vmatpush2.msra.mxu0 0.0
      %767 = vmatprep.subr.mxu0 %v298
      %768 = vmatpush2.msra.mxu0 %v297
      %769 = vmatprep.subr.mxu0 %v294
      %770 = vmatpush2.msra.mxu0 %v293
      %771 = vmatprep.subr.mxu0 %v290
      %772 = vmatpush2.msra.mxu0 %v289
      %773 = vmatprep.subr.mxu0 %v286
      %774 = vmatpush2.msra.mxu0 %v285
      %775 = vmatprep.subr.mxu0 %v282
      %776 = vmatpush2.msra.mxu0 %v281
      %777 = vmatprep.subr.mxu0 %v278
      %778 = vmatpush2.msra.mxu0 %v277
      %779 = vmatprep.subr.mxu0 %v274
      %780 = vmatpush2.msra.mxu0 %v273
      %781 = vmatprep.subr.mxu0 %v270
      %782 = vmatpush2.msra.mxu0 %v269
      %783 = vmatprep.subr.mxu0 %v266
      %784 = vmatpush2.msra.mxu0 %v265
      %785 = vmatprep.subr.mxu0 %v262
      %786 = vmatpush2.msra.mxu0 %v261
      %787 = vmatprep.subr.mxu0 %v258
      %788 = vmatpush2.msra.mxu0 %v257
      %789 = vmatprep.subr.mxu0 %v254
      %790 = vmatpush2.msra.mxu0 %v253
      %791 = vmatprep.subr.mxu0 %v250
      %792 = vmatpush2.msra.mxu0 %v249
      %793 = vmatprep.subr.mxu0 %v246
      %794 = vmatpush2.msra.mxu0 %v245
      %795 = vmatprep.mubr.f32.mxu0 %v634
      %796 = vmatmul.mubr.f32.gmra.mxu0 %v171
      %v797 = vpop.f32.mrf.mxu0
      %v798 = vadd.f32 %v612, %v797
      %v799 = vpop.f32.mrf.mxu0
      %v800 = vadd.f32 %v614, %v799
      %801 = vmatprep.mubr.f32.mxu0 %v636
      %802 = vmatmul.mubr.f32.gmra.mxu0 %v173
      %v803 = vpop.f32.mrf.mxu0
      %v804 = vadd.f32 %v618, %v803
      %v805 = vpop.f32.mrf.mxu0
      %v806 = vadd.f32 %v620, %v805
      %807 = vmatprep.mubr.f32.mxu0 %v638
      %808 = vmatmul.mubr.f32.gmra.mxu0 %v175
      %v809 = vpop.f32.mrf.mxu0
      %v810 = vadd.f32 %v624, %v809
      %v811 = vpop.f32.mrf.mxu0
      %v812 = vadd.f32 %v626, %v811
      %813 = vmatprep.mubr.f32.mxu0 %v640
      %814 = vmatmul.mubr.f32.gmra.mxu0 %v177
      %v815 = vpop.f32.mrf.mxu0
      %v816 = vadd.f32 %v630, %v815
      %v817 = vpop.f32.mrf.mxu0
      %v818 = vadd.f32 %v632, %v817
      %819 = vdwg.mxu0
      %s820 = scalar_lea.vmem %s1, 1920
      %v821 = vld [vmem:[%s820] sm:$0xff]
      %v822 = vld [vmem:[%s820 + $0x8] sm:$0xff]
      %v823 = vld [vmem:[%s820 + $0x10] sm:$0xff]
      %v824 = vld [vmem:[%s820 + $0x18] sm:$0xff]
      %v825 = vld [vmem:[%s820 + $0x20] sm:$0xff]
      %v826 = vld [vmem:[%s820 + $0x28] sm:$0xff]
      %v827 = vld [vmem:[%s820 + $0x30] sm:$0xff]
      %v828 = vld [vmem:[%s820 + $0x38] sm:$0xff]
      %v829 = vld [vmem:[%s820 + $0x40] sm:$0xff]
      %v830 = vld [vmem:[%s820 + $0x48] sm:$0xff]
      %v831 = vld [vmem:[%s820 + $0x50] sm:$0xff]
      %v832 = vld [vmem:[%s820 + $0x58] sm:$0xff]
      %v833 = vld [vmem:[%s820 + $0x60] sm:$0xff]
      %v834 = vld [vmem:[%s820 + $0x68] sm:$0xff]
      %v835 = vld [vmem:[%s820 + $0x70] sm:$0xff]
      %v836 = vld [vmem:[%s820 + $0x78] sm:$0xff]
      %v837 = vld [vmem:[%s820 + $0x80] sm:$0xff]
      %v838 = vld [vmem:[%s820 + $0x88] sm:$0xff]
      %v839 = vld [vmem:[%s820 + $0x90] sm:$0xff]
      %v840 = vld [vmem:[%s820 + $0x98] sm:$0xff]
      %v841 = vld [vmem:[%s820 + $0xa0] sm:$0xff]
      %v842 = vld [vmem:[%s820 + $0xa8] sm:$0xff]
      %v843 = vld [vmem:[%s820 + $0xb0] sm:$0xff]
      %v844 = vld [vmem:[%s820 + $0xb8] sm:$0xff]
      %v845 = vld [vmem:[%s820 + $0xc0] sm:$0xff]
      %v846 = vld [vmem:[%s820 + $0xc8] sm:$0xff]
      %v847 = vld [vmem:[%s820 + $0xd0] sm:$0xff]
      %v848 = vld [vmem:[%s820 + $0xd8] sm:$0xff]
      %v849 = vld [vmem:[%s820 + $0xe0] sm:$0xff]
      %v850 = vld [vmem:[%s820 + $0xe8] sm:$0xff]
      %v851 = vld [vmem:[%s820 + $0xf0] sm:$0xff]
      %v852 = vld [vmem:[%s820 + $0xf8] sm:$0xff]
      %v853 = vld [vmem:[%s820 + $0x100] sm:$0xff]
      %v854 = vld [vmem:[%s820 + $0x108] sm:$0xff]
      %v855 = vld [vmem:[%s820 + $0x110] sm:$0xff]
      %v856 = vld [vmem:[%s820 + $0x118] sm:$0xff]
      %v857 = vld [vmem:[%s820 + $0x120] sm:$0xff]
      %v858 = vld [vmem:[%s820 + $0x128] sm:$0xff]
      %v859 = vld [vmem:[%s820 + $0x130] sm:$0xff]
      %v860 = vld [vmem:[%s820 + $0x138] sm:$0xff]
      %v861 = vld [vmem:[%s820 + $0x140] sm:$0xff]
      %v862 = vld [vmem:[%s820 + $0x148] sm:$0xff]
      %v863 = vld [vmem:[%s820 + $0x150] sm:$0xff]
      %v864 = vld [vmem:[%s820 + $0x158] sm:$0xff]
      %v865 = vld [vmem:[%s820 + $0x160] sm:$0xff]
      %v866 = vld [vmem:[%s820 + $0x168] sm:$0xff]
      %v867 = vld [vmem:[%s820 + $0x170] sm:$0xff]
      %v868 = vld [vmem:[%s820 + $0x178] sm:$0xff]
      %v869 = vld [vmem:[%s820 + $0x180] sm:$0xff]
      %v870 = vld [vmem:[%s820 + $0x188] sm:$0xff]
      %v871 = vld [vmem:[%s820 + $0x190] sm:$0xff]
      %v872 = vld [vmem:[%s820 + $0x198] sm:$0xff]
      %v873 = vld [vmem:[%s820 + $0x1a0] sm:$0xff]
      %v874 = vld [vmem:[%s820 + $0x1a8] sm:$0xff]
      %v875 = vld [vmem:[%s820 + $0x1b0] sm:$0xff]
      %v876 = vld [vmem:[%s820 + $0x1b8] sm:$0xff]
      %v877 = vld [vmem:[%s820 + $0x1c0] sm:$0xff]
      %v878 = vld [vmem:[%s820 + $0x1c8] sm:$0xff]
      %v879 = vld [vmem:[%s820 + $0x1d0] sm:$0xff]
      %v880 = vld [vmem:[%s820 + $0x1d8] sm:$0xff]
      %v881 = vld [vmem:[%s820 + $0x1e0] sm:$0xff]
      %v882 = vld [vmem:[%s820 + $0x1e8] sm:$0xff]
      %v883 = vld [vmem:[%s820 + $0x1f0] sm:$0xff]
      %v884 = vld [vmem:[%s820 + $0x1f8] sm:$0xff]
      %v885 = vld [vmem:[%s820 + $0x200] sm:$0xff]
      %v886 = vld [vmem:[%s820 + $0x208] sm:$0xff]
      %v887 = vld [vmem:[%s820 + $0x210] sm:$0xff]
      %v888 = vld [vmem:[%s820 + $0x218] sm:$0xff]
      %v889 = vld [vmem:[%s820 + $0x220] sm:$0xff]
      %v890 = vld [vmem:[%s820 + $0x228] sm:$0xff]
      %v891 = vld [vmem:[%s820 + $0x230] sm:$0xff]
      %v892 = vld [vmem:[%s820 + $0x238] sm:$0xff]
      %v893 = vld [vmem:[%s820 + $0x240] sm:$0xff]
      %v894 = vld [vmem:[%s820 + $0x248] sm:$0xff]
      %v895 = vld [vmem:[%s820 + $0x250] sm:$0xff]
      %v896 = vld [vmem:[%s820 + $0x258] sm:$0xff]
      %v897 = vld [vmem:[%s820 + $0x260] sm:$0xff]
      %v898 = vld [vmem:[%s820 + $0x268] sm:$0xff]
      %v899 = vld [vmem:[%s820 + $0x270] sm:$0xff]
      %v900 = vld [vmem:[%s820 + $0x278] sm:$0xff]
      %v901 = vld [vmem:[%s820 + $0x280] sm:$0xff]
      %v902 = vld [vmem:[%s820 + $0x288] sm:$0xff]
      %v903 = vld [vmem:[%s820 + $0x290] sm:$0xff]
      %v904 = vld [vmem:[%s820 + $0x298] sm:$0xff]
      %v905 = vld [vmem:[%s820 + $0x2a0] sm:$0xff]
      %v906 = vld [vmem:[%s820 + $0x2a8] sm:$0xff]
      %v907 = vld [vmem:[%s820 + $0x2b0] sm:$0xff]
      %v908 = vld [vmem:[%s820 + $0x2b8] sm:$0xff]
      %v909 = vld [vmem:[%s820 + $0x2c0] sm:$0xff]
      %v910 = vld [vmem:[%s820 + $0x2c8] sm:$0xff]
      %v911 = vld [vmem:[%s820 + $0x2d0] sm:$0xff]
      %v912 = vld [vmem:[%s820 + $0x2d8] sm:$0xff]
      %v913 = vld [vmem:[%s820 + $0x2e0] sm:$0xff]
      %v914 = vld [vmem:[%s820 + $0x2e8] sm:$0xff]
      %v915 = vld [vmem:[%s820 + $0x2f0] sm:$0xff]
      %v916 = vld [vmem:[%s820 + $0x2f8] sm:$0xff]
      %v917 = vld [vmem:[%s820 + $0x300] sm:$0xff]
      %v918 = vld [vmem:[%s820 + $0x308] sm:$0xff]
      %v919 = vld [vmem:[%s820 + $0x310] sm:$0xff]
      %v920 = vld [vmem:[%s820 + $0x318] sm:$0xff]
      %v921 = vld [vmem:[%s820 + $0x320] sm:$0xff]
      %v922 = vld [vmem:[%s820 + $0x328] sm:$0xff]
      %v923 = vld [vmem:[%s820 + $0x330] sm:$0xff]
      %v924 = vld [vmem:[%s820 + $0x338] sm:$0xff]
      %v925 = vld [vmem:[%s820 + $0x340] sm:$0xff]
      %v926 = vld [vmem:[%s820 + $0x348] sm:$0xff]
      %v927 = vld [vmem:[%s820 + $0x350] sm:$0xff]
      %v928 = vld [vmem:[%s820 + $0x358] sm:$0xff]
      %v929 = vld [vmem:[%s820 + $0x360] sm:$0xff]
      %v930 = vld [vmem:[%s820 + $0x368] sm:$0xff]
      %v931 = vld [vmem:[%s820 + $0x370] sm:$0xff]
      %v932 = vld [vmem:[%s820 + $0x378] sm:$0xff]
      %v933 = vld [vmem:[%s820 + $0x380] sm:$0xff]
      %v934 = vld [vmem:[%s820 + $0x388] sm:$0xff]
      %v935 = vld [vmem:[%s820 + $0x390] sm:$0xff]
      %v936 = vld [vmem:[%s820 + $0x398] sm:$0xff]
      %v937 = vld [vmem:[%s820 + $0x3a0] sm:$0xff]
      %v938 = vld [vmem:[%s820 + $0x3a8] sm:$0xff]
      %v939 = vld [vmem:[%s820 + $0x3b0] sm:$0xff]
      %v940 = vld [vmem:[%s820 + $0x3b8] sm:$0xff]
      %vm941 = vcmask 1045504
      %v942 = vrot.slane %v171, 2
      %v943 = vrot.slane %v173, 2
      %v944 = vsel %vm941, %v942, %v943
      %v945 = vrot.slane %v172, 2
      %v946 = vrot.slane %v174, 2
      %v947 = vsel %vm941, %v945, %v946
      %v948 = vrot.slane %v175, 2
      %v949 = vsel %vm941, %v943, %v948
      %v950 = vrot.slane %v176, 2
      %v951 = vsel %vm941, %v946, %v950
      %v952 = vrot.slane %v177, 2
      %v953 = vsel %vm941, %v948, %v952
      %v954 = vrot.slane %v178, 2
      %v955 = vsel %vm941, %v950, %v954
      %v960 = vsel %vm447, %v947, 0
      %v962 = vsel %vm447, %v951, 0
      %v964 = vsel %vm447, %v955, 0
      %v966 = vsel %vm447, %v954, 0
      %968 = vmatprep.subr.mxu0 %v882
      %969 = vmatpush1.msra.mxu0 %v881
      %970 = vmatprep.subr.mxu0 %v878
      %971 = vmatpush1.msra.mxu0 %v877
      %972 = vmatprep.subr.mxu0 %v874
      %973 = vmatpush1.msra.mxu0 %v873
      %974 = vmatprep.subr.mxu0 %v870
      %975 = vmatpush1.msra.mxu0 %v869
      %976 = vmatprep.subr.mxu0 %v866
      %977 = vmatpush1.msra.mxu0 %v865
      %978 = vmatprep.subr.mxu0 %v862
      %979 = vmatpush1.msra.mxu0 %v861
      %980 = vmatprep.subr.mxu0 %v858
      %981 = vmatpush1.msra.mxu0 %v857
      %982 = vmatprep.subr.mxu0 %v854
      %983 = vmatpush1.msra.mxu0 %v853
      %984 = vmatprep.subr.mxu0 %v850
      %985 = vmatpush1.msra.mxu0 %v849
      %986 = vmatprep.subr.mxu0 %v846
      %987 = vmatpush1.msra.mxu0 %v845
      %988 = vmatprep.subr.mxu0 %v842
      %989 = vmatpush1.msra.mxu0 %v841
      %990 = vmatprep.subr.mxu0 %v838
      %991 = vmatpush1.msra.mxu0 %v837
      %992 = vmatprep.subr.mxu0 %v834
      %993 = vmatpush1.msra.mxu0 %v833
      %994 = vmatprep.subr.mxu0 %v830
      %995 = vmatpush1.msra.mxu0 %v829
      %996 = vmatprep.subr.mxu0 %v826
      %997 = vmatpush1.msra.mxu0 %v825
      %998 = vmatprep.subr.mxu0 %v822
      %999 = vmatpush1.msra.mxu0 %v821
      %1000 = vmatprep.subr.mxu0 0.0
      %1001 = vmatpush2.msra.mxu0 0.0
      %1002 = vmatprep.subr.mxu0 0.0
      %1003 = vmatpush2.msra.mxu0 0.0
      %1004 = vmatprep.subr.mxu0 %v938
      %1005 = vmatpush2.msra.mxu0 %v937
      %1006 = vmatprep.subr.mxu0 %v934
      %1007 = vmatpush2.msra.mxu0 %v933
      %1008 = vmatprep.subr.mxu0 %v930
      %1009 = vmatpush2.msra.mxu0 %v929
      %1010 = vmatprep.subr.mxu0 %v926
      %1011 = vmatpush2.msra.mxu0 %v925
      %1012 = vmatprep.subr.mxu0 %v922
      %1013 = vmatpush2.msra.mxu0 %v921
      %1014 = vmatprep.subr.mxu0 %v918
      %1015 = vmatpush2.msra.mxu0 %v917
      %1016 = vmatprep.subr.mxu0 %v914
      %1017 = vmatpush2.msra.mxu0 %v913
      %1018 = vmatprep.subr.mxu0 %v910
      %1019 = vmatpush2.msra.mxu0 %v909
      %1020 = vmatprep.subr.mxu0 %v906
      %1021 = vmatpush2.msra.mxu0 %v905
      %1022 = vmatprep.subr.mxu0 %v902
      %1023 = vmatpush2.msra.mxu0 %v901
      %1024 = vmatprep.subr.mxu0 %v898
      %1025 = vmatpush2.msra.mxu0 %v897
      %1026 = vmatprep.subr.mxu0 %v894
      %1027 = vmatpush2.msra.mxu0 %v893
      %1028 = vmatprep.subr.mxu0 %v890
      %1029 = vmatpush2.msra.mxu0 %v889
      %1030 = vmatprep.subr.mxu0 %v886
      %1031 = vmatpush2.msra.mxu0 %v885
      %1032 = vmatprep.mubr.f32.mxu0 %v960
      %1033 = vmatmul.mubr.f32.gmra.mxu0 %v944
      %v1034 = vpop.f32.mrf.mxu0
      %v1035 = vadd.f32 0.0, %v1034
      %v1036 = vpop.f32.mrf.mxu0
      %v1037 = vadd.f32 0.0, %v1036
      %1038 = vmatprep.mubr.f32.mxu0 %v962
      %1039 = vmatmul.mubr.f32.gmra.mxu0 %v949
      %v1040 = vpop.f32.mrf.mxu0
      %v1041 = vadd.f32 0.0, %v1040
      %v1042 = vpop.f32.mrf.mxu0
      %v1043 = vadd.f32 0.0, %v1042
      %1044 = vmatprep.mubr.f32.mxu0 %v964
      %1045 = vmatmul.mubr.f32.gmra.mxu0 %v953
      %v1046 = vpop.f32.mrf.mxu0
      %v1047 = vadd.f32 0.0, %v1046
      %v1048 = vpop.f32.mrf.mxu0
      %v1049 = vadd.f32 0.0, %v1048
      %1050 = vmatprep.mubr.f32.mxu0 %v966
      %1051 = vmatmul.mubr.f32.gmra.mxu0 %v952
      %v1052 = vpop.f32.mrf.mxu0
      %v1053 = vadd.f32 0.0, %v1052
      %v1054 = vpop.f32.mrf.mxu0
      %v1055 = vadd.f32 0.0, %v1054
      %1056 = vdwg.mxu0
      %1057 = vmatprep.subr.mxu0 %v884
      %1058 = vmatpush1.msra.mxu0 %v883
      %1059 = vmatprep.subr.mxu0 %v880
      %1060 = vmatpush1.msra.mxu0 %v879
      %1061 = vmatprep.subr.mxu0 %v876
      %1062 = vmatpush1.msra.mxu0 %v875
      %1063 = vmatprep.subr.mxu0 %v872
      %1064 = vmatpush1.msra.mxu0 %v871
      %1065 = vmatprep.subr.mxu0 %v868
      %1066 = vmatpush1.msra.mxu0 %v867
      %1067 = vmatprep.subr.mxu0 %v864
      %1068 = vmatpush1.msra.mxu0 %v863
      %1069 = vmatprep.subr.mxu0 %v860
      %1070 = vmatpush1.msra.mxu0 %v859
      %1071 = vmatprep.subr.mxu0 %v856
      %1072 = vmatpush1.msra.mxu0 %v855
      %1073 = vmatprep.subr.mxu0 %v852
      %1074 = vmatpush1.msra.mxu0 %v851
      %1075 = vmatprep.subr.mxu0 %v848
      %1076 = vmatpush1.msra.mxu0 %v847
      %1077 = vmatprep.subr.mxu0 %v844
      %1078 = vmatpush1.msra.mxu0 %v843
      %1079 = vmatprep.subr.mxu0 %v840
      %1080 = vmatpush1.msra.mxu0 %v839
      %1081 = vmatprep.subr.mxu0 %v836
      %1082 = vmatpush1.msra.mxu0 %v835
      %1083 = vmatprep.subr.mxu0 %v832
      %1084 = vmatpush1.msra.mxu0 %v831
      %1085 = vmatprep.subr.mxu0 %v828
      %1086 = vmatpush1.msra.mxu0 %v827
      %1087 = vmatprep.subr.mxu0 %v824
      %1088 = vmatpush1.msra.mxu0 %v823
      %1089 = vmatprep.subr.mxu0 0.0
      %1090 = vmatpush2.msra.mxu0 0.0
      %1091 = vmatprep.subr.mxu0 0.0
      %1092 = vmatpush2.msra.mxu0 0.0
      %1093 = vmatprep.subr.mxu0 %v940
      %1094 = vmatpush2.msra.mxu0 %v939
      %1095 = vmatprep.subr.mxu0 %v936
      %1096 = vmatpush2.msra.mxu0 %v935
      %1097 = vmatprep.subr.mxu0 %v932
      %1098 = vmatpush2.msra.mxu0 %v931
      %1099 = vmatprep.subr.mxu0 %v928
      %1100 = vmatpush2.msra.mxu0 %v927
      %1101 = vmatprep.subr.mxu0 %v924
      %1102 = vmatpush2.msra.mxu0 %v923
      %1103 = vmatprep.subr.mxu0 %v920
      %1104 = vmatpush2.msra.mxu0 %v919
      %1105 = vmatprep.subr.mxu0 %v916
      %1106 = vmatpush2.msra.mxu0 %v915
      %1107 = vmatprep.subr.mxu0 %v912
      %1108 = vmatpush2.msra.mxu0 %v911
      %1109 = vmatprep.subr.mxu0 %v908
      %1110 = vmatpush2.msra.mxu0 %v907
      %1111 = vmatprep.subr.mxu0 %v904
      %1112 = vmatpush2.msra.mxu0 %v903
      %1113 = vmatprep.subr.mxu0 %v900
      %1114 = vmatpush2.msra.mxu0 %v899
      %1115 = vmatprep.subr.mxu0 %v896
      %1116 = vmatpush2.msra.mxu0 %v895
      %1117 = vmatprep.subr.mxu0 %v892
      %1118 = vmatpush2.msra.mxu0 %v891
      %1119 = vmatprep.subr.mxu0 %v888
      %1120 = vmatpush2.msra.mxu0 %v887
      %1121 = vmatprep.mubr.f32.mxu0 %v960
      %1122 = vmatmul.mubr.f32.gmra.mxu0 %v944
      %v1123 = vpop.f32.mrf.mxu0
      %v1124 = vadd.f32 0.0, %v1123
      %v1125 = vpop.f32.mrf.mxu0
      %v1126 = vadd.f32 0.0, %v1125
      %1127 = vmatprep.mubr.f32.mxu0 %v962
      %1128 = vmatmul.mubr.f32.gmra.mxu0 %v949
      %v1129 = vpop.f32.mrf.mxu0
      %v1130 = vadd.f32 0.0, %v1129
      %v1131 = vpop.f32.mrf.mxu0
      %v1132 = vadd.f32 0.0, %v1131
      %1133 = vmatprep.mubr.f32.mxu0 %v964
      %1134 = vmatmul.mubr.f32.gmra.mxu0 %v953
      %v1135 = vpop.f32.mrf.mxu0
      %v1136 = vadd.f32 0.0, %v1135
      %v1137 = vpop.f32.mrf.mxu0
      %v1138 = vadd.f32 0.0, %v1137
      %1139 = vmatprep.mubr.f32.mxu0 %v966
      %1140 = vmatmul.mubr.f32.gmra.mxu0 %v952
      %v1141 = vpop.f32.mrf.mxu0
      %v1142 = vadd.f32 0.0, %v1141
      %v1143 = vpop.f32.mrf.mxu0
      %v1144 = vadd.f32 0.0, %v1143
      %1145 = vdwg.mxu0
      %v1146 = vadd.f32 %v709, %v1035
      %v1147 = vadd.f32 %v711, %v1037
      %v1148 = vadd.f32 %v798, %v1124
      %v1149 = vadd.f32 %v800, %v1126
      %v1150 = vadd.f32 %v715, %v1041
      %v1151 = vadd.f32 %v717, %v1043
      %v1152 = vadd.f32 %v804, %v1130
      %v1153 = vadd.f32 %v806, %v1132
      %v1154 = vadd.f32 %v721, %v1047
      %v1155 = vadd.f32 %v723, %v1049
      %v1156 = vadd.f32 %v810, %v1136
      %v1157 = vadd.f32 %v812, %v1138
      %v1158 = vadd.f32 %v727, %v1053
      %v1159 = vadd.f32 %v729, %v1055
      %v1160 = vadd.f32 %v816, %v1142
      %v1161 = vadd.f32 %v818, %v1144
      %v1162 = vld [vmem:[%s2] sm:$0xf]
      %v1164 = vlaneseq
      %v1165 = vshrl.u32 %v1164, 7
      %v1166 = vsub.s32 0, %v1165
      %v1167 = vrot.slane %v1162, %v1166
      %v1168 = vlaneseq
      %v1169 = vshrl.u32 %v1168, 7
      %v1170 = vsub.s32 1, %v1169
      %v1171 = vrot.slane %v1162, %v1170
      %v1172 = vlaneseq
      %v1173 = vshrl.u32 %v1172, 7
      %v1174 = vsub.s32 2, %v1173
      %v1175 = vrot.slane %v1162, %v1174
      %v1176 = vlaneseq
      %v1177 = vshrl.u32 %v1176, 7
      %v1178 = vsub.s32 3, %v1177
      %v1179 = vrot.slane %v1162, %v1178
      %v1184 = vadd.f32 %v1146, %v1167
      %v1185 = vadd.f32 %v1147, %v1171
      %v1186 = vadd.f32 %v1148, %v1175
      %v1187 = vadd.f32 %v1149, %v1179
      %v1188 = vadd.f32 %v1150, %v1167
      %v1189 = vadd.f32 %v1151, %v1171
      %v1190 = vadd.f32 %v1152, %v1175
      %v1191 = vadd.f32 %v1153, %v1179
      %v1192 = vadd.f32 %v1154, %v1167
      %v1193 = vadd.f32 %v1155, %v1171
      %v1194 = vadd.f32 %v1156, %v1175
      %v1195 = vadd.f32 %v1157, %v1179
      %v1196 = vadd.f32 %v1158, %v1167
      %v1197 = vadd.f32 %v1159, %v1171
      %v1198 = vadd.f32 %v1160, %v1175
      %v1199 = vadd.f32 %v1161, %v1179
      %v1200 = vmax.f32 %v1184, 0.0
      %v1201 = vmax.f32 %v1185, 0.0
      %v1202 = vmax.f32 %v1186, 0.0
      %v1203 = vmax.f32 %v1187, 0.0
      %v1204 = vmax.f32 %v1188, 0.0
      %v1205 = vmax.f32 %v1189, 0.0
      %v1206 = vmax.f32 %v1190, 0.0
      %v1207 = vmax.f32 %v1191, 0.0
      %v1208 = vmax.f32 %v1192, 0.0
      %v1209 = vmax.f32 %v1193, 0.0
      %v1210 = vmax.f32 %v1194, 0.0
      %v1211 = vmax.f32 %v1195, 0.0
      %v1212 = vmax.f32 %v1196, 0.0
      %v1213 = vmax.f32 %v1197, 0.0
      %v1214 = vmax.f32 %v1198, 0.0
      %v1215 = vmax.f32 %v1199, 0.0
      %1216 = vst [vmem:[%s170] sm:$0xff] %v1200
      %1217 = vst [vmem:[%s170 + $0x8] sm:$0xff] %v1201
      %1218 = vst [vmem:[%s170 + $0x10] sm:$0xff] %v1202
      %vm1219 = vcmask 523264
      %1220 = vst.msk [vmem:[%s170 + $0x18] sm:$0xff] %vm1219, %v1203
      %1221 = vst [vmem:[%s170 + $0x20] sm:$0xff] %v1204
      %1222 = vst [vmem:[%s170 + $0x28] sm:$0xff] %v1205
      %1223 = vst [vmem:[%s170 + $0x30] sm:$0xff] %v1206
      %1224 = vst.msk [vmem:[%s170 + $0x38] sm:$0xff] %vm1219, %v1207
      %1225 = vst [vmem:[%s170 + $0x40] sm:$0xff] %v1208
      %1226 = vst [vmem:[%s170 + $0x48] sm:$0xff] %v1209
      %1227 = vst [vmem:[%s170 + $0x50] sm:$0xff] %v1210
      %1228 = vst.msk [vmem:[%s170 + $0x58] sm:$0xff] %vm1219, %v1211
      %1229 = vst [vmem:[%s170 + $0x60] sm:$0xf] %v1212
      %1230 = vst [vmem:[%s170 + $0x68] sm:$0xf] %v1213
      %1231 = vst [vmem:[%s170 + $0x70] sm:$0xf] %v1214
      %vm1232 = vcmask 519168
      %1233 = vst.msk [vmem:[%s170 + $0x78] sm:$0xf] %vm1232, %v1215
      %p1234 = scmp.lt.s32.totalorder %s14, 1
      %s1235 = scalar_select %p1234, %s14, 1
      %s1236 = smul.addr %s1235, 16
      %s1237 = smul.addr %s1236, 8
      %s1238 = scalar_lea.vmem %s3, %s1237
      // Predicated region
      $region33: #{vgg_forward_pallas.8} parent=31 // pred_check
        %p1239 = pneg %p100
      $region34: #{vgg_forward_pallas.8} parent=31 // pred_check_branch
        %1241 = sbr.rel (%p1239) target = $region36
      $region35: #{vgg_forward_pallas.8} parent=31 // pred_region
        _
      $region36: #{vgg_forward_pallas.8} parent=31 // pred_fallthru
        _
    $region32: #{vgg_forward_pallas.8} parent=5 // pred_fallthru
      _
    %p1242 = scmp.le.s32.totalorder 2, %s9
    // Predicated region
    $region37: #{vgg_forward_pallas.8} parent=5 // pred_check
      %p1243 = pneg %p1242
    $region38: #{vgg_forward_pallas.8} parent=5 // pred_check_branch
      %1245 = sbr.rel (%p1243) target = $region40
    $region39: #{vgg_forward_pallas.8} parent=5 // pred_region
      %s1246 = ssub.s32 %s9, 2
      // Predicated region
      $region41: #{vgg_forward_pallas.8} parent=39 // pred_check
        %p1247 = pneg %p106
      $region42: #{vgg_forward_pallas.8} parent=39 // pred_check_branch
        %1249 = sbr.rel (%p1247) target = $region44
      $region43: #{vgg_forward_pallas.8} parent=39 // pred_region
        %p1250 = scmp.lt.s32.totalorder %s15, 1
        %s1251 = scalar_select %p1250, %s15, 1
        %s1252 = smul.addr %s1251, 16
        %s1253 = smul.addr %s1252, 8
        %s1254 = scalar_lea.vmem %s3, %s1253
      $region44: #{vgg_forward_pallas.8} parent=39 // pred_fallthru
        _
    $region40: #{vgg_forward_pallas.8} parent=5 // pred_fallthru
      _
  $region6: #{vgg_forward_pallas.8} parent=0 // loop_footer
    %s13 = sadd.s32 1, %s9
  $region7: #{vgg_forward_pallas.8} parent=0 // loop_footer_branch
    %8 = sbr.rel target = $region3
  $region8: #{vgg_forward_pallas.8} parent=0 // loop_exit
    _

// kernel: vgg_forward_pallas.9
$region0: #{vgg_forward_pallas.9}
  #allocation0 [shape = 'u32[]', space=smem, size = 0x4, offset = 0x4, fixed_abs, tag = 'smem constant byte address 0x4 - core index']
  #allocation1 [shape = 'u32[144,128]{1,0:T(1,128)}', space=vmem, size = 0x12000, scoped, tag = 'internal scratch']
  %s0 = inlined_call_operand.vmem [shape: f32[2,28,14,32], index: 0, kind: input, shape index: {}]
  %s1 = inlined_call_operand.vmem [shape: f32[2,14,14,16], index: 1, kind: output, shape index: {}]
  %s2 = sld [smem:[#allocation0]]
  $region37: #{vgg_forward_pallas.9} parent=0
    _
  %s4 = ssub.s32 1, %s2
  %s5 = scalar_select 0, %s4, %s2
  loop: start=0, step=1, limit=30
  $region2: #{vgg_forward_pallas.9} parent=0 // loop_pre_header
    _
  $region3: #{vgg_forward_pallas.9} parent=0 // loop_header
    %s7 = sphi 0, %s11
    %p8 = scmp.ge.s32.totalorder %s7, 30
    %s14 = sphi 0, %s26
    %s15 = sphi 0, %s22
    %s16 = sphi 0, %s14
    %s17 = sphi 0, %s15
    %s18 = sphi 0, %s16
    %s19 = sphi 0, %s17
    %s31 = sphi 0, %s33
    %s34 = sphi 0, %s31
    %s35 = sphi 0, %s34
    %s51 = sphi 0, %s35
    %s59 = sphi 0, %s61
    %s62 = sphi 0, %s59
    %s63 = sphi 0, %s62
    %s79 = sphi 0, %s63
  $region4: #{vgg_forward_pallas.9} parent=0 // loop_header_branch
    %10 = sbr.rel (%p8) target = $region8
  $region5: #{vgg_forward_pallas.9} parent=0 // loop_body
    %s12 = ssub.s32 %s7, 1
    %s13 = ssub.s32 %s7, 2
    %s20 = sadd.s32 1, %s15
    %p21 = scmp.ge.s32.totalorder %s20, 14
    %s22 = scalar_select %p21, 0, %s20
    %s23 = sadd.s32 1, %s14
    %s24 = scalar_select %p21, %s23, %s14
    %p25 = scmp.ge.s32.totalorder %s24, 2
    %s26 = scalar_select %p25, 0, %s24
    %s27 = ssub.s32 %s14, %s26
    %s28 = ssub.s32 %s15, %s22
    %s29 = sor.u32 %s27, %s28
    %p30 = scmp.eq.s32.totalorder %s29, 0
    %s32 = sadd.s32 %s31, 1
    %s33 = scalar_select %p30, %s31, %s32
    %p36 = pneg %p30
    %p37 = scmp.eq.s32.totalorder %s7, 27
    %p38 = por %p36, %p37
    %p39 = scmp.ne.s32.totalorder %s31, %s34
    %p40 = scmp.eq.s32.totalorder %s7, 0
    %p41 = por %p39, %p40
    %p42 = scmp.ne.s32.totalorder %s31, %s34
    %p43 = scmp.eq.s32.totalorder %s12, 27
    %p44 = por %p42, %p43
    %p45 = scmp.ne.s32.totalorder %s34, %s35
    %p46 = scmp.eq.s32.totalorder %s12, 0
    %p47 = por %p45, %p46
    %p48 = scmp.ne.s32.totalorder %s34, %s35
    %p49 = scmp.eq.s32.totalorder %s13, 27
    %p50 = por %p48, %p49
    %p52 = scmp.ne.s32.totalorder %s35, %s51
    %p53 = scmp.eq.s32.totalorder %s13, 0
    %p54 = por %p52, %p53
    %s55 = ssub.s32 %s14, %s26
    %s56 = ssub.s32 %s15, %s22
    %s57 = sor.u32 %s55, %s56
    %p58 = scmp.eq.s32.totalorder %s57, 0
    %s60 = sadd.s32 %s59, 1
    %s61 = scalar_select %p58, %s59, %s60
    %p64 = pneg %p58
    %p65 = scmp.eq.s32.totalorder %s7, 27
    %p66 = por %p64, %p65
    %p67 = scmp.ne.s32.totalorder %s59, %s62
    %p68 = scmp.eq.s32.totalorder %s7, 0
    %p69 = por %p67, %p68
    %p70 = scmp.ne.s32.totalorder %s59, %s62
    %p71 = scmp.eq.s32.totalorder %s12, 27
    %p72 = por %p70, %p71
    %p73 = scmp.ne.s32.totalorder %s62, %s63
    %p74 = scmp.eq.s32.totalorder %s12, 0
    %p75 = por %p73, %p74
    %p76 = scmp.ne.s32.totalorder %s62, %s63
    %p77 = scmp.eq.s32.totalorder %s13, 27
    %p78 = por %p76, %p77
    %p80 = scmp.ne.s32.totalorder %s63, %s79
    %p81 = scmp.eq.s32.totalorder %s13, 0
    %p82 = por %p80, %p81
    %p83 = scmp.le.s32.totalorder 1, %s7
    %p84 = scmp.lt.s32.totalorder %s7, 29
    %p85 = pnand %p83, %p84
    %p86 = pneg %p85
    // Predicated region
    $region9: #{vgg_forward_pallas.9} parent=5 // pred_check
      _
    $region10: #{vgg_forward_pallas.9} parent=5 // pred_check_branch
      %88 = sbr.rel (%p85) target = $region12
    $region11: #{vgg_forward_pallas.9} parent=5 // pred_region
      %s89 = ssub.s32 %s7, 1
    $region12: #{vgg_forward_pallas.9} parent=5 // pred_fallthru
      _
    %p90 = scmp.lt.s32.totalorder %s7, 28
    // Predicated region
    $region13: #{vgg_forward_pallas.9} parent=5 // pred_check
      %p91 = pneg %p90
    $region14: #{vgg_forward_pallas.9} parent=5 // pred_check_branch
      %93 = sbr.rel (%p91) target = $region16
    $region15: #{vgg_forward_pallas.9} parent=5 // pred_region
      // Predicated region
      $region17: #{vgg_forward_pallas.9} parent=15 // pred_check
        %p94 = pneg %p41
      $region18: #{vgg_forward_pallas.9} parent=15 // pred_check_branch
        %96 = sbr.rel (%p94) target = $region20
      $region19: #{vgg_forward_pallas.9} parent=15 // pred_region
        %s97 = smul.u32 2, %s15
        %p98 = scmp.lt.s32.totalorder %s14, 1
        %s99 = scalar_select %p98, %s14, 1
        %p100 = scmp.lt.s32.totalorder %s97, 27
        %s101 = scalar_select %p100, %s97, 27
        %s102 = smul.addr %s101, 2
        %s103 = smul.addr %s99, 56
        %s104 = sadd.s32 %s102, %s103
        %s105 = smul.addr %s104, 8
        %s106 = scalar_lea.vmem %s0, %s105
        %s107 = smul.u32 2, %s15
      $region20: #{vgg_forward_pallas.9} parent=15 // pred_fallthru
        _
    $region16: #{vgg_forward_pallas.9} parent=5 // pred_fallthru
      _
    %p108 = scmp.le.s32.totalorder 1, %s7
    %p109 = scmp.lt.s32.totalorder %s7, 29
    %p110 = pnand %p108, %p109
    %p111 = pneg %p110
    // Predicated region
    $region21: #{vgg_forward_pallas.9} parent=5 // pred_check
      _
    $region22: #{vgg_forward_pallas.9} parent=5 // pred_check_branch
      %113 = sbr.rel (%p110) target = $region24
    $region23: #{vgg_forward_pallas.9} parent=5 // pred_region
      %s114 = ssub.s32 %s7, 1
      %s115 = smul.u32 2, %s17
      %p116 = scmp.lt.s32.totalorder %s16, 1
      %s117 = scalar_select %p116, %s16, 1
      %p118 = scmp.lt.s32.totalorder %s115, 27
      %s119 = scalar_select %p118, %s115, 27
      %s120 = smul.addr %s119, 2
      %s121 = smul.addr %s117, 56
      %s122 = sadd.s32 %s120, %s121
      %s123 = smul.addr %s122, 8
      %s124 = scalar_lea.vmem %s0, %s123
      %p125 = pneg %p47
      %p126 = pneg %p44
      %p127 = pneg %p75
      %p128 = pneg %p72
      %p129 = scmp.lt.s32.totalorder %s16, 1
      %s130 = scalar_select %p129, %s16, 1
      %p131 = scmp.lt.s32.totalorder %s17, 13
      %s132 = scalar_select %p131, %s17, 13
      %s133 = smul.addr %s132, 2
      %s134 = smul.addr %s130, 28
      %s135 = sadd.s32 %s133, %s134
      %s136 = smul.addr %s135, 8
      %s137 = scalar_lea.vmem %s1, %s136
      %s138 = smul.u32 2, %s17
      %p139 = scmp.lt.s32.totalorder %s16, 1
      %s140 = scalar_select %p139, %s16, 1
      %p141 = scmp.lt.s32.totalorder %s138, 27
      %s142 = scalar_select %p141, %s138, 27
      %s143 = smul.addr %s142, 2
      %s144 = smul.addr %s140, 56
      %s145 = sadd.s32 %s143, %s144
      %s146 = smul.addr %s145, 8
      %s147 = scalar_lea.vmem %s0, %s146
      %s148 = smul.u32 2, %s17
      %p149 = scmp.lt.s32.totalorder %s16, 1
      %s150 = scalar_select %p149, %s16, 1
      %p151 = scmp.lt.s32.totalorder %s17, 13
      %s152 = scalar_select %p151, %s17, 13
      %s153 = smul.addr %s152, 2
      %s154 = smul.addr %s150, 28
      %s155 = sadd.s32 %s153, %s154
      %s156 = smul.addr %s155, 8
      %s157 = scalar_lea.vmem %s1, %s156
      %v158 = vld [vmem:[%s147] sm:$0xff]
      %v159 = vld [vmem:[%s147 + $0x8] sm:$0x3f]
      %s160 = scalar_lea.vmem %s147, 16
      %v161 = vld [vmem:[%s160] sm:$0xff]
      %v162 = vld [vmem:[%s160 + $0x8] sm:$0x3f]
      %v163 = vmax.f32 %v158, %v161
      %v164 = vmax.f32 %v159, %v162
      %167 = vrot.lane.b32.xlu0 %v163, 112
      %v168 = vpop.permute.xlu0 %167
      %169 = vrot.lane.b32.xlu0 %v164, 112
      %v170 = vpop.permute.xlu0 %169
      %v173 = vmax.f32 %v163, %v168
      %v174 = vmax.f32 %v164, %v170
      %vm175 = vcmask 130048
      %176 = vst.msk [vmem:[%s157] sm:$0xff] %vm175, %v173
      %vm177 = vcmask 128000
      %178 = vst.msk [vmem:[%s157 + $0x8] sm:$0x3f] %vm177, %v174
      %p179 = scmp.lt.s32.totalorder %s16, 1
      %s180 = scalar_select %p179, %s16, 1
      %p181 = scmp.lt.s32.totalorder %s17, 13
      %s182 = scalar_select %p181, %s17, 13
      %s183 = smul.addr %s182, 2
      %s184 = smul.addr %s180, 28
      %s185 = sadd.s32 %s183, %s184
      %s186 = smul.addr %s185, 8
      %s187 = scalar_lea.vmem %s1, %s186
      // Predicated region
      $region25: #{vgg_forward_pallas.9} parent=23 // pred_check
        %p188 = pneg %p72
      $region26: #{vgg_forward_pallas.9} parent=23 // pred_check_branch
        %190 = sbr.rel (%p188) target = $region28
      $region27: #{vgg_forward_pallas.9} parent=23 // pred_region
        _
      $region28: #{vgg_forward_pallas.9} parent=23 // pred_fallthru
        _
    $region24: #{vgg_forward_pallas.9} parent=5 // pred_fallthru
      _
    %p191 = scmp.le.s32.totalorder 2, %s7
    // Predicated region
    $region29: #{vgg_forward_pallas.9} parent=5 // pred_check
      %p192 = pneg %p191
    $region30: #{vgg_forward_pallas.9} parent=5 // pred_check_branch
      %194 = sbr.rel (%p192) target = $region32
    $region31: #{vgg_forward_pallas.9} parent=5 // pred_region
      %s195 = ssub.s32 %s7, 2
      // Predicated region
      $region33: #{vgg_forward_pallas.9} parent=31 // pred_check
        %p196 = pneg %p78
      $region34: #{vgg_forward_pallas.9} parent=31 // pred_check_branch
        %198 = sbr.rel (%p196) target = $region36
      $region35: #{vgg_forward_pallas.9} parent=31 // pred_region
        %p199 = scmp.lt.s32.totalorder %s18, 1
        %s200 = scalar_select %p199, %s18, 1
        %p201 = scmp.lt.s32.totalorder %s19, 13
        %s202 = scalar_select %p201, %s19, 13
        %s203 = smul.addr %s202, 2
        %s204 = smul.addr %s200, 28
        %s205 = sadd.s32 %s203, %s204
        %s206 = smul.addr %s205, 8
        %s207 = scalar_lea.vmem %s1, %s206
      $region36: #{vgg_forward_pallas.9} parent=31 // pred_fallthru
        _
    $region32: #{vgg_forward_pallas.9} parent=5 // pred_fallthru
      _
  $region6: #{vgg_forward_pallas.9} parent=0 // loop_footer
    %s11 = sadd.s32 1, %s7
  $region7: #{vgg_forward_pallas.9} parent=0 // loop_footer_branch
    %6 = sbr.rel target = $region3
  $region8: #{vgg_forward_pallas.9} parent=0 // loop_exit
    _

// kernel: vgg_forward_pallas.10
$region0: #{vgg_forward_pallas.10}
  #allocation0 [shape = 'u32[]', space=smem, size = 0x4, offset = 0x4, fixed_abs, tag = 'smem constant byte address 0x4 - core index']
  #allocation1 [shape = 'u32[144,128]{1,0:T(1,128)}', space=vmem, size = 0x12000, scoped, tag = 'internal scratch']
  %s0 = inlined_call_operand.vmem [shape: f32[2,14,7,32], index: 0, kind: input, shape index: {}]
  %s1 = inlined_call_operand.vmem [shape: f32[2,7,7,16], index: 1, kind: output, shape index: {}]
  %s2 = sld [smem:[#allocation0]]
  $region37: #{vgg_forward_pallas.10} parent=0
    _
  %s4 = ssub.s32 1, %s2
  %s5 = scalar_select 0, %s4, %s2
  loop: start=0, step=1, limit=16
  $region2: #{vgg_forward_pallas.10} parent=0 // loop_pre_header
    _
  $region3: #{vgg_forward_pallas.10} parent=0 // loop_header
    %s7 = sphi 0, %s11
    %p8 = scmp.ge.s32.totalorder %s7, 16
    %s14 = sphi 0, %s26
    %s15 = sphi 0, %s22
    %s16 = sphi 0, %s14
    %s17 = sphi 0, %s15
    %s18 = sphi 0, %s16
    %s19 = sphi 0, %s17
    %s31 = sphi 0, %s33
    %s34 = sphi 0, %s31
    %s35 = sphi 0, %s34
    %s51 = sphi 0, %s35
    %s59 = sphi 0, %s61
    %s62 = sphi 0, %s59
    %s63 = sphi 0, %s62
    %s79 = sphi 0, %s63
  $region4: #{vgg_forward_pallas.10} parent=0 // loop_header_branch
    %10 = sbr.rel (%p8) target = $region8
  $region5: #{vgg_forward_pallas.10} parent=0 // loop_body
    %s12 = ssub.s32 %s7, 1
    %s13 = ssub.s32 %s7, 2
    %s20 = sadd.s32 1, %s15
    %p21 = scmp.ge.s32.totalorder %s20, 7
    %s22 = scalar_select %p21, 0, %s20
    %s23 = sadd.s32 1, %s14
    %s24 = scalar_select %p21, %s23, %s14
    %p25 = scmp.ge.s32.totalorder %s24, 2
    %s26 = scalar_select %p25, 0, %s24
    %s27 = ssub.s32 %s14, %s26
    %s28 = ssub.s32 %s15, %s22
    %s29 = sor.u32 %s27, %s28
    %p30 = scmp.eq.s32.totalorder %s29, 0
    %s32 = sadd.s32 %s31, 1
    %s33 = scalar_select %p30, %s31, %s32
    %p36 = pneg %p30
    %p37 = scmp.eq.s32.totalorder %s7, 13
    %p38 = por %p36, %p37
    %p39 = scmp.ne.s32.totalorder %s31, %s34
    %p40 = scmp.eq.s32.totalorder %s7, 0
    %p41 = por %p39, %p40
    %p42 = scmp.ne.s32.totalorder %s31, %s34
    %p43 = scmp.eq.s32.totalorder %s12, 13
    %p44 = por %p42, %p43
    %p45 = scmp.ne.s32.totalorder %s34, %s35
    %p46 = scmp.eq.s32.totalorder %s12, 0
    %p47 = por %p45, %p46
    %p48 = scmp.ne.s32.totalorder %s34, %s35
    %p49 = scmp.eq.s32.totalorder %s13, 13
    %p50 = por %p48, %p49
    %p52 = scmp.ne.s32.totalorder %s35, %s51
    %p53 = scmp.eq.s32.totalorder %s13, 0
    %p54 = por %p52, %p53
    %s55 = ssub.s32 %s14, %s26
    %s56 = ssub.s32 %s15, %s22
    %s57 = sor.u32 %s55, %s56
    %p58 = scmp.eq.s32.totalorder %s57, 0
    %s60 = sadd.s32 %s59, 1
    %s61 = scalar_select %p58, %s59, %s60
    %p64 = pneg %p58
    %p65 = scmp.eq.s32.totalorder %s7, 13
    %p66 = por %p64, %p65
    %p67 = scmp.ne.s32.totalorder %s59, %s62
    %p68 = scmp.eq.s32.totalorder %s7, 0
    %p69 = por %p67, %p68
    %p70 = scmp.ne.s32.totalorder %s59, %s62
    %p71 = scmp.eq.s32.totalorder %s12, 13
    %p72 = por %p70, %p71
    %p73 = scmp.ne.s32.totalorder %s62, %s63
    %p74 = scmp.eq.s32.totalorder %s12, 0
    %p75 = por %p73, %p74
    %p76 = scmp.ne.s32.totalorder %s62, %s63
    %p77 = scmp.eq.s32.totalorder %s13, 13
    %p78 = por %p76, %p77
    %p80 = scmp.ne.s32.totalorder %s63, %s79
    %p81 = scmp.eq.s32.totalorder %s13, 0
    %p82 = por %p80, %p81
    %p83 = scmp.le.s32.totalorder 1, %s7
    %p84 = scmp.lt.s32.totalorder %s7, 15
    %p85 = pnand %p83, %p84
    %p86 = pneg %p85
    // Predicated region
    $region9: #{vgg_forward_pallas.10} parent=5 // pred_check
      _
    $region10: #{vgg_forward_pallas.10} parent=5 // pred_check_branch
      %88 = sbr.rel (%p85) target = $region12
    $region11: #{vgg_forward_pallas.10} parent=5 // pred_region
      %s89 = ssub.s32 %s7, 1
    $region12: #{vgg_forward_pallas.10} parent=5 // pred_fallthru
      _
    %p90 = scmp.lt.s32.totalorder %s7, 14
    // Predicated region
    $region13: #{vgg_forward_pallas.10} parent=5 // pred_check
      %p91 = pneg %p90
    $region14: #{vgg_forward_pallas.10} parent=5 // pred_check_branch
      %93 = sbr.rel (%p91) target = $region16
    $region15: #{vgg_forward_pallas.10} parent=5 // pred_region
      // Predicated region
      $region17: #{vgg_forward_pallas.10} parent=15 // pred_check
        %p94 = pneg %p41
      $region18: #{vgg_forward_pallas.10} parent=15 // pred_check_branch
        %96 = sbr.rel (%p94) target = $region20
      $region19: #{vgg_forward_pallas.10} parent=15 // pred_region
        %s97 = smul.u32 2, %s15
        %p98 = scmp.lt.s32.totalorder %s14, 1
        %s99 = scalar_select %p98, %s14, 1
        %p100 = scmp.lt.s32.totalorder %s97, 13
        %s101 = scalar_select %p100, %s97, 13
        %s102 = smul.addr %s99, 14
        %s103 = sadd.s32 %s101, %s102
        %s104 = smul.addr %s103, 8
        %s105 = scalar_lea.vmem %s0, %s104
        %s106 = smul.u32 2, %s15
      $region20: #{vgg_forward_pallas.10} parent=15 // pred_fallthru
        _
    $region16: #{vgg_forward_pallas.10} parent=5 // pred_fallthru
      _
    %p107 = scmp.le.s32.totalorder 1, %s7
    %p108 = scmp.lt.s32.totalorder %s7, 15
    %p109 = pnand %p107, %p108
    %p110 = pneg %p109
    // Predicated region
    $region21: #{vgg_forward_pallas.10} parent=5 // pred_check
      _
    $region22: #{vgg_forward_pallas.10} parent=5 // pred_check_branch
      %112 = sbr.rel (%p109) target = $region24
    $region23: #{vgg_forward_pallas.10} parent=5 // pred_region
      %s113 = ssub.s32 %s7, 1
      %s114 = smul.u32 2, %s17
      %p115 = scmp.lt.s32.totalorder %s16, 1
      %s116 = scalar_select %p115, %s16, 1
      %p117 = scmp.lt.s32.totalorder %s114, 13
      %s118 = scalar_select %p117, %s114, 13
      %s119 = smul.addr %s116, 14
      %s120 = sadd.s32 %s118, %s119
      %s121 = smul.addr %s120, 8
      %s122 = scalar_lea.vmem %s0, %s121
      %p123 = pneg %p47
      %p124 = pneg %p44
      %p125 = pneg %p75
      %p126 = pneg %p72
      %p127 = scmp.lt.s32.totalorder %s16, 1
      %s128 = scalar_select %p127, %s16, 1
      %p129 = scmp.lt.s32.totalorder %s17, 6
      %s130 = scalar_select %p129, %s17, 6
      %s131 = smul.addr %s128, 7
      %s132 = sadd.s32 %s130, %s131
      %s133 = smul.addr %s132, 8
      %s134 = scalar_lea.vmem %s1, %s133
      %s135 = smul.u32 2, %s17
      %p136 = scmp.lt.s32.totalorder %s16, 1
      %s137 = scalar_select %p136, %s16, 1
      %p138 = scmp.lt.s32.totalorder %s135, 13
      %s139 = scalar_select %p138, %s135, 13
      %s140 = smul.addr %s137, 14
      %s141 = sadd.s32 %s139, %s140
      %s142 = smul.addr %s141, 8
      %s143 = scalar_lea.vmem %s0, %s142
      %s144 = smul.u32 2, %s17
      %p145 = scmp.lt.s32.totalorder %s16, 1
      %s146 = scalar_select %p145, %s16, 1
      %p147 = scmp.lt.s32.totalorder %s17, 6
      %s148 = scalar_select %p147, %s17, 6
      %s149 = smul.addr %s146, 7
      %s150 = sadd.s32 %s148, %s149
      %s151 = smul.addr %s150, 8
      %s152 = scalar_lea.vmem %s1, %s151
      %v153 = vld [vmem:[%s143] sm:$0x7f]
      %s154 = scalar_lea.vmem %s143, 8
      %v155 = vld [vmem:[%s154] sm:$0x7f]
      %v156 = vadd.f32 %v153, %v155
      %158 = vrot.lane.b32.xlu0 %v156, 112
      %v159 = vpop.permute.xlu0 %158
      %v161 = vadd.f32 %v156, %v159
      %v162 = vmul.f32 %v161, 0.25
      %vm163 = vcmask 129024
      %164 = vst.msk [vmem:[%s152] sm:$0x7f] %vm163, %v162
      %p165 = scmp.lt.s32.totalorder %s16, 1
      %s166 = scalar_select %p165, %s16, 1
      %p167 = scmp.lt.s32.totalorder %s17, 6
      %s168 = scalar_select %p167, %s17, 6
      %s169 = smul.addr %s166, 7
      %s170 = sadd.s32 %s168, %s169
      %s171 = smul.addr %s170, 8
      %s172 = scalar_lea.vmem %s1, %s171
      // Predicated region
      $region25: #{vgg_forward_pallas.10} parent=23 // pred_check
        %p173 = pneg %p72
      $region26: #{vgg_forward_pallas.10} parent=23 // pred_check_branch
        %175 = sbr.rel (%p173) target = $region28
      $region27: #{vgg_forward_pallas.10} parent=23 // pred_region
        _
      $region28: #{vgg_forward_pallas.10} parent=23 // pred_fallthru
        _
    $region24: #{vgg_forward_pallas.10} parent=5 // pred_fallthru
      _
    %p176 = scmp.le.s32.totalorder 2, %s7
    // Predicated region
    $region29: #{vgg_forward_pallas.10} parent=5 // pred_check
      %p177 = pneg %p176
    $region30: #{vgg_forward_pallas.10} parent=5 // pred_check_branch
      %179 = sbr.rel (%p177) target = $region32
    $region31: #{vgg_forward_pallas.10} parent=5 // pred_region
      %s180 = ssub.s32 %s7, 2
      // Predicated region
      $region33: #{vgg_forward_pallas.10} parent=31 // pred_check
        %p181 = pneg %p78
      $region34: #{vgg_forward_pallas.10} parent=31 // pred_check_branch
        %183 = sbr.rel (%p181) target = $region36
      $region35: #{vgg_forward_pallas.10} parent=31 // pred_region
        %p184 = scmp.lt.s32.totalorder %s18, 1
        %s185 = scalar_select %p184, %s18, 1
        %p186 = scmp.lt.s32.totalorder %s19, 6
        %s187 = scalar_select %p186, %s19, 6
        %s188 = smul.addr %s185, 7
        %s189 = sadd.s32 %s187, %s188
        %s190 = smul.addr %s189, 8
        %s191 = scalar_lea.vmem %s1, %s190
      $region36: #{vgg_forward_pallas.10} parent=31 // pred_fallthru
        _
    $region32: #{vgg_forward_pallas.10} parent=5 // pred_fallthru
      _
  $region6: #{vgg_forward_pallas.10} parent=0 // loop_footer
    %s11 = sadd.s32 1, %s7
  $region7: #{vgg_forward_pallas.10} parent=0 // loop_footer_branch
    %6 = sbr.rel target = $region3
  $region8: #{vgg_forward_pallas.10} parent=0 // loop_exit
    _

// kernel: vgg_forward_pallas.11
$region0: #{vgg_forward_pallas.11}
  #allocation0 [shape = 'u32[]', space=smem, size = 0x4, offset = 0x4, fixed_abs, tag = 'smem constant byte address 0x4 - core index']
  #allocation1 [shape = 'u32[144,128]{1,0:T(1,128)}', space=vmem, size = 0x12000, scoped, tag = 'internal scratch']
  %s0 = inlined_call_operand.vmem [shape: f32[2,784], index: 0, kind: input, shape index: {}]
  %s1 = inlined_call_operand.vmem [shape: f32[784,64], index: 1, kind: input, shape index: {}]
  %s2 = inlined_call_operand.vmem [shape: f32[1,64], index: 2, kind: input, shape index: {}]
  %s3 = inlined_call_operand.vmem [shape: f32[64,64], index: 3, kind: input, shape index: {}]
  %s4 = inlined_call_operand.vmem [shape: f32[1,64], index: 4, kind: input, shape index: {}]
  %s5 = inlined_call_operand.vmem [shape: f32[64,10], index: 5, kind: input, shape index: {}]
  %s6 = inlined_call_operand.vmem [shape: f32[1,10], index: 6, kind: input, shape index: {}]
  %s7 = inlined_call_operand.hbm [shape: f32[2,10], index: 7, kind: output, shape index: {}]
  %s8 = sld [smem:[#allocation0]]
  $region38: #{vgg_forward_pallas.11} parent=0
    _
  %s10 = ssub.s32 1, %s8
  %s11 = scalar_select 0, %s10, %s8
  $region1: #{vgg_forward_pallas.11} parent=0
    #allocation2 [shape = 'u8[1024]{0}', space=vmem, size = 0x400, scoped, tag = 'output window, operand 0, single buffered']
    #allocation3 [shape = 's32[1]{0}', space=sflag, size = 0x4, scoped, tag = 'scoped memory for vgg_forward_pallas.11']
    %12 = vsyncpa [#allocation3], 0
    // Predicated region
    $region2: #{vgg_forward_pallas.11} parent=1 // pred_check
      _
    $region3: #{vgg_forward_pallas.11} parent=1 // pred_check_branch
      %14 = sbr.rel (0) target = $region5
    $region4: #{vgg_forward_pallas.11} parent=1 // pred_region
      _
    $region5: #{vgg_forward_pallas.11} parent=1 // pred_fallthru
      _
    // Predicated region
    $region6: #{vgg_forward_pallas.11} parent=1 // pred_check
      _
    $region7: #{vgg_forward_pallas.11} parent=1 // pred_check_branch
      %16 = sbr.rel (0) target = $region9
    $region8: #{vgg_forward_pallas.11} parent=1 // pred_region
      _
    $region9: #{vgg_forward_pallas.11} parent=1 // pred_fallthru
      _
    // Predicated region
    $region10: #{vgg_forward_pallas.11} parent=1 // pred_check
      _
    $region11: #{vgg_forward_pallas.11} parent=1 // pred_check_branch
      %18 = sbr.rel (0) target = $region13
    $region12: #{vgg_forward_pallas.11} parent=1 // pred_region
      _
    $region13: #{vgg_forward_pallas.11} parent=1 // pred_fallthru
      _
    // Predicated region
    $region14: #{vgg_forward_pallas.11} parent=1 // pred_check
      _
    $region15: #{vgg_forward_pallas.11} parent=1 // pred_check_branch
      %20 = sbr.rel (0) target = $region17
    $region16: #{vgg_forward_pallas.11} parent=1 // pred_region
      _
    $region17: #{vgg_forward_pallas.11} parent=1 // pred_fallthru
      _
    // Predicated region
    $region18: #{vgg_forward_pallas.11} parent=1 // pred_check
      _
    $region19: #{vgg_forward_pallas.11} parent=1 // pred_check_branch
      %22 = sbr.rel (0) target = $region21
    $region20: #{vgg_forward_pallas.11} parent=1 // pred_region
      _
    $region21: #{vgg_forward_pallas.11} parent=1 // pred_fallthru
      _
    // Predicated region
    $region22: #{vgg_forward_pallas.11} parent=1 // pred_check
      _
    $region23: #{vgg_forward_pallas.11} parent=1 // pred_check_branch
      %24 = sbr.rel (0) target = $region25
    $region24: #{vgg_forward_pallas.11} parent=1 // pred_region
      _
    $region25: #{vgg_forward_pallas.11} parent=1 // pred_fallthru
      _
    // Predicated region
    $region26: #{vgg_forward_pallas.11} parent=1 // pred_check
      _
    $region27: #{vgg_forward_pallas.11} parent=1 // pred_check_branch
      %26 = sbr.rel (0) target = $region29
    $region28: #{vgg_forward_pallas.11} parent=1 // pred_region
      _
    $region29: #{vgg_forward_pallas.11} parent=1 // pred_fallthru
      _
    %v27 = vld [vmem:[%s0] sm:$0xff]
    %v28 = vld [vmem:[%s0 + $0x8] sm:$0x3f]
    %v29 = vld [vmem:[%s1] sm:$0xff]
    %v30 = vld [vmem:[%s1 + $0x8] sm:$0xff]
    %v31 = vld [vmem:[%s1 + $0x10] sm:$0xff]
    %v32 = vld [vmem:[%s1 + $0x18] sm:$0xff]
    %v33 = vld [vmem:[%s1 + $0x20] sm:$0xff]
    %v34 = vld [vmem:[%s1 + $0x28] sm:$0xff]
    %v35 = vld [vmem:[%s1 + $0x30] sm:$0xff]
    %v36 = vld [vmem:[%s1 + $0x38] sm:$0xff]
    %v37 = vld [vmem:[%s1 + $0x40] sm:$0xff]
    %v38 = vld [vmem:[%s1 + $0x48] sm:$0xff]
    %v39 = vld [vmem:[%s1 + $0x50] sm:$0xff]
    %v40 = vld [vmem:[%s1 + $0x58] sm:$0xff]
    %v41 = vld [vmem:[%s1 + $0x60] sm:$0xff]
    %v42 = vld [vmem:[%s1 + $0x68] sm:$0xff]
    %v43 = vld [vmem:[%s1 + $0x70] sm:$0xff]
    %v44 = vld [vmem:[%s1 + $0x78] sm:$0xff]
    %v45 = vld [vmem:[%s1 + $0x80] sm:$0xff]
    %v46 = vld [vmem:[%s1 + $0x88] sm:$0xff]
    %v47 = vld [vmem:[%s1 + $0x90] sm:$0xff]
    %v48 = vld [vmem:[%s1 + $0x98] sm:$0xff]
    %v49 = vld [vmem:[%s1 + $0xa0] sm:$0xff]
    %v50 = vld [vmem:[%s1 + $0xa8] sm:$0xff]
    %v51 = vld [vmem:[%s1 + $0xb0] sm:$0xff]
    %v52 = vld [vmem:[%s1 + $0xb8] sm:$0xff]
    %v53 = vld [vmem:[%s1 + $0xc0] sm:$0xff]
    %v54 = vld [vmem:[%s1 + $0xc8] sm:$0xff]
    %v55 = vld [vmem:[%s1 + $0xd0] sm:$0xff]
    %v56 = vld [vmem:[%s1 + $0xd8] sm:$0xff]
    %v57 = vld [vmem:[%s1 + $0xe0] sm:$0xff]
    %v58 = vld [vmem:[%s1 + $0xe8] sm:$0xff]
    %v59 = vld [vmem:[%s1 + $0xf0] sm:$0xff]
    %v60 = vld [vmem:[%s1 + $0xf8] sm:$0xff]
    %v61 = vld [vmem:[%s1 + $0x100] sm:$0xff]
    %v62 = vld [vmem:[%s1 + $0x108] sm:$0xff]
    %v63 = vld [vmem:[%s1 + $0x110] sm:$0xff]
    %v64 = vld [vmem:[%s1 + $0x118] sm:$0xff]
    %v65 = vld [vmem:[%s1 + $0x120] sm:$0xff]
    %v66 = vld [vmem:[%s1 + $0x128] sm:$0xff]
    %v67 = vld [vmem:[%s1 + $0x130] sm:$0xff]
    %v68 = vld [vmem:[%s1 + $0x138] sm:$0xff]
    %v69 = vld [vmem:[%s1 + $0x140] sm:$0xff]
    %v70 = vld [vmem:[%s1 + $0x148] sm:$0xff]
    %v71 = vld [vmem:[%s1 + $0x150] sm:$0xff]
    %v72 = vld [vmem:[%s1 + $0x158] sm:$0xff]
    %v73 = vld [vmem:[%s1 + $0x160] sm:$0xff]
    %v74 = vld [vmem:[%s1 + $0x168] sm:$0xff]
    %v75 = vld [vmem:[%s1 + $0x170] sm:$0xff]
    %v76 = vld [vmem:[%s1 + $0x178] sm:$0xff]
    %v77 = vld [vmem:[%s1 + $0x180] sm:$0xff]
    %v78 = vld [vmem:[%s1 + $0x188] sm:$0xff]
    %v79 = vld [vmem:[%s1 + $0x190] sm:$0xff]
    %v80 = vld [vmem:[%s1 + $0x198] sm:$0xff]
    %v81 = vld [vmem:[%s1 + $0x1a0] sm:$0xff]
    %v82 = vld [vmem:[%s1 + $0x1a8] sm:$0xff]
    %v83 = vld [vmem:[%s1 + $0x1b0] sm:$0xff]
    %v84 = vld [vmem:[%s1 + $0x1b8] sm:$0xff]
    %v85 = vld [vmem:[%s1 + $0x1c0] sm:$0xff]
    %v86 = vld [vmem:[%s1 + $0x1c8] sm:$0xff]
    %v87 = vld [vmem:[%s1 + $0x1d0] sm:$0xff]
    %v88 = vld [vmem:[%s1 + $0x1d8] sm:$0xff]
    %v89 = vld [vmem:[%s1 + $0x1e0] sm:$0xff]
    %v90 = vld [vmem:[%s1 + $0x1e8] sm:$0xff]
    %v91 = vld [vmem:[%s1 + $0x1f0] sm:$0xff]
    %v92 = vld [vmem:[%s1 + $0x1f8] sm:$0xff]
    %v93 = vld [vmem:[%s1 + $0x200] sm:$0xff]
    %v94 = vld [vmem:[%s1 + $0x208] sm:$0xff]
    %v95 = vld [vmem:[%s1 + $0x210] sm:$0xff]
    %v96 = vld [vmem:[%s1 + $0x218] sm:$0xff]
    %v97 = vld [vmem:[%s1 + $0x220] sm:$0xff]
    %v98 = vld [vmem:[%s1 + $0x228] sm:$0xff]
    %v99 = vld [vmem:[%s1 + $0x230] sm:$0xff]
    %v100 = vld [vmem:[%s1 + $0x238] sm:$0xff]
    %v101 = vld [vmem:[%s1 + $0x240] sm:$0xff]
    %v102 = vld [vmem:[%s1 + $0x248] sm:$0xff]
    %v103 = vld [vmem:[%s1 + $0x250] sm:$0xff]
    %v104 = vld [vmem:[%s1 + $0x258] sm:$0xff]
    %v105 = vld [vmem:[%s1 + $0x260] sm:$0xff]
    %v106 = vld [vmem:[%s1 + $0x268] sm:$0xff]
    %v107 = vld [vmem:[%s1 + $0x270] sm:$0xff]
    %v108 = vld [vmem:[%s1 + $0x278] sm:$0xff]
    %v109 = vld [vmem:[%s1 + $0x280] sm:$0xff]
    %v110 = vld [vmem:[%s1 + $0x288] sm:$0xff]
    %v111 = vld [vmem:[%s1 + $0x290] sm:$0xff]
    %v112 = vld [vmem:[%s1 + $0x298] sm:$0xff]
    %v113 = vld [vmem:[%s1 + $0x2a0] sm:$0xff]
    %v114 = vld [vmem:[%s1 + $0x2a8] sm:$0xff]
    %v115 = vld [vmem:[%s1 + $0x2b0] sm:$0xff]
    %v116 = vld [vmem:[%s1 + $0x2b8] sm:$0xff]
    %v117 = vld [vmem:[%s1 + $0x2c0] sm:$0xff]
    %v118 = vld [vmem:[%s1 + $0x2c8] sm:$0xff]
    %v119 = vld [vmem:[%s1 + $0x2d0] sm:$0xff]
    %v120 = vld [vmem:[%s1 + $0x2d8] sm:$0xff]
    %v121 = vld [vmem:[%s1 + $0x2e0] sm:$0xff]
    %v122 = vld [vmem:[%s1 + $0x2e8] sm:$0xff]
    %v123 = vld [vmem:[%s1 + $0x2f0] sm:$0xff]
    %v124 = vld [vmem:[%s1 + $0x2f8] sm:$0xff]
    %v125 = vld [vmem:[%s1 + $0x300] sm:$0xff]
    %v126 = vld [vmem:[%s1 + $0x308] sm:$0xff]
    %v127 = vld [vmem:[%s2] sm:$0x1]
    %v129 = vlaneseq
    %v130 = vshrl.u32 %v129, 7
    %v131 = vsub.s32 0, %v130
    %v132 = vrot.slane %v127, %v131
    %v136 = vcombine.high %v27, %v27
    %v138 = vunpack.c.l.s4 1983009808
    %v139 = vunpack.c.0.s8 %v138
    %v140 = vlaneseq
    %v141 = vshrl.u32 %v140, 7
    %v142 = vsub.s32 %v139, %v141
    %v143 = vrot.slane %v27, %v142
    %v145 = vunpack.c.l.s4 1983009808
    %v146 = vunpack.c.0.s8 %v145
    %v147 = vlaneseq
    %v148 = vshrl.u32 %v147, 7
    %v149 = vsub.s32 %v146, %v148
    %v150 = vrot.slane %v136, %v149
    %v151 = vcombine.high %v143, %v143
    %v152 = vcombine.high %v150, %v150
    %v153 = vcombine.high %v28, %v28
    %v155 = vunpack.c.l.s4 1983009808
    %v156 = vunpack.c.0.s8 %v155
    %v157 = vlaneseq
    %v158 = vshrl.u32 %v157, 7
    %v159 = vsub.s32 %v156, %v158
    %v160 = vrot.slane %v28, %v159
    %v162 = vunpack.c.l.s4 1983009808
    %v163 = vunpack.c.0.s8 %v162
    %v164 = vlaneseq
    %v165 = vshrl.u32 %v164, 7
    %v166 = vsub.s32 %v163, %v165
    %v167 = vrot.slane %v153, %v166
    %v168 = vcombine.high %v160, %v160
    %vm175 = vcmask 130048
    %v176 = vsel %vm175, %v167, 0
    %178 = vmatprep.subr.mxu0 0.0
    %179 = vmatpush1.msra.mxu0 %v44
    %180 = vmatprep.subr.mxu0 0.0
    %181 = vmatpush1.msra.mxu0 %v43
    %182 = vmatprep.subr.mxu0 0.0
    %183 = vmatpush1.msra.mxu0 %v42
    %184 = vmatprep.subr.mxu0 0.0
    %185 = vmatpush1.msra.mxu0 %v41
    %186 = vmatprep.subr.mxu0 0.0
    %187 = vmatpush1.msra.mxu0 %v40
    %188 = vmatprep.subr.mxu0 0.0
    %189 = vmatpush1.msra.mxu0 %v39
    %190 = vmatprep.subr.mxu0 0.0
    %191 = vmatpush1.msra.mxu0 %v38
    %192 = vmatprep.subr.mxu0 0.0
    %193 = vmatpush1.msra.mxu0 %v37
    %194 = vmatprep.subr.mxu0 0.0
    %195 = vmatpush1.msra.mxu0 %v36
    %196 = vmatprep.subr.mxu0 0.0
    %197 = vmatpush1.msra.mxu0 %v35
    %198 = vmatprep.subr.mxu0 0.0
    %199 = vmatpush1.msra.mxu0 %v34
    %200 = vmatprep.subr.mxu0 0.0
    %201 = vmatpush1.msra.mxu0 %v33
    %202 = vmatprep.subr.mxu0 0.0
    %203 = vmatpush1.msra.mxu0 %v32
    %204 = vmatprep.subr.mxu0 0.0
    %205 = vmatpush1.msra.mxu0 %v31
    %206 = vmatprep.subr.mxu0 0.0
    %207 = vmatpush1.msra.mxu0 %v30
    %208 = vmatprep.subr.mxu0 0.0
    %209 = vmatpush1.msra.mxu0 %v29
    %210 = vmatprep.subr.mxu0 0.0
    %211 = vmatpush2.msra.mxu0 %v60
    %212 = vmatprep.subr.mxu0 0.0
    %213 = vmatpush2.msra.mxu0 %v59
    %214 = vmatprep.subr.mxu0 0.0
    %215 = vmatpush2.msra.mxu0 %v58
    %216 = vmatprep.subr.mxu0 0.0
    %217 = vmatpush2.msra.mxu0 %v57
    %218 = vmatprep.subr.mxu0 0.0
    %219 = vmatpush2.msra.mxu0 %v56
    %220 = vmatprep.subr.mxu0 0.0
    %221 = vmatpush2.msra.mxu0 %v55
    %222 = vmatprep.subr.mxu0 0.0
    %223 = vmatpush2.msra.mxu0 %v54
    %224 = vmatprep.subr.mxu0 0.0
    %225 = vmatpush2.msra.mxu0 %v53
    %226 = vmatprep.subr.mxu0 0.0
    %227 = vmatpush2.msra.mxu0 %v52
    %228 = vmatprep.subr.mxu0 0.0
    %229 = vmatpush2.msra.mxu0 %v51
    %230 = vmatprep.subr.mxu0 0.0
    %231 = vmatpush2.msra.mxu0 %v50
    %232 = vmatprep.subr.mxu0 0.0
    %233 = vmatpush2.msra.mxu0 %v49
    %234 = vmatprep.subr.mxu0 0.0
    %235 = vmatpush2.msra.mxu0 %v48
    %236 = vmatprep.subr.mxu0 0.0
    %237 = vmatpush2.msra.mxu0 %v47
    %238 = vmatprep.subr.mxu0 0.0
    %239 = vmatpush2.msra.mxu0 %v46
    %240 = vmatprep.subr.mxu0 0.0
    %241 = vmatpush2.msra.mxu0 %v45
    %242 = vmatprep.mubr.f32.mxu0 %v151
    %243 = vmatmul.mubr.f32.gmra.mxu0 %v143
    %v244 = vpop.f32.mrf.mxu0
    %v245 = vadd.f32 %v132, %v244
    %v246 = vpop.f32.mrf.mxu0
    %247 = vdwg.mxu0
    %248 = vmatprep.subr.mxu0 0.0
    %249 = vmatpush1.msra.mxu0 %v76
    %250 = vmatprep.subr.mxu0 0.0
    %251 = vmatpush1.msra.mxu0 %v75
    %252 = vmatprep.subr.mxu0 0.0
    %253 = vmatpush1.msra.mxu0 %v74
    %254 = vmatprep.subr.mxu0 0.0
    %255 = vmatpush1.msra.mxu0 %v73
    %256 = vmatprep.subr.mxu0 0.0
    %257 = vmatpush1.msra.mxu0 %v72
    %258 = vmatprep.subr.mxu0 0.0
    %259 = vmatpush1.msra.mxu0 %v71
    %260 = vmatprep.subr.mxu0 0.0
    %261 = vmatpush1.msra.mxu0 %v70
    %262 = vmatprep.subr.mxu0 0.0
    %263 = vmatpush1.msra.mxu0 %v69
    %264 = vmatprep.subr.mxu0 0.0
    %265 = vmatpush1.msra.mxu0 %v68
    %266 = vmatprep.subr.mxu0 0.0
    %267 = vmatpush1.msra.mxu0 %v67
    %268 = vmatprep.subr.mxu0 0.0
    %269 = vmatpush1.msra.mxu0 %v66
    %270 = vmatprep.subr.mxu0 0.0
    %271 = vmatpush1.msra.mxu0 %v65
    %272 = vmatprep.subr.mxu0 0.0
    %273 = vmatpush1.msra.mxu0 %v64
    %274 = vmatprep.subr.mxu0 0.0
    %275 = vmatpush1.msra.mxu0 %v63
    %276 = vmatprep.subr.mxu0 0.0
    %277 = vmatpush1.msra.mxu0 %v62
    %278 = vmatprep.subr.mxu0 0.0
    %279 = vmatpush1.msra.mxu0 %v61
    %280 = vmatprep.subr.mxu0 0.0
    %281 = vmatpush2.msra.mxu0 %v92
    %282 = vmatprep.subr.mxu0 0.0
    %283 = vmatpush2.msra.mxu0 %v91
    %284 = vmatprep.subr.mxu0 0.0
    %285 = vmatpush2.msra.mxu0 %v90
    %286 = vmatprep.subr.mxu0 0.0
    %287 = vmatpush2.msra.mxu0 %v89
    %288 = vmatprep.subr.mxu0 0.0
    %289 = vmatpush2.msra.mxu0 %v88
    %290 = vmatprep.subr.mxu0 0.0
    %291 = vmatpush2.msra.mxu0 %v87
    %292 = vmatprep.subr.mxu0 0.0
    %293 = vmatpush2.msra.mxu0 %v86
    %294 = vmatprep.subr.mxu0 0.0
    %295 = vmatpush2.msra.mxu0 %v85
    %296 = vmatprep.subr.mxu0 0.0
    %297 = vmatpush2.msra.mxu0 %v84
    %298 = vmatprep.subr.mxu0 0.0
    %299 = vmatpush2.msra.mxu0 %v83
    %300 = vmatprep.subr.mxu0 0.0
    %301 = vmatpush2.msra.mxu0 %v82
    %302 = vmatprep.subr.mxu0 0.0
    %303 = vmatpush2.msra.mxu0 %v81
    %304 = vmatprep.subr.mxu0 0.0
    %305 = vmatpush2.msra.mxu0 %v80
    %306 = vmatprep.subr.mxu0 0.0
    %307 = vmatpush2.msra.mxu0 %v79
    %308 = vmatprep.subr.mxu0 0.0
    %309 = vmatpush2.msra.mxu0 %v78
    %310 = vmatprep.subr.mxu0 0.0
    %311 = vmatpush2.msra.mxu0 %v77
    %312 = vmatprep.mubr.f32.mxu0 %v152
    %313 = vmatmul.mubr.f32.gmra.mxu0 %v150
    %v314 = vpop.f32.mrf.mxu0
    %v315 = vadd.f32 %v245, %v314
    %v316 = vpop.f32.mrf.mxu0
    %317 = vdwg.mxu0
    %318 = vmatprep.subr.mxu0 0.0
    %319 = vmatpush1.msra.mxu0 %v108
    %320 = vmatprep.subr.mxu0 0.0
    %321 = vmatpush1.msra.mxu0 %v107
    %322 = vmatprep.subr.mxu0 0.0
    %323 = vmatpush1.msra.mxu0 %v106
    %324 = vmatprep.subr.mxu0 0.0
    %325 = vmatpush1.msra.mxu0 %v105
    %326 = vmatprep.subr.mxu0 0.0
    %327 = vmatpush1.msra.mxu0 %v104
    %328 = vmatprep.subr.mxu0 0.0
    %329 = vmatpush1.msra.mxu0 %v103
    %330 = vmatprep.subr.mxu0 0.0
    %331 = vmatpush1.msra.mxu0 %v102
    %332 = vmatprep.subr.mxu0 0.0
    %333 = vmatpush1.msra.mxu0 %v101
    %334 = vmatprep.subr.mxu0 0.0
    %335 = vmatpush1.msra.mxu0 %v100
    %336 = vmatprep.subr.mxu0 0.0
    %337 = vmatpush1.msra.mxu0 %v99
    %338 = vmatprep.subr.mxu0 0.0
    %339 = vmatpush1.msra.mxu0 %v98
    %340 = vmatprep.subr.mxu0 0.0
    %341 = vmatpush1.msra.mxu0 %v97
    %342 = vmatprep.subr.mxu0 0.0
    %343 = vmatpush1.msra.mxu0 %v96
    %344 = vmatprep.subr.mxu0 0.0
    %345 = vmatpush1.msra.mxu0 %v95
    %346 = vmatprep.subr.mxu0 0.0
    %347 = vmatpush1.msra.mxu0 %v94
    %348 = vmatprep.subr.mxu0 0.0
    %349 = vmatpush1.msra.mxu0 %v93
    %350 = vmatprep.subr.mxu0 0.0
    %351 = vmatpush2.msra.mxu0 %v124
    %352 = vmatprep.subr.mxu0 0.0
    %353 = vmatpush2.msra.mxu0 %v123
    %354 = vmatprep.subr.mxu0 0.0
    %355 = vmatpush2.msra.mxu0 %v122
    %356 = vmatprep.subr.mxu0 0.0
    %357 = vmatpush2.msra.mxu0 %v121
    %358 = vmatprep.subr.mxu0 0.0
    %359 = vmatpush2.msra.mxu0 %v120
    %360 = vmatprep.subr.mxu0 0.0
    %361 = vmatpush2.msra.mxu0 %v119
    %362 = vmatprep.subr.mxu0 0.0
    %363 = vmatpush2.msra.mxu0 %v118
    %364 = vmatprep.subr.mxu0 0.0
    %365 = vmatpush2.msra.mxu0 %v117
    %366 = vmatprep.subr.mxu0 0.0
    %367 = vmatpush2.msra.mxu0 %v116
    %368 = vmatprep.subr.mxu0 0.0
    %369 = vmatpush2.msra.mxu0 %v115
    %370 = vmatprep.subr.mxu0 0.0
    %371 = vmatpush2.msra.mxu0 %v114
    %372 = vmatprep.subr.mxu0 0.0
    %373 = vmatpush2.msra.mxu0 %v113
    %374 = vmatprep.subr.mxu0 0.0
    %375 = vmatpush2.msra.mxu0 %v112
    %376 = vmatprep.subr.mxu0 0.0
    %377 = vmatpush2.msra.mxu0 %v111
    %378 = vmatprep.subr.mxu0 0.0
    %379 = vmatpush2.msra.mxu0 %v110
    %380 = vmatprep.subr.mxu0 0.0
    %381 = vmatpush2.msra.mxu0 %v109
    %382 = vmatprep.mubr.f32.mxu0 %v168
    %383 = vmatmul.mubr.f32.gmra.mxu0 %v160
    %v384 = vpop.f32.mrf.mxu0
    %v385 = vadd.f32 %v315, %v384
    %v386 = vpop.f32.mrf.mxu0
    %387 = vdwg.mxu0
    %388 = vmatprep.subr.mxu0 0.0
    %389 = vmatpush1.msra.mxu0 0.0
    %390 = vmatprep.subr.mxu0 0.0
    %391 = vmatpush1.msra.mxu0 0.0
    %392 = vmatprep.subr.mxu0 0.0
    %393 = vmatpush1.msra.mxu0 0.0
    %394 = vmatprep.subr.mxu0 0.0
    %395 = vmatpush1.msra.mxu0 0.0
    %396 = vmatprep.subr.mxu0 0.0
    %397 = vmatpush1.msra.mxu0 0.0
    %398 = vmatprep.subr.mxu0 0.0
    %399 = vmatpush1.msra.mxu0 0.0
    %400 = vmatprep.subr.mxu0 0.0
    %401 = vmatpush1.msra.mxu0 0.0
    %402 = vmatprep.subr.mxu0 0.0
    %403 = vmatpush1.msra.mxu0 0.0
    %404 = vmatprep.subr.mxu0 0.0
    %405 = vmatpush1.msra.mxu0 0.0
    %406 = vmatprep.subr.mxu0 0.0
    %407 = vmatpush1.msra.mxu0 0.0
    %408 = vmatprep.subr.mxu0 0.0
    %409 = vmatpush1.msra.mxu0 0.0
    %410 = vmatprep.subr.mxu0 0.0
    %411 = vmatpush1.msra.mxu0 0.0
    %412 = vmatprep.subr.mxu0 0.0
    %413 = vmatpush1.msra.mxu0 0.0
    %414 = vmatprep.subr.mxu0 0.0
    %415 = vmatpush1.msra.mxu0 0.0
    %416 = vmatprep.subr.mxu0 0.0
    %417 = vmatpush1.msra.mxu0 %v126
    %418 = vmatprep.subr.mxu0 0.0
    %419 = vmatpush1.msra.mxu0 %v125
    %420 = vmatprep.subr.mxu0 0.0
    %421 = vmatpush2.msra.mxu0 0.0
    %422 = vmatprep.subr.mxu0 0.0
    %423 = vmatpush2.msra.mxu0 0.0
    %424 = vmatprep.subr.mxu0 0.0
    %425 = vmatpush2.msra.mxu0 0.0
    %426 = vmatprep.subr.mxu0 0.0
    %427 = vmatpush2.msra.mxu0 0.0
    %428 = vmatprep.subr.mxu0 0.0
    %429 = vmatpush2.msra.mxu0 0.0
    %430 = vmatprep.subr.mxu0 0.0
    %431 = vmatpush2.msra.mxu0 0.0
    %432 = vmatprep.subr.mxu0 0.0
    %433 = vmatpush2.msra.mxu0 0.0
    %434 = vmatprep.subr.mxu0 0.0
    %435 = vmatpush2.msra.mxu0 0.0
    %436 = vmatprep.subr.mxu0 0.0
    %437 = vmatpush2.msra.mxu0 0.0
    %438 = vmatprep.subr.mxu0 0.0
    %439 = vmatpush2.msra.mxu0 0.0
    %440 = vmatprep.subr.mxu0 0.0
    %441 = vmatpush2.msra.mxu0 0.0
    %442 = vmatprep.subr.mxu0 0.0
    %443 = vmatpush2.msra.mxu0 0.0
    %444 = vmatprep.subr.mxu0 0.0
    %445 = vmatpush2.msra.mxu0 0.0
    %446 = vmatprep.subr.mxu0 0.0
    %447 = vmatpush2.msra.mxu0 0.0
    %448 = vmatprep.subr.mxu0 0.0
    %449 = vmatpush2.msra.mxu0 0.0
    %450 = vmatprep.subr.mxu0 0.0
    %451 = vmatpush2.msra.mxu0 0.0
    %452 = vmatprep.mubr.f32.mxu0 0.0
    %453 = vmatmul.mubr.f32.gmra.mxu0 %v176
    %v454 = vpop.f32.mrf.mxu0
    %v455 = vadd.f32 %v385, %v454
    %v456 = vpop.f32.mrf.mxu0
    %457 = vdwg.mxu0
    %v458 = vmax.f32 %v455, 0.0
    %v459 = vld [vmem:[%s3] sm:$0xff]
    %v460 = vld [vmem:[%s3 + $0x8] sm:$0xff]
    %v461 = vld [vmem:[%s3 + $0x10] sm:$0xff]
    %v462 = vld [vmem:[%s3 + $0x18] sm:$0xff]
    %v463 = vld [vmem:[%s3 + $0x20] sm:$0xff]
    %v464 = vld [vmem:[%s3 + $0x28] sm:$0xff]
    %v465 = vld [vmem:[%s3 + $0x30] sm:$0xff]
    %v466 = vld [vmem:[%s3 + $0x38] sm:$0xff]
    %v467 = vld [vmem:[%s4] sm:$0x1]
    %v469 = vlaneseq
    %v470 = vshrl.u32 %v469, 7
    %v471 = vsub.s32 0, %v470
    %v472 = vrot.slane %v467, %v471
    %vm474 = vcmask 523264
    %v476 = vsel %vm474, %v458, 0
    %478 = vmatprep.subr.mxu0 0.0
    %479 = vmatpush1.msra.mxu0 0.0
    %480 = vmatprep.subr.mxu0 0.0
    %481 = vmatpush1.msra.mxu0 0.0
    %482 = vmatprep.subr.mxu0 0.0
    %483 = vmatpush1.msra.mxu0 0.0
    %484 = vmatprep.subr.mxu0 0.0
    %485 = vmatpush1.msra.mxu0 0.0
    %486 = vmatprep.subr.mxu0 0.0
    %487 = vmatpush1.msra.mxu0 0.0
    %488 = vmatprep.subr.mxu0 0.0
    %489 = vmatpush1.msra.mxu0 0.0
    %490 = vmatprep.subr.mxu0 0.0
    %491 = vmatpush1.msra.mxu0 0.0
    %492 = vmatprep.subr.mxu0 0.0
    %493 = vmatpush1.msra.mxu0 0.0
    %494 = vmatprep.subr.mxu0 0.0
    %495 = vmatpush1.msra.mxu0 %v466
    %496 = vmatprep.subr.mxu0 0.0
    %497 = vmatpush1.msra.mxu0 %v465
    %498 = vmatprep.subr.mxu0 0.0
    %499 = vmatpush1.msra.mxu0 %v464
    %500 = vmatprep.subr.mxu0 0.0
    %501 = vmatpush1.msra.mxu0 %v463
    %502 = vmatprep.subr.mxu0 0.0
    %503 = vmatpush1.msra.mxu0 %v462
    %504 = vmatprep.subr.mxu0 0.0
    %505 = vmatpush1.msra.mxu0 %v461
    %506 = vmatprep.subr.mxu0 0.0
    %507 = vmatpush1.msra.mxu0 %v460
    %508 = vmatprep.subr.mxu0 0.0
    %509 = vmatpush1.msra.mxu0 %v459
    %510 = vmatprep.subr.mxu0 0.0
    %511 = vmatpush2.msra.mxu0 0.0
    %512 = vmatprep.subr.mxu0 0.0
    %513 = vmatpush2.msra.mxu0 0.0
    %514 = vmatprep.subr.mxu0 0.0
    %515 = vmatpush2.msra.mxu0 0.0
    %516 = vmatprep.subr.mxu0 0.0
    %517 = vmatpush2.msra.mxu0 0.0
    %518 = vmatprep.subr.mxu0 0.0
    %519 = vmatpush2.msra.mxu0 0.0
    %520 = vmatprep.subr.mxu0 0.0
    %521 = vmatpush2.msra.mxu0 0.0
    %522 = vmatprep.subr.mxu0 0.0
    %523 = vmatpush2.msra.mxu0 0.0
    %524 = vmatprep.subr.mxu0 0.0
    %525 = vmatpush2.msra.mxu0 0.0
    %526 = vmatprep.subr.mxu0 0.0
    %527 = vmatpush2.msra.mxu0 0.0
    %528 = vmatprep.subr.mxu0 0.0
    %529 = vmatpush2.msra.mxu0 0.0
    %530 = vmatprep.subr.mxu0 0.0
    %531 = vmatpush2.msra.mxu0 0.0
    %532 = vmatprep.subr.mxu0 0.0
    %533 = vmatpush2.msra.mxu0 0.0
    %534 = vmatprep.subr.mxu0 0.0
    %535 = vmatpush2.msra.mxu0 0.0
    %536 = vmatprep.subr.mxu0 0.0
    %537 = vmatpush2.msra.mxu0 0.0
    %538 = vmatprep.subr.mxu0 0.0
    %539 = vmatpush2.msra.mxu0 0.0
    %540 = vmatprep.subr.mxu0 0.0
    %541 = vmatpush2.msra.mxu0 0.0
    %542 = vmatprep.mubr.f32.mxu0 0.0
    %543 = vmatmul.mubr.f32.gmra.mxu0 %v476
    %v544 = vpop.f32.mrf.mxu0
    %v545 = vadd.f32 %v472, %v544
    %v546 = vpop.f32.mrf.mxu0
    %547 = vdwg.mxu0
    %v548 = vmax.f32 %v545, 0.0
    %v549 = vld [vmem:[%s5] sm:$0xff]
    %v550 = vld [vmem:[%s5 + $0x8] sm:$0xff]
    %v551 = vld [vmem:[%s5 + $0x10] sm:$0xff]
    %v552 = vld [vmem:[%s5 + $0x18] sm:$0xff]
    %v553 = vld [vmem:[%s5 + $0x20] sm:$0xff]
    %v554 = vld [vmem:[%s5 + $0x28] sm:$0xff]
    %v555 = vld [vmem:[%s5 + $0x30] sm:$0xff]
    %v556 = vld [vmem:[%s5 + $0x38] sm:$0xff]
    %v557 = vld [vmem:[%s6] sm:$0x1]
    %v559 = vlaneseq
    %v560 = vshrl.u32 %v559, 7
    %v561 = vsub.s32 0, %v560
    %v562 = vrot.slane %v557, %v561
    %v565 = vsel %vm474, %v548, 0
    %567 = vmatprep.subr.mxu0 0.0
    %568 = vmatpush1.msra.mxu0 0.0
    %569 = vmatprep.subr.mxu0 0.0
    %570 = vmatpush1.msra.mxu0 0.0
    %571 = vmatprep.subr.mxu0 0.0
    %572 = vmatpush1.msra.mxu0 0.0
    %573 = vmatprep.subr.mxu0 0.0
    %574 = vmatpush1.msra.mxu0 0.0
    %575 = vmatprep.subr.mxu0 0.0
    %576 = vmatpush1.msra.mxu0 0.0
    %577 = vmatprep.subr.mxu0 0.0
    %578 = vmatpush1.msra.mxu0 0.0
    %579 = vmatprep.subr.mxu0 0.0
    %580 = vmatpush1.msra.mxu0 0.0
    %581 = vmatprep.subr.mxu0 0.0
    %582 = vmatpush1.msra.mxu0 0.0
    %583 = vmatprep.subr.mxu0 0.0
    %584 = vmatpush1.msra.mxu0 %v556
    %585 = vmatprep.subr.mxu0 0.0
    %586 = vmatpush1.msra.mxu0 %v555
    %587 = vmatprep.subr.mxu0 0.0
    %588 = vmatpush1.msra.mxu0 %v554
    %589 = vmatprep.subr.mxu0 0.0
    %590 = vmatpush1.msra.mxu0 %v553
    %591 = vmatprep.subr.mxu0 0.0
    %592 = vmatpush1.msra.mxu0 %v552
    %593 = vmatprep.subr.mxu0 0.0
    %594 = vmatpush1.msra.mxu0 %v551
    %595 = vmatprep.subr.mxu0 0.0
    %596 = vmatpush1.msra.mxu0 %v550
    %597 = vmatprep.subr.mxu0 0.0
    %598 = vmatpush1.msra.mxu0 %v549
    %599 = vmatprep.subr.mxu0 0.0
    %600 = vmatpush2.msra.mxu0 0.0
    %601 = vmatprep.subr.mxu0 0.0
    %602 = vmatpush2.msra.mxu0 0.0
    %603 = vmatprep.subr.mxu0 0.0
    %604 = vmatpush2.msra.mxu0 0.0
    %605 = vmatprep.subr.mxu0 0.0
    %606 = vmatpush2.msra.mxu0 0.0
    %607 = vmatprep.subr.mxu0 0.0
    %608 = vmatpush2.msra.mxu0 0.0
    %609 = vmatprep.subr.mxu0 0.0
    %610 = vmatpush2.msra.mxu0 0.0
    %611 = vmatprep.subr.mxu0 0.0
    %612 = vmatpush2.msra.mxu0 0.0
    %613 = vmatprep.subr.mxu0 0.0
    %614 = vmatpush2.msra.mxu0 0.0
    %615 = vmatprep.subr.mxu0 0.0
    %616 = vmatpush2.msra.mxu0 0.0
    %617 = vmatprep.subr.mxu0 0.0
    %618 = vmatpush2.msra.mxu0 0.0
    %619 = vmatprep.subr.mxu0 0.0
    %620 = vmatpush2.msra.mxu0 0.0
    %621 = vmatprep.subr.mxu0 0.0
    %622 = vmatpush2.msra.mxu0 0.0
    %623 = vmatprep.subr.mxu0 0.0
    %624 = vmatpush2.msra.mxu0 0.0
    %625 = vmatprep.subr.mxu0 0.0
    %626 = vmatpush2.msra.mxu0 0.0
    %627 = vmatprep.subr.mxu0 0.0
    %628 = vmatpush2.msra.mxu0 0.0
    %629 = vmatprep.subr.mxu0 0.0
    %630 = vmatpush2.msra.mxu0 0.0
    %631 = vmatprep.mubr.f32.mxu0 0.0
    %632 = vmatmul.mubr.f32.gmra.mxu0 %v565
    %v633 = vpop.f32.mrf.mxu0
    %v634 = vadd.f32 %v562, %v633
    %v635 = vpop.f32.mrf.mxu0
    %636 = vdwg.mxu0
    %vm637 = vcmask 74752
    %638 = vst.msk [vmem:[#allocation2] sm:$0x3] %vm637, %v634
    // Predicated region
    $region30: #{vgg_forward_pallas.11} parent=1 // pred_check
      _
    $region31: #{vgg_forward_pallas.11} parent=1 // pred_check_branch
      %640 = sbr.rel (0) target = $region33
    $region32: #{vgg_forward_pallas.11} parent=1 // pred_region
      %s642 = ssub.s32 32, 32
      %643 = vsyncadd [#allocation3], %s642
      %s645 = sshll.u32 [#allocation2], 4
      %s646 = int_to_ptr.vmem [resolvable:$true] %s645
      %648 = dma.vmem_to_hbm [thread:$0]  %s646, 32, %s7, [#allocation3]
    $region33: #{vgg_forward_pallas.11} parent=1 // pred_fallthru
      _
    // Predicated region
    $region34: #{vgg_forward_pallas.11} parent=1 // pred_check
      _
    $region35: #{vgg_forward_pallas.11} parent=1 // pred_check_branch
      %650 = sbr.rel (0) target = $region37
    $region36: #{vgg_forward_pallas.11} parent=1 // pred_region
      %651 = dma.done [#allocation3], 32
    $region37: #{vgg_forward_pallas.11} parent=1 // pred_fallthru
      _
    %652 = vsyncpa [#allocation3], 1

</llo_original>
